<compile_context>
chip_gen: v7x
topology: tpu7x:2x2x1
jax: 0.10.0
libtpu: 0.0.40
codegen_flags: <defaults>
</compile_context>

<pallas_src>
import functools
import math

import jax
import jax.numpy as jnp
from jax import lax
from jax.experimental import pallas as pl
from jax.experimental.pallas import tpu as pltpu


def _emd_kernel(x_ref, y_ref, out_ref, *, eps, max_iter, n_pts, k_inner, tol):
    # x_ref, y_ref: (1, N, 3) VMEM tiles for the current batch element.
    # out_ref:      (1, 1, N) lane-dense per-point sqrt(matched squared distance).
    n = n_pts
    x = x_ref[0].astype(jnp.float32)                         # (N, 3)
    y = y_ref[0].astype(jnp.float32)                         # (N, 3)

    inv_eps = jnp.float32(1.0 / eps)
    feps = jnp.float32(eps)
    inv_n = jnp.float32(1.0 / n)
    fn = jnp.float32(n)
    neg_log_n = jnp.float32(-math.log(n))
    tiny = jnp.float32(1e-30)

    # ---- Cost matrix, built once on the MXU; kept eps-scaled (hoisted) ------
    # C_ij = |x_i|^2 + |y_j|^2 - 2 <x_i, y_j>;  cs = C / eps
    x2 = jnp.sum(x * x, axis=-1, keepdims=True)              # (N, 1)
    y2 = jnp.sum(y * y, axis=-1, keepdims=True)              # (N, 1)
    xy = lax.dot_general(x, y, (((1,), (1,)), ((), ())),
                         preferred_element_type=jnp.float32)  # (N, N)
    cs = jnp.maximum(x2 + y2.T - 2.0 * xy, 0.0) * inv_eps     # (N, N)

    # ---- One full log-domain Sinkhorn iteration to initialize potentials ----
    # Scaled potentials: fs = f/eps (N,1), gs = g/eps (1,N); marginals are 1/N.
    def lse_rows(m):                                          # logsumexp, axis=1
        mx = jnp.max(m, axis=1, keepdims=True)
        return mx + jnp.log(jnp.sum(jnp.exp(m - mx), axis=1, keepdims=True))

    def lse_cols(m):                                          # logsumexp, axis=0
        mx = jnp.max(m, axis=0, keepdims=True)
        return mx + jnp.log(jnp.sum(jnp.exp(m - mx), axis=0, keepdims=True))

    fs0 = neg_log_n - lse_rows(-cs)                           # (N, 1)
    gs0 = neg_log_n - lse_cols(fs0 - cs)                      # (1, N)

    # ---- Stabilized scaled-domain Sinkhorn with periodic restabilization ----
    # Each chunk: one N*N exp() to form K (guaranteed <= 1/N, no overflow),
    # then k_inner cheap linear updates  u = (1/N)/(K v),  v = (1/N)/(K^T u)
    # with approx reciprocals, then absorb log(u)/log(v) into fs/gs.
    def cond(state):
        it, err, fs, gs = state
        return jnp.logical_and(it < max_iter, err > tol)

    def body(state):
        it, err, fs, gs = state
        K = jnp.exp(fs + gs - cs)                             # (N, N)

        def inner(_, uv):
            u, v = uv
            kv = jnp.sum(K * v, axis=1, keepdims=True)        # (N, 1)  "K v"
            u = inv_n * pl.reciprocal(jnp.maximum(kv, tiny), approx=True)
            ku = jnp.sum(K * u, axis=0, keepdims=True)        # (1, N)  "K^T u"
            v = inv_n * pl.reciprocal(jnp.maximum(ku, tiny), approx=True)
            return u, v

        u0 = jnp.ones((n, 1), jnp.float32)
        v0 = jnp.ones((1, n), jnp.float32)
        u, v = lax.fori_loop(0, k_inner, inner, (u0, v0), unroll=True)

        # Row-marginal violation of the current plan diag(u) K diag(v).
        kv = jnp.sum(K * v, axis=1, keepdims=True)
        err = jnp.max(jnp.abs(fn * u * kv - 1.0))

        # Absorb the scaling vectors into the stabilized potentials.
        fs = fs + jnp.log(u)
        gs = gs + jnp.log(v)
        return it + k_inner, err, fs, gs

    state0 = (jnp.int32(1), jnp.float32(jnp.inf), fs0, gs0)
    _, _, fs, gs = lax.while_loop(cond, body, state0)

    # ---- Per-point expected matched squared distance ------------------------
    # Row-conditional expectation under the plan, fully stabilized:
    # subtract the row max before exp and normalize by the actual row sum
    # (so residual marginal violation / early exit introduces no bias).
    h = fs + gs - cs                                          # (N, N)
    m = jnp.max(h, axis=1, keepdims=True)
    w = jnp.exp(h - m)
    num = jnp.sum(w * cs, axis=1, keepdims=True)              # (N, 1), eps-scaled
    den = jnp.sum(w, axis=1, keepdims=True)                   # (N, 1)
    dist = feps * num / den                                   # back to cost units
    out_ref[0] = jnp.sqrt(jnp.maximum(dist, 0.0)).T           # lane-dense (1, N)


def earth_mover_distance(pcs1, pcs2, eps=0.005, max_iter=3000):
    """Equivalent of EarthMoverDistance(eps, max_iter)(pcs1, pcs2)."""
    B, N, D = pcs1.shape
    assert pcs2.shape == (B, N, D)

    k_inner = 10        # Sinkhorn iterations per restabilization (per N*N exp)
    tol = 1e-3          # early-exit tolerance on max row-marginal violation

    kernel = functools.partial(
        _emd_kernel, eps=float(eps), max_iter=int(max_iter), n_pts=N,
        k_inner=k_inner, tol=tol)

    # Give the compiler room for the N*N f32 working set (K, cs, temps) while
    # staying within every generation's physical VMEM.
    vmem_limit = int(min(64 * 2**20, max(16 * 2**20, 10 * N * N * 4 + (2 << 20))))

    sqrt_dist = pl.pallas_call(
        kernel,
        out_shape=jax.ShapeDtypeStruct((B, 1, N), jnp.float32),
        grid_spec=pltpu.PrefetchScalarGridSpec(
            num_scalar_prefetch=0,
            grid=(B,),
            in_specs=[
                pl.BlockSpec((1, N, D), lambda b: (b, 0, 0)),
                pl.BlockSpec((1, N, D), lambda b: (b, 0, 0)),
            ],
            out_specs=pl.BlockSpec((1, 1, N), lambda b: (b, 0, 0)),
        ),
        compiler_params=pltpu.CompilerParams(
            dimension_semantics=("parallel",),
            vmem_limit_bytes=vmem_limit),
    )(pcs1, pcs2)

    # torch.sqrt(dist).mean()  -- mean over all B*N per-point values.
    return jnp.mean(sqrt_dist)


if __name__ == "__main__":
    key = jax.random.PRNGKey(0)
    k1, k2 = jax.random.split(key)
    B, N, D = 2, 128, 3  # small point clouds
    pcs1 = jax.random.uniform(k1, (B, N, D), dtype=jnp.float32)
    pcs2 = jax.random.uniform(k2, (B, N, D), dtype=jnp.float32)

    loss = earth_mover_distance(pcs1, pcs2, eps=0.005, max_iter=3000)
    loss = jax.block_until_ready(loss)

    assert loss.shape == (), "expected scalar loss"
    assert bool(jnp.isfinite(loss)), "loss is not finite"
    print("KERNEL_OK")
</pallas_src>

<mosaic_0001>
module attributes {stable_mosaic.version = 11 : i64} {
  func.func @_emd_kernel(%arg0: i32, %arg1: memref<1x128x3xf32, #tpu.memory_space<vmem>>, %arg2: memref<1x128x3xf32, #tpu.memory_space<vmem>>, %arg3: memref<1x1x128xf32, #tpu.memory_space<vmem>>) attributes {dimension_semantics = [#tpu.dimension_semantics<parallel>], iteration_bounds = array<i64: 2>, scalar_prefetch = 0 : i64, scratch_operands = 0 : i64, tpu.core_type = #tpu.core_type<tc>, window_params = [{transform_indices = @transform_0, window_bounds = array<i64: 1, 128, 3>}, {transform_indices = @transform_1, window_bounds = array<i64: 1, 128, 3>}, {transform_indices = @transform_2, window_bounds = array<i64: 1, 1, 128>}]} {
    %c0 = arith.constant 0 : index
    %c0_0 = arith.constant 0 : index
    %c0_1 = arith.constant 0 : index
    %0 = vector.load %arg1[%c0, %c0_0, %c0_1] : memref<1x128x3xf32, #tpu.memory_space<vmem>>, vector<1x128x3xf32>
    %1 = vector.shape_cast %0 : vector<1x128x3xf32> to vector<128x3xf32>
    %c0_2 = arith.constant 0 : index
    %c0_3 = arith.constant 0 : index
    %c0_4 = arith.constant 0 : index
    %2 = vector.load %arg2[%c0_2, %c0_3, %c0_4] : memref<1x128x3xf32, #tpu.memory_space<vmem>>, vector<1x128x3xf32>
    %3 = vector.shape_cast %2 : vector<1x128x3xf32> to vector<128x3xf32>
    %4 = arith.mulf %1, %1 : vector<128x3xf32>
    %cst = arith.constant dense<0.000000e+00> : vector<128xf32>
    %5 = vector.multi_reduction <add>, %4, %cst [1] : vector<128x3xf32> to vector<128xf32>
    %6 = vector.shape_cast %5 : vector<128xf32> to vector<128x1xf32>
    %7 = arith.mulf %3, %3 : vector<128x3xf32>
    %cst_5 = arith.constant dense<0.000000e+00> : vector<128xf32>
    %8 = vector.multi_reduction <add>, %7, %cst_5 [1] : vector<128x3xf32> to vector<128xf32>
    %9 = vector.shape_cast %8 : vector<128xf32> to vector<128x1xf32>
    %cst_6 = arith.constant dense<0.000000e+00> : vector<128x128xf32>
    %10 = tpu.matmul %1, %3, %cst_6 {dimension_numbers = #tpu.dot_dimension_numbers<[1], [1], [0], [0], [0, 0, 1, 0], [], []>} : vector<128x3xf32>, vector<128x3xf32>, vector<128x128xf32> -> vector<128x128xf32>
    %11 = tpu.transpose %9, [1, 0] : vector<128x1xf32> -> vector<1x128xf32>
    %12 = vector.broadcast %6 : vector<128x1xf32> to vector<128x128xf32>
    %13 = vector.broadcast %11 : vector<1x128xf32> to vector<128x128xf32>
    %14 = arith.addf %12, %13 : vector<128x128xf32>
    %cst_7 = arith.constant 2.000000e+00 : f32
    %15 = vector.broadcast %cst_7 : f32 to vector<128x128xf32>
    %16 = arith.mulf %15, %10 : vector<128x128xf32>
    %17 = arith.subf %14, %16 : vector<128x128xf32>
    %cst_8 = arith.constant 0.000000e+00 : f32
    %18 = vector.broadcast %cst_8 : f32 to vector<128x128xf32>
    %19 = arith.maximumf %17, %18 : vector<128x128xf32>
    %cst_9 = arith.constant 2.000000e+02 : f32
    %20 = vector.broadcast %cst_9 : f32 to vector<128x128xf32>
    %21 = arith.mulf %19, %20 : vector<128x128xf32>
    %cst_10 = arith.constant 0.000000e+00 : f32
    %22 = vector.broadcast %cst_10 : f32 to vector<128x128xf32>
    %23 = arith.subf %22, %21 : vector<128x128xf32>
    %cst_11 = arith.constant dense<0xFF800000> : vector<128xf32>
    %24 = vector.multi_reduction <maximumf>, %23, %cst_11 [1] : vector<128x128xf32> to vector<128xf32>
    %25 = vector.shape_cast %24 : vector<128xf32> to vector<128x1xf32>
    %26 = vector.broadcast %25 : vector<128x1xf32> to vector<128x128xf32>
    %27 = arith.subf %23, %26 : vector<128x128xf32>
    %28 = math.exp %27 : vector<128x128xf32>
    %cst_12 = arith.constant dense<0.000000e+00> : vector<128xf32>
    %29 = vector.multi_reduction <add>, %28, %cst_12 [1] : vector<128x128xf32> to vector<128xf32>
    %30 = vector.shape_cast %29 : vector<128xf32> to vector<128x1xf32>
    %31 = math.log %30 : vector<128x1xf32>
    %32 = arith.addf %25, %31 : vector<128x1xf32>
    %cst_13 = arith.constant -4.85203028 : f32
    %33 = vector.broadcast %cst_13 : f32 to vector<128x1xf32>
    %34 = arith.subf %33, %32 : vector<128x1xf32>
    %35 = vector.broadcast %34 : vector<128x1xf32> to vector<128x128xf32>
    %36 = arith.subf %35, %21 : vector<128x128xf32>
    %cst_14 = arith.constant dense<0xFF800000> : vector<128xf32>
    %37 = vector.multi_reduction <maximumf>, %36, %cst_14 [0] : vector<128x128xf32> to vector<128xf32>
    %38 = vector.shape_cast %37 : vector<128xf32> to vector<1x128xf32>
    %39 = vector.broadcast %38 : vector<1x128xf32> to vector<128x128xf32>
    %40 = arith.subf %36, %39 : vector<128x128xf32>
    %41 = math.exp %40 : vector<128x128xf32>
    %cst_15 = arith.constant dense<0.000000e+00> : vector<128xf32>
    %42 = vector.multi_reduction <add>, %41, %cst_15 [0] : vector<128x128xf32> to vector<128xf32>
    %43 = vector.shape_cast %42 : vector<128xf32> to vector<1x128xf32>
    %44 = math.log %43 : vector<1x128xf32>
    %45 = arith.addf %38, %44 : vector<1x128xf32>
    %cst_16 = arith.constant -4.85203028 : f32
    %46 = vector.broadcast %cst_16 : f32 to vector<1x128xf32>
    %47 = arith.subf %46, %45 : vector<1x128xf32>
    %cst_17 = arith.constant 1.000000e-30 : f32
    %cst_18 = arith.constant 7.812500e-03 : f32
    %cst_19 = arith.constant 1.280000e+02 : f32
    %c1_i32 = arith.constant 1 : i32
    %cst_20 = arith.constant 0x7F800000 : f32
    %48:4 = scf.while (%arg4 = %c1_i32, %arg5 = %cst_20, %arg6 = %34, %arg7 = %47) : (i32, f32, vector<128x1xf32>, vector<1x128xf32>) -> (i32, f32, vector<128x1xf32>, vector<1x128xf32>) {
      %c3000_i32 = arith.constant 3000 : i32
      %73 = arith.cmpi slt, %arg4, %c3000_i32 : i32
      %cst_29 = arith.constant 1.000000e-03 : f32
      %74 = arith.cmpf ogt, %arg5, %cst_29 : f32
      %75 = arith.andi %73, %74 : i1
      scf.condition(%75) %arg4, %arg5, %arg6, %arg7 : i32, f32, vector<128x1xf32>, vector<1x128xf32>
    } do {
    ^bb0(%arg4: i32, %arg5: f32, %arg6: vector<128x1xf32>, %arg7: vector<1x128xf32>):
      %73 = vector.broadcast %arg6 : vector<128x1xf32> to vector<128x128xf32>
      %74 = vector.broadcast %arg7 : vector<1x128xf32> to vector<128x128xf32>
      %75 = arith.addf %73, %74 : vector<128x128xf32>
      %76 = arith.subf %75, %21 : vector<128x128xf32>
      %77 = math.exp %76 : vector<128x128xf32>
      %cst_29 = arith.constant 1.000000e+00 : f32
      %78 = vector.broadcast %cst_29 : f32 to vector<128x1xf32>
      %cst_30 = arith.constant 1.000000e+00 : f32
      %79 = vector.broadcast %cst_30 : f32 to vector<1x128xf32>
      %c0_i32 = arith.constant 0 : i32
      %80 = vector.broadcast %79 : vector<1x128xf32> to vector<128x128xf32>
      %81 = arith.mulf %77, %80 : vector<128x128xf32>
      %cst_31 = arith.constant dense<0.000000e+00> : vector<128xf32>
      %82 = vector.multi_reduction <add>, %81, %cst_31 [1] : vector<128x128xf32> to vector<128xf32>
      %83 = vector.shape_cast %82 : vector<128xf32> to vector<128x1xf32>
      %84 = vector.broadcast %cst_17 : f32 to vector<128x1xf32>
      %85 = arith.maximumf %83, %84 : vector<128x1xf32>
      %86 = tpu.reciprocal %85 {approx = true} : vector<128x1xf32> -> vector<128x1xf32>
      %87 = vector.broadcast %cst_18 : f32 to vector<128x1xf32>
      %88 = arith.mulf %87, %86 : vector<128x1xf32>
      %89 = vector.broadcast %88 : vector<128x1xf32> to vector<128x128xf32>
      %90 = arith.mulf %77, %89 : vector<128x128xf32>
      %cst_32 = arith.constant dense<0.000000e+00> : vector<128xf32>
      %91 = vector.multi_reduction <add>, %90, %cst_32 [0] : vector<128x128xf32> to vector<128xf32>
      %92 = vector.shape_cast %91 : vector<128xf32> to vector<1x128xf32>
      %93 = vector.broadcast %cst_17 : f32 to vector<1x128xf32>
      %94 = arith.maximumf %92, %93 : vector<1x128xf32>
      %95 = tpu.reciprocal %94 {approx = true} : vector<1x128xf32> -> vector<1x128xf32>
      %96 = vector.broadcast %cst_18 : f32 to vector<1x128xf32>
      %97 = arith.mulf %96, %95 : vector<1x128xf32>
      %c1_i32_33 = arith.constant 1 : i32
      %98 = vector.broadcast %97 : vector<1x128xf32> to vector<128x128xf32>
      %99 = arith.mulf %77, %98 : vector<128x128xf32>
      %cst_34 = arith.constant dense<0.000000e+00> : vector<128xf32>
      %100 = vector.multi_reduction <add>, %99, %cst_34 [1] : vector<128x128xf32> to vector<128xf32>
      %101 = vector.shape_cast %100 : vector<128xf32> to vector<128x1xf32>
      %102 = vector.broadcast %cst_17 : f32 to vector<128x1xf32>
      %103 = arith.maximumf %101, %102 : vector<128x1xf32>
      %104 = tpu.reciprocal %103 {approx = true} : vector<128x1xf32> -> vector<128x1xf32>
      %105 = vector.broadcast %cst_18 : f32 to vector<128x1xf32>
      %106 = arith.mulf %105, %104 : vector<128x1xf32>
      %107 = vector.broadcast %106 : vector<128x1xf32> to vector<128x128xf32>
      %108 = arith.mulf %77, %107 : vector<128x128xf32>
      %cst_35 = arith.constant dense<0.000000e+00> : vector<128xf32>
      %109 = vector.multi_reduction <add>, %108, %cst_35 [0] : vector<128x128xf32> to vector<128xf32>
      %110 = vector.shape_cast %109 : vector<128xf32> to vector<1x128xf32>
      %111 = vector.broadcast %cst_17 : f32 to vector<1x128xf32>
      %112 = arith.maximumf %110, %111 : vector<1x128xf32>
      %113 = tpu.reciprocal %112 {approx = true} : vector<1x128xf32> -> vector<1x128xf32>
      %114 = vector.broadcast %cst_18 : f32 to vector<1x128xf32>
      %115 = arith.mulf %114, %113 : vector<1x128xf32>
      %c2_i32 = arith.constant 2 : i32
      %116 = vector.broadcast %115 : vector<1x128xf32> to vector<128x128xf32>
      %117 = arith.mulf %77, %116 : vector<128x128xf32>
      %cst_36 = arith.constant dense<0.000000e+00> : vector<128xf32>
      %118 = vector.multi_reduction <add>, %117, %cst_36 [1] : vector<128x128xf32> to vector<128xf32>
      %119 = vector.shape_cast %118 : vector<128xf32> to vector<128x1xf32>
      %120 = vector.broadcast %cst_17 : f32 to vector<128x1xf32>
      %121 = arith.maximumf %119, %120 : vector<128x1xf32>
      %122 = tpu.reciprocal %121 {approx = true} : vector<128x1xf32> -> vector<128x1xf32>
      %123 = vector.broadcast %cst_18 : f32 to vector<128x1xf32>
      %124 = arith.mulf %123, %122 : vector<128x1xf32>
      %125 = vector.broadcast %124 : vector<128x1xf32> to vector<128x128xf32>
      %126 = arith.mulf %77, %125 : vector<128x128xf32>
      %cst_37 = arith.constant dense<0.000000e+00> : vector<128xf32>
      %127 = vector.multi_reduction <add>, %126, %cst_37 [0] : vector<128x128xf32> to vector<128xf32>
      %128 = vector.shape_cast %127 : vector<128xf32> to vector<1x128xf32>
      %129 = vector.broadcast %cst_17 : f32 to vector<1x128xf32>
      %130 = arith.maximumf %128, %129 : vector<1x128xf32>
      %131 = tpu.reciprocal %130 {approx = true} : vector<1x128xf32> -> vector<1x128xf32>
      %132 = vector.broadcast %cst_18 : f32 to vector<1x128xf32>
      %133 = arith.mulf %132, %131 : vector<1x128xf32>
      %c3_i32 = arith.constant 3 : i32
      %134 = vector.broadcast %133 : vector<1x128xf32> to vector<128x128xf32>
      %135 = arith.mulf %77, %134 : vector<128x128xf32>
      %cst_38 = arith.constant dense<0.000000e+00> : vector<128xf32>
      %136 = vector.multi_reduction <add>, %135, %cst_38 [1] : vector<128x128xf32> to vector<128xf32>
      %137 = vector.shape_cast %136 : vector<128xf32> to vector<128x1xf32>
      %138 = vector.broadcast %cst_17 : f32 to vector<128x1xf32>
      %139 = arith.maximumf %137, %138 : vector<128x1xf32>
      %140 = tpu.reciprocal %139 {approx = true} : vector<128x1xf32> -> vector<128x1xf32>
      %141 = vector.broadcast %cst_18 : f32 to vector<128x1xf32>
      %142 = arith.mulf %141, %140 : vector<128x1xf32>
      %143 = vector.broadcast %142 : vector<128x1xf32> to vector<128x128xf32>
      %144 = arith.mulf %77, %143 : vector<128x128xf32>
      %cst_39 = arith.constant dense<0.000000e+00> : vector<128xf32>
      %145 = vector.multi_reduction <add>, %144, %cst_39 [0] : vector<128x128xf32> to vector<128xf32>
      %146 = vector.shape_cast %145 : vector<128xf32> to vector<1x128xf32>
      %147 = vector.broadcast %cst_17 : f32 to vector<1x128xf32>
      %148 = arith.maximumf %146, %147 : vector<1x128xf32>
      %149 = tpu.reciprocal %148 {approx = true} : vector<1x128xf32> -> vector<1x128xf32>
      %150 = vector.broadcast %cst_18 : f32 to vector<1x128xf32>
      %151 = arith.mulf %150, %149 : vector<1x128xf32>
      %c4_i32 = arith.constant 4 : i32
      %152 = vector.broadcast %151 : vector<1x128xf32> to vector<128x128xf32>
      %153 = arith.mulf %77, %152 : vector<128x128xf32>
      %cst_40 = arith.constant dense<0.000000e+00> : vector<128xf32>
      %154 = vector.multi_reduction <add>, %153, %cst_40 [1] : vector<128x128xf32> to vector<128xf32>
      %155 = vector.shape_cast %154 : vector<128xf32> to vector<128x1xf32>
      %156 = vector.broadcast %cst_17 : f32 to vector<128x1xf32>
      %157 = arith.maximumf %155, %156 : vector<128x1xf32>
      %158 = tpu.reciprocal %157 {approx = true} : vector<128x1xf32> -> vector<128x1xf32>
      %159 = vector.broadcast %cst_18 : f32 to vector<128x1xf32>
      %160 = arith.mulf %159, %158 : vector<128x1xf32>
      %161 = vector.broadcast %160 : vector<128x1xf32> to vector<128x128xf32>
      %162 = arith.mulf %77, %161 : vector<128x128xf32>
      %cst_41 = arith.constant dense<0.000000e+00> : vector<128xf32>
      %163 = vector.multi_reduction <add>, %162, %cst_41 [0] : vector<128x128xf32> to vector<128xf32>
      %164 = vector.shape_cast %163 : vector<128xf32> to vector<1x128xf32>
      %165 = vector.broadcast %cst_17 : f32 to vector<1x128xf32>
      %166 = arith.maximumf %164, %165 : vector<1x128xf32>
      %167 = tpu.reciprocal %166 {approx = true} : vector<1x128xf32> -> vector<1x128xf32>
      %168 = vector.broadcast %cst_18 : f32 to vector<1x128xf32>
      %169 = arith.mulf %168, %167 : vector<1x128xf32>
      %c5_i32 = arith.constant 5 : i32
      %170 = vector.broadcast %169 : vector<1x128xf32> to vector<128x128xf32>
      %171 = arith.mulf %77, %170 : vector<128x128xf32>
      %cst_42 = arith.constant dense<0.000000e+00> : vector<128xf32>
      %172 = vector.multi_reduction <add>, %171, %cst_42 [1] : vector<128x128xf32> to vector<128xf32>
      %173 = vector.shape_cast %172 : vector<128xf32> to vector<128x1xf32>
      %174 = vector.broadcast %cst_17 : f32 to vector<128x1xf32>
      %175 = arith.maximumf %173, %174 : vector<128x1xf32>
      %176 = tpu.reciprocal %175 {approx = true} : vector<128x1xf32> -> vector<128x1xf32>
      %177 = vector.broadcast %cst_18 : f32 to vector<128x1xf32>
      %178 = arith.mulf %177, %176 : vector<128x1xf32>
      %179 = vector.broadcast %178 : vector<128x1xf32> to vector<128x128xf32>
      %180 = arith.mulf %77, %179 : vector<128x128xf32>
      %cst_43 = arith.constant dense<0.000000e+00> : vector<128xf32>
      %181 = vector.multi_reduction <add>, %180, %cst_43 [0] : vector<128x128xf32> to vector<128xf32>
      %182 = vector.shape_cast %181 : vector<128xf32> to vector<1x128xf32>
      %183 = vector.broadcast %cst_17 : f32 to vector<1x128xf32>
      %184 = arith.maximumf %182, %183 : vector<1x128xf32>
      %185 = tpu.reciprocal %184 {approx = true} : vector<1x128xf32> -> vector<1x128xf32>
      %186 = vector.broadcast %cst_18 : f32 to vector<1x128xf32>
      %187 = arith.mulf %186, %185 : vector<1x128xf32>
      %c6_i32 = arith.constant 6 : i32
      %188 = vector.broadcast %187 : vector<1x128xf32> to vector<128x128xf32>
      %189 = arith.mulf %77, %188 : vector<128x128xf32>
      %cst_44 = arith.constant dense<0.000000e+00> : vector<128xf32>
      %190 = vector.multi_reduction <add>, %189, %cst_44 [1] : vector<128x128xf32> to vector<128xf32>
      %191 = vector.shape_cast %190 : vector<128xf32> to vector<128x1xf32>
      %192 = vector.broadcast %cst_17 : f32 to vector<128x1xf32>
      %193 = arith.maximumf %191, %192 : vector<128x1xf32>
      %194 = tpu.reciprocal %193 {approx = true} : vector<128x1xf32> -> vector<128x1xf32>
      %195 = vector.broadcast %cst_18 : f32 to vector<128x1xf32>
      %196 = arith.mulf %195, %194 : vector<128x1xf32>
      %197 = vector.broadcast %196 : vector<128x1xf32> to vector<128x128xf32>
      %198 = arith.mulf %77, %197 : vector<128x128xf32>
      %cst_45 = arith.constant dense<0.000000e+00> : vector<128xf32>
      %199 = vector.multi_reduction <add>, %198, %cst_45 [0] : vector<128x128xf32> to vector<128xf32>
      %200 = vector.shape_cast %199 : vector<128xf32> to vector<1x128xf32>
      %201 = vector.broadcast %cst_17 : f32 to vector<1x128xf32>
      %202 = arith.maximumf %200, %201 : vector<1x128xf32>
      %203 = tpu.reciprocal %202 {approx = true} : vector<1x128xf32> -> vector<1x128xf32>
      %204 = vector.broadcast %cst_18 : f32 to vector<1x128xf32>
      %205 = arith.mulf %204, %203 : vector<1x128xf32>
      %c7_i32 = arith.constant 7 : i32
      %206 = vector.broadcast %205 : vector<1x128xf32> to vector<128x128xf32>
      %207 = arith.mulf %77, %206 : vector<128x128xf32>
      %cst_46 = arith.constant dense<0.000000e+00> : vector<128xf32>
      %208 = vector.multi_reduction <add>, %207, %cst_46 [1] : vector<128x128xf32> to vector<128xf32>
      %209 = vector.shape_cast %208 : vector<128xf32> to vector<128x1xf32>
      %210 = vector.broadcast %cst_17 : f32 to vector<128x1xf32>
      %211 = arith.maximumf %209, %210 : vector<128x1xf32>
      %212 = tpu.reciprocal %211 {approx = true} : vector<128x1xf32> -> vector<128x1xf32>
      %213 = vector.broadcast %cst_18 : f32 to vector<128x1xf32>
      %214 = arith.mulf %213, %212 : vector<128x1xf32>
      %215 = vector.broadcast %214 : vector<128x1xf32> to vector<128x128xf32>
      %216 = arith.mulf %77, %215 : vector<128x128xf32>
      %cst_47 = arith.constant dense<0.000000e+00> : vector<128xf32>
      %217 = vector.multi_reduction <add>, %216, %cst_47 [0] : vector<128x128xf32> to vector<128xf32>
      %218 = vector.shape_cast %217 : vector<128xf32> to vector<1x128xf32>
      %219 = vector.broadcast %cst_17 : f32 to vector<1x128xf32>
      %220 = arith.maximumf %218, %219 : vector<1x128xf32>
      %221 = tpu.reciprocal %220 {approx = true} : vector<1x128xf32> -> vector<1x128xf32>
      %222 = vector.broadcast %cst_18 : f32 to vector<1x128xf32>
      %223 = arith.mulf %222, %221 : vector<1x128xf32>
      %c8_i32 = arith.constant 8 : i32
      %224 = vector.broadcast %223 : vector<1x128xf32> to vector<128x128xf32>
      %225 = arith.mulf %77, %224 : vector<128x128xf32>
      %cst_48 = arith.constant dense<0.000000e+00> : vector<128xf32>
      %226 = vector.multi_reduction <add>, %225, %cst_48 [1] : vector<128x128xf32> to vector<128xf32>
      %227 = vector.shape_cast %226 : vector<128xf32> to vector<128x1xf32>
      %228 = vector.broadcast %cst_17 : f32 to vector<128x1xf32>
      %229 = arith.maximumf %227, %228 : vector<128x1xf32>
      %230 = tpu.reciprocal %229 {approx = true} : vector<128x1xf32> -> vector<128x1xf32>
      %231 = vector.broadcast %cst_18 : f32 to vector<128x1xf32>
      %232 = arith.mulf %231, %230 : vector<128x1xf32>
      %233 = vector.broadcast %232 : vector<128x1xf32> to vector<128x128xf32>
      %234 = arith.mulf %77, %233 : vector<128x128xf32>
      %cst_49 = arith.constant dense<0.000000e+00> : vector<128xf32>
      %235 = vector.multi_reduction <add>, %234, %cst_49 [0] : vector<128x128xf32> to vector<128xf32>
      %236 = vector.shape_cast %235 : vector<128xf32> to vector<1x128xf32>
      %237 = vector.broadcast %cst_17 : f32 to vector<1x128xf32>
      %238 = arith.maximumf %236, %237 : vector<1x128xf32>
      %239 = tpu.reciprocal %238 {approx = true} : vector<1x128xf32> -> vector<1x128xf32>
      %240 = vector.broadcast %cst_18 : f32 to vector<1x128xf32>
      %241 = arith.mulf %240, %239 : vector<1x128xf32>
      %c9_i32 = arith.constant 9 : i32
      %242 = vector.broadcast %241 : vector<1x128xf32> to vector<128x128xf32>
      %243 = arith.mulf %77, %242 : vector<128x128xf32>
      %cst_50 = arith.constant dense<0.000000e+00> : vector<128xf32>
      %244 = vector.multi_reduction <add>, %243, %cst_50 [1] : vector<128x128xf32> to vector<128xf32>
      %245 = vector.shape_cast %244 : vector<128xf32> to vector<128x1xf32>
      %246 = vector.broadcast %cst_17 : f32 to vector<128x1xf32>
      %247 = arith.maximumf %245, %246 : vector<128x1xf32>
      %248 = tpu.reciprocal %247 {approx = true} : vector<128x1xf32> -> vector<128x1xf32>
      %249 = vector.broadcast %cst_18 : f32 to vector<128x1xf32>
      %250 = arith.mulf %249, %248 : vector<128x1xf32>
      %251 = vector.broadcast %250 : vector<128x1xf32> to vector<128x128xf32>
      %252 = arith.mulf %77, %251 : vector<128x128xf32>
      %cst_51 = arith.constant dense<0.000000e+00> : vector<128xf32>
      %253 = vector.multi_reduction <add>, %252, %cst_51 [0] : vector<128x128xf32> to vector<128xf32>
      %254 = vector.shape_cast %253 : vector<128xf32> to vector<1x128xf32>
      %255 = vector.broadcast %cst_17 : f32 to vector<1x128xf32>
      %256 = arith.maximumf %254, %255 : vector<1x128xf32>
      %257 = tpu.reciprocal %256 {approx = true} : vector<1x128xf32> -> vector<1x128xf32>
      %258 = vector.broadcast %cst_18 : f32 to vector<1x128xf32>
      %259 = arith.mulf %258, %257 : vector<1x128xf32>
      %c10_i32 = arith.constant 10 : i32
      %260 = vector.broadcast %259 : vector<1x128xf32> to vector<128x128xf32>
      %261 = arith.mulf %77, %260 : vector<128x128xf32>
      %cst_52 = arith.constant dense<0.000000e+00> : vector<128xf32>
      %262 = vector.multi_reduction <add>, %261, %cst_52 [1] : vector<128x128xf32> to vector<128xf32>
      %263 = vector.shape_cast %262 : vector<128xf32> to vector<128x1xf32>
      %264 = vector.broadcast %cst_19 : f32 to vector<128x1xf32>
      %265 = arith.mulf %264, %250 : vector<128x1xf32>
      %266 = arith.mulf %265, %263 : vector<128x1xf32>
      %cst_53 = arith.constant 1.000000e+00 : f32
      %267 = vector.broadcast %cst_53 : f32 to vector<128x1xf32>
      %268 = arith.subf %266, %267 : vector<128x1xf32>
      %269 = math.absf %268 : vector<128x1xf32>
      %270 = vector.shape_cast %269 : vector<128x1xf32> to vector<1x128x1xf32>
      %cst_54 = arith.constant dense<0xFF800000> : vector<1xf32>
      %271 = vector.multi_reduction <maximumf>, %270, %cst_54 [1, 2] : vector<1x128x1xf32> to vector<1xf32>
      %272 = vector.shape_cast %271 : vector<1xf32> to vector<1x1x1xf32>
      %273 = vector.extract %272[0, 0, 0] : f32 from vector<1x1x1xf32>
      %274 = math.log %250 : vector<128x1xf32>
      %275 = arith.addf %arg6, %274 : vector<128x1xf32>
      %276 = math.log %259 : vector<1x128xf32>
      %277 = arith.addf %arg7, %276 : vector<1x128xf32>
      %c10_i32_55 = arith.constant 10 : i32
      %278 = arith.addi %arg4, %c10_i32_55 : i32
      scf.yield %278, %273, %275, %277 : i32, f32, vector<128x1xf32>, vector<1x128xf32>
    }
    %49 = vector.broadcast %48#2 : vector<128x1xf32> to vector<128x128xf32>
    %50 = vector.broadcast %48#3 : vector<1x128xf32> to vector<128x128xf32>
    %51 = arith.addf %49, %50 : vector<128x128xf32>
    %52 = arith.subf %51, %21 : vector<128x128xf32>
    %cst_21 = arith.constant dense<0xFF800000> : vector<128xf32>
    %53 = vector.multi_reduction <maximumf>, %52, %cst_21 [1] : vector<128x128xf32> to vector<128xf32>
    %54 = vector.shape_cast %53 : vector<128xf32> to vector<128x1xf32>
    %55 = vector.broadcast %54 : vector<128x1xf32> to vector<128x128xf32>
    %56 = arith.subf %52, %55 : vector<128x128xf32>
    %57 = math.exp %56 : vector<128x128xf32>
    %58 = arith.mulf %57, %21 : vector<128x128xf32>
    %cst_22 = arith.constant dense<0.000000e+00> : vector<128xf32>
    %59 = vector.multi_reduction <add>, %58, %cst_22 [1] : vector<128x128xf32> to vector<128xf32>
    %60 = vector.shape_cast %59 : vector<128xf32> to vector<128x1xf32>
    %cst_23 = arith.constant dense<0.000000e+00> : vector<128xf32>
    %61 = vector.multi_reduction <add>, %57, %cst_23 [1] : vector<128x128xf32> to vector<128xf32>
    %62 = vector.shape_cast %61 : vector<128xf32> to vector<128x1xf32>
    %cst_24 = arith.constant 5.000000e-03 : f32
    %63 = vector.broadcast %cst_24 : f32 to vector<128x1xf32>
    %64 = arith.mulf %63, %60 : vector<128x1xf32>
    %65 = arith.divf %64, %62 : vector<128x1xf32>
    %cst_25 = arith.constant 0.000000e+00 : f32
    %66 = vector.broadcast %cst_25 : f32 to vector<128x1xf32>
    %67 = arith.maximumf %65, %66 : vector<128x1xf32>
    %68 = math.sqrt %67 : vector<128x1xf32>
    %69 = tpu.transpose %68, [1, 0] : vector<128x1xf32> -> vector<1x128xf32>
    %c0_26 = arith.constant 0 : index
    %c0_27 = arith.constant 0 : index
    %c0_28 = arith.constant 0 : index
    %70 = vector.load %arg3[%c0_26, %c0_27, %c0_28] : memref<1x1x128xf32, #tpu.memory_space<vmem>>, vector<1x1x128xf32>
    %71 = vector.shape_cast %70 : vector<1x1x128xf32> to vector<1x128xf32>
    %72 = vector.shape_cast %69 : vector<1x128xf32> to vector<1x1x128xf32>
    tpu.vector_store %arg3[%c0_26, %c0_27, %c0_28], %72 {strides = array<i32>} : memref<1x1x128xf32, #tpu.memory_space<vmem>>, vector<1x1x128xf32>,
    return
  }
  func.func @transform_0(%arg0: i32) -> (i32, i32, i32) {
    %c0_i32 = arith.constant 0 : i32
    %c0_i32_0 = arith.constant 0 : i32
    %c0_i32_1 = arith.constant 0 : i32
    return %arg0, %c0_i32, %c0_i32_0 : i32, i32, i32
  }
  func.func @transform_1(%arg0: i32) -> (i32, i32, i32) {
    %c0_i32 = arith.constant 0 : i32
    %c0_i32_0 = arith.constant 0 : i32
    %c0_i32_1 = arith.constant 0 : i32
    return %arg0, %c0_i32, %c0_i32_0 : i32, i32, i32
  }
  func.func @transform_2(%arg0: i32) -> (i32, i32, i32) {
    %c0_i32 = arith.constant 0 : i32
    %c0_i32_0 = arith.constant 0 : i32
    %c0_i32_1 = arith.constant 0 : i32
    return %arg0, %c0_i32, %c0_i32_0 : i32, i32, i32
  }
}

</mosaic_0001>

<llo_original>
// kernel: tpu_custom_call.1
$region0: #{tpu_custom_call.1}
  #allocation0 [shape = 'u32[]', space=smem, size = 0x4, offset = 0x4, fixed_abs, tag = 'smem constant byte address 0x4 - core index']
  #allocation1 [shape = 'u32[144,128]{1,0:T(1,128)}', space=vmem, size = 0x12000, scoped, tag = 'internal scratch']
  %s0 = inlined_call_operand.vmem [shape: f32[2,128,3], index: 0, kind: input, shape index: {}]
  %s1 = inlined_call_operand.vmem [shape: f32[2,128,3], index: 1, kind: input, shape index: {}]
  %s2 = inlined_call_operand.hbm [shape: f32[2,1,128], index: 2, kind: output, shape index: {}]
  %s3 = sld [smem:[#allocation0]]
  $region48: #{tpu_custom_call.1} parent=0
    _
  %s5 = ssub.s32 1, %s3
  %s6 = scalar_select 0, %s5, %s3
  $region1: #{tpu_custom_call.1} parent=0
    #allocation2 [shape = 'u8[1024]{0}', space=vmem, size = 0x400, scoped, tag = 'output window, operand 0']
    #allocation3 [shape = 's32[2]{0}', space=sflag, size = 0x8, scoped, tag = 'scoped memory for tpu_custom_call.1']
    %7 = vsyncpa [#allocation3], 0
    %s8 = scalar_lea.sflag [#allocation3], 1
    %9 = vsyncpa %s8, 0
    loop: start=0, step=1, limit=4
    $region2: #{tpu_custom_call.1} parent=1 // loop_pre_header
      _
    $region3: #{tpu_custom_call.1} parent=1 // loop_header
      %s11 = sphi 0, %s15
      %p12 = scmp.ge.s32.totalorder %s11, 4
      %s21 = sphi 0, %s23
      %s24 = sphi 0, %s21
      %s25 = sphi 0, %s24
      %s41 = sphi 0, %s25
      %s47 = sphi 0, %s49
      %s50 = sphi 0, %s47
      %s51 = sphi 0, %s50
      %s67 = sphi 0, %s51
      %s73 = sphi 0, %s75
      %s76 = sphi 0, %s73
      %s77 = sphi 0, %s76
      %s93 = sphi 0, %s77
    $region4: #{tpu_custom_call.1} parent=1 // loop_header_branch
      %14 = sbr.rel (%p12) target = $region8
    $region5: #{tpu_custom_call.1} parent=1 // loop_body
      %s16 = ssub.s32 %s11, 1
      %s17 = ssub.s32 %s11, 2
      %s18 = sadd.s32 %s11, 1
      %s19 = ssub.s32 %s11, %s18
      %p20 = scmp.eq.s32.totalorder %s19, 0
      %s22 = sadd.s32 %s21, 1
      %s23 = scalar_select %p20, %s21, %s22
      %p26 = pneg %p20
      %p27 = scmp.eq.s32.totalorder %s11, 1
      %p28 = por %p26, %p27
      %p29 = scmp.ne.s32.totalorder %s21, %s24
      %p30 = scmp.eq.s32.totalorder %s11, 0
      %p31 = por %p29, %p30
      %p32 = scmp.ne.s32.totalorder %s21, %s24
      %p33 = scmp.eq.s32.totalorder %s16, 1
      %p34 = por %p32, %p33
      %p35 = scmp.ne.s32.totalorder %s24, %s25
      %p36 = scmp.eq.s32.totalorder %s16, 0
      %p37 = por %p35, %p36
      %p38 = scmp.ne.s32.totalorder %s24, %s25
      %p39 = scmp.eq.s32.totalorder %s17, 1
      %p40 = por %p38, %p39
      %p42 = scmp.ne.s32.totalorder %s25, %s41
      %p43 = scmp.eq.s32.totalorder %s17, 0
      %p44 = por %p42, %p43
      %s45 = ssub.s32 %s11, %s18
      %p46 = scmp.eq.s32.totalorder %s45, 0
      %s48 = sadd.s32 %s47, 1
      %s49 = scalar_select %p46, %s47, %s48
      %p52 = pneg %p46
      %p53 = scmp.eq.s32.totalorder %s11, 1
      %p54 = por %p52, %p53
      %p55 = scmp.ne.s32.totalorder %s47, %s50
      %p56 = scmp.eq.s32.totalorder %s11, 0
      %p57 = por %p55, %p56
      %p58 = scmp.ne.s32.totalorder %s47, %s50
      %p59 = scmp.eq.s32.totalorder %s16, 1
      %p60 = por %p58, %p59
      %p61 = scmp.ne.s32.totalorder %s50, %s51
      %p62 = scmp.eq.s32.totalorder %s16, 0
      %p63 = por %p61, %p62
      %p64 = scmp.ne.s32.totalorder %s50, %s51
      %p65 = scmp.eq.s32.totalorder %s17, 1
      %p66 = por %p64, %p65
      %p68 = scmp.ne.s32.totalorder %s51, %s67
      %p69 = scmp.eq.s32.totalorder %s17, 0
      %p70 = por %p68, %p69
      %s71 = ssub.s32 %s11, %s18
      %p72 = scmp.eq.s32.totalorder %s71, 0
      %s74 = sadd.s32 %s73, 1
      %s75 = scalar_select %p72, %s73, %s74
      %p78 = pneg %p72
      %p79 = scmp.eq.s32.totalorder %s11, 1
      %p80 = por %p78, %p79
      %p81 = scmp.ne.s32.totalorder %s73, %s76
      %p82 = scmp.eq.s32.totalorder %s11, 0
      %p83 = por %p81, %p82
      %p84 = scmp.ne.s32.totalorder %s73, %s76
      %p85 = scmp.eq.s32.totalorder %s16, 1
      %p86 = por %p84, %p85
      %p87 = scmp.ne.s32.totalorder %s76, %s77
      %p88 = scmp.eq.s32.totalorder %s16, 0
      %p89 = por %p87, %p88
      %p90 = scmp.ne.s32.totalorder %s76, %s77
      %p91 = scmp.eq.s32.totalorder %s17, 1
      %p92 = por %p90, %p91
      %p94 = scmp.ne.s32.totalorder %s77, %s93
      %p95 = scmp.eq.s32.totalorder %s17, 0
      %p96 = por %p94, %p95
      %p97 = scmp.le.s32.totalorder 1, %s11
      %p98 = scmp.lt.s32.totalorder %s11, 3
      %p99 = pnand %p97, %p98
      %p100 = pneg %p99
      // Predicated region
      $region9: #{tpu_custom_call.1} parent=5 // pred_check
        _
      $region10: #{tpu_custom_call.1} parent=5 // pred_check_branch
        %102 = sbr.rel (%p99) target = $region12
      $region11: #{tpu_custom_call.1} parent=5 // pred_region
        %s103 = ssub.s32 %s11, 1
      $region12: #{tpu_custom_call.1} parent=5 // pred_fallthru
        _
      %p104 = scmp.lt.s32.totalorder %s11, 2
      // Predicated region
      $region13: #{tpu_custom_call.1} parent=5 // pred_check
        %p105 = pneg %p104
      $region14: #{tpu_custom_call.1} parent=5 // pred_check_branch
        %107 = sbr.rel (%p105) target = $region16
      $region15: #{tpu_custom_call.1} parent=5 // pred_region
        // Predicated region
        $region17: #{tpu_custom_call.1} parent=15 // pred_check
          %p108 = pneg %p31
        $region18: #{tpu_custom_call.1} parent=15 // pred_check_branch
          %110 = sbr.rel (%p108) target = $region20
        $region19: #{tpu_custom_call.1} parent=15 // pred_region
          %p111 = scmp.lt.s32.totalorder %s11, 1
          %s112 = scalar_select %p111, %s11, 1
          %s113 = smul.addr %s112, 16
          %s114 = smul.addr %s113, 8
          %s115 = scalar_lea.vmem %s0, %s114
        $region20: #{tpu_custom_call.1} parent=15 // pred_fallthru
          _
        // Predicated region
        $region21: #{tpu_custom_call.1} parent=15 // pred_check
          %p116 = pneg %p57
        $region22: #{tpu_custom_call.1} parent=15 // pred_check_branch
          %118 = sbr.rel (%p116) target = $region24
        $region23: #{tpu_custom_call.1} parent=15 // pred_region
          %p119 = scmp.lt.s32.totalorder %s11, 1
          %s120 = scalar_select %p119, %s11, 1
          %s121 = smul.addr %s120, 16
          %s122 = smul.addr %s121, 8
          %s123 = scalar_lea.vmem %s1, %s122
        $region24: #{tpu_custom_call.1} parent=15 // pred_fallthru
          _
      $region16: #{tpu_custom_call.1} parent=5 // pred_fallthru
        _
      %p124 = scmp.le.s32.totalorder 1, %s11
      %p125 = scmp.lt.s32.totalorder %s11, 3
      %p126 = pnand %p124, %p125
      %p127 = pneg %p126
      // Predicated region
      $region25: #{tpu_custom_call.1} parent=5 // pred_check
        _
      $region26: #{tpu_custom_call.1} parent=5 // pred_check_branch
        %129 = sbr.rel (%p126) target = $region28
      $region27: #{tpu_custom_call.1} parent=5 // pred_region
        %s130 = ssub.s32 %s11, 1
        %p131 = scmp.lt.s32.totalorder %s16, 1
        %s132 = scalar_select %p131, %s16, 1
        %s133 = smul.addr %s132, 16
        %s134 = smul.addr %s133, 8
        %s135 = scalar_lea.vmem %s0, %s134
        %p136 = pneg %p37
        %p137 = pneg %p34
        %p138 = scmp.lt.s32.totalorder %s16, 1
        %s139 = scalar_select %p138, %s16, 1
        %s140 = smul.addr %s139, 16
        %s141 = smul.addr %s140, 8
        %s142 = scalar_lea.vmem %s1, %s141
        %p143 = pneg %p63
        %p144 = pneg %p60
        %p145 = pneg %p89
        %p146 = pneg %p86
        %s147 = sand.u32 %s76, 1
        %s148 = scalar_lea.sflag [#allocation3], %s147
        %s149 = sand.u32 %s76, 1
        %s150 = scalar_lea.vmem [#allocation2], %s149
        %p151 = scmp.lt.s32.totalorder %s16, 1
        %s152 = scalar_select %p151, %s16, 1
        %s153 = smul.addr %s152, 16
        %s154 = smul.addr %s153, 8
        %s155 = scalar_lea.vmem %s0, %s154
        %p156 = scmp.lt.s32.totalorder %s16, 1
        %s157 = scalar_select %p156, %s16, 1
        %s158 = smul.addr %s157, 16
        %s159 = smul.addr %s158, 8
        %s160 = scalar_lea.vmem %s1, %s159
        %v161 = vld [vmem:[%s155] sm:$0xff]
        %v162 = vld [vmem:[%s155 + $0x8] sm:$0xff]
        %v163 = vld [vmem:[%s155 + $0x10] sm:$0xff]
        %v164 = vld [vmem:[%s155 + $0x18] sm:$0xff]
        %v165 = vld [vmem:[%s155 + $0x20] sm:$0xff]
        %v166 = vld [vmem:[%s155 + $0x28] sm:$0xff]
        %v167 = vld [vmem:[%s155 + $0x30] sm:$0xff]
        %v168 = vld [vmem:[%s155 + $0x38] sm:$0xff]
        %v169 = vld [vmem:[%s155 + $0x40] sm:$0xff]
        %v170 = vld [vmem:[%s155 + $0x48] sm:$0xff]
        %v171 = vld [vmem:[%s155 + $0x50] sm:$0xff]
        %v172 = vld [vmem:[%s155 + $0x58] sm:$0xff]
        %v173 = vld [vmem:[%s155 + $0x60] sm:$0xff]
        %v174 = vld [vmem:[%s155 + $0x68] sm:$0xff]
        %v175 = vld [vmem:[%s155 + $0x70] sm:$0xff]
        %v176 = vld [vmem:[%s155 + $0x78] sm:$0xff]
        %v177 = vld [vmem:[%s160] sm:$0xff]
        %v178 = vld [vmem:[%s160 + $0x8] sm:$0xff]
        %v179 = vld [vmem:[%s160 + $0x10] sm:$0xff]
        %v180 = vld [vmem:[%s160 + $0x18] sm:$0xff]
        %v181 = vld [vmem:[%s160 + $0x20] sm:$0xff]
        %v182 = vld [vmem:[%s160 + $0x28] sm:$0xff]
        %v183 = vld [vmem:[%s160 + $0x30] sm:$0xff]
        %v184 = vld [vmem:[%s160 + $0x38] sm:$0xff]
        %v185 = vld [vmem:[%s160 + $0x40] sm:$0xff]
        %v186 = vld [vmem:[%s160 + $0x48] sm:$0xff]
        %v187 = vld [vmem:[%s160 + $0x50] sm:$0xff]
        %v188 = vld [vmem:[%s160 + $0x58] sm:$0xff]
        %v189 = vld [vmem:[%s160 + $0x60] sm:$0xff]
        %v190 = vld [vmem:[%s160 + $0x68] sm:$0xff]
        %v191 = vld [vmem:[%s160 + $0x70] sm:$0xff]
        %v192 = vld [vmem:[%s160 + $0x78] sm:$0xff]
        %v193 = vmul.f32 %v161, %v161
        %v194 = vmul.f32 %v162, %v162
        %v195 = vmul.f32 %v163, %v163
        %v196 = vmul.f32 %v164, %v164
        %v197 = vmul.f32 %v165, %v165
        %v198 = vmul.f32 %v166, %v166
        %v199 = vmul.f32 %v167, %v167
        %v200 = vmul.f32 %v168, %v168
        %v201 = vmul.f32 %v169, %v169
        %v202 = vmul.f32 %v170, %v170
        %v203 = vmul.f32 %v171, %v171
        %v204 = vmul.f32 %v172, %v172
        %v205 = vmul.f32 %v173, %v173
        %v206 = vmul.f32 %v174, %v174
        %v207 = vmul.f32 %v175, %v175
        %v208 = vmul.f32 %v176, %v176
        %vm209 = vcmask 23552
        %v210 = vsel %vm209, %v193, 0.0
        %211 = vadd.xlane.f32.xlu0 %v210
        %v212 = vpop.xlane.xlu0 %211
        %v213 = vsel %vm209, %v194, 0.0
        %214 = vadd.xlane.f32.xlu0 %v213
        %v215 = vpop.xlane.xlu0 %214
        %v216 = vsel %vm209, %v195, 0.0
        %217 = vadd.xlane.f32.xlu0 %v216
        %v218 = vpop.xlane.xlu0 %217
        %v219 = vsel %vm209, %v196, 0.0
        %220 = vadd.xlane.f32.xlu0 %v219
        %v221 = vpop.xlane.xlu0 %220
        %v222 = vsel %vm209, %v197, 0.0
        %223 = vadd.xlane.f32.xlu0 %v222
        %v224 = vpop.xlane.xlu0 %223
        %v225 = vsel %vm209, %v198, 0.0
        %226 = vadd.xlane.f32.xlu0 %v225
        %v227 = vpop.xlane.xlu0 %226
        %v228 = vsel %vm209, %v199, 0.0
        %229 = vadd.xlane.f32.xlu0 %v228
        %v230 = vpop.xlane.xlu0 %229
        %v231 = vsel %vm209, %v200, 0.0
        %232 = vadd.xlane.f32.xlu0 %v231
        %v233 = vpop.xlane.xlu0 %232
        %v234 = vsel %vm209, %v201, 0.0
        %235 = vadd.xlane.f32.xlu0 %v234
        %v236 = vpop.xlane.xlu0 %235
        %v237 = vsel %vm209, %v202, 0.0
        %238 = vadd.xlane.f32.xlu0 %v237
        %v239 = vpop.xlane.xlu0 %238
        %v240 = vsel %vm209, %v203, 0.0
        %241 = vadd.xlane.f32.xlu0 %v240
        %v242 = vpop.xlane.xlu0 %241
        %v243 = vsel %vm209, %v204, 0.0
        %244 = vadd.xlane.f32.xlu0 %v243
        %v245 = vpop.xlane.xlu0 %244
        %v246 = vsel %vm209, %v205, 0.0
        %247 = vadd.xlane.f32.xlu0 %v246
        %v248 = vpop.xlane.xlu0 %247
        %v249 = vsel %vm209, %v206, 0.0
        %250 = vadd.xlane.f32.xlu0 %v249
        %v251 = vpop.xlane.xlu0 %250
        %v252 = vsel %vm209, %v207, 0.0
        %253 = vadd.xlane.f32.xlu0 %v252
        %v254 = vpop.xlane.xlu0 %253
        %v255 = vsel %vm209, %v208, 0.0
        %256 = vadd.xlane.f32.xlu0 %v255
        %v257 = vpop.xlane.xlu0 %256
        %v258 = vmul.f32 %v177, %v177
        %v259 = vmul.f32 %v178, %v178
        %v260 = vmul.f32 %v179, %v179
        %v261 = vmul.f32 %v180, %v180
        %v262 = vmul.f32 %v181, %v181
        %v263 = vmul.f32 %v182, %v182
        %v264 = vmul.f32 %v183, %v183
        %v265 = vmul.f32 %v184, %v184
        %v266 = vmul.f32 %v185, %v185
        %v267 = vmul.f32 %v186, %v186
        %v268 = vmul.f32 %v187, %v187
        %v269 = vmul.f32 %v188, %v188
        %v270 = vmul.f32 %v189, %v189
        %v271 = vmul.f32 %v190, %v190
        %v272 = vmul.f32 %v191, %v191
        %v273 = vmul.f32 %v192, %v192
        %v274 = vsel %vm209, %v258, 0.0
        %275 = vadd.xlane.f32.xlu0 %v274
        %v276 = vpop.xlane.xlu0 %275
        %v277 = vsel %vm209, %v259, 0.0
        %278 = vadd.xlane.f32.xlu0 %v277
        %v279 = vpop.xlane.xlu0 %278
        %v280 = vsel %vm209, %v260, 0.0
        %281 = vadd.xlane.f32.xlu0 %v280
        %v282 = vpop.xlane.xlu0 %281
        %v283 = vsel %vm209, %v261, 0.0
        %284 = vadd.xlane.f32.xlu0 %v283
        %v285 = vpop.xlane.xlu0 %284
        %v286 = vsel %vm209, %v262, 0.0
        %287 = vadd.xlane.f32.xlu0 %v286
        %v288 = vpop.xlane.xlu0 %287
        %v289 = vsel %vm209, %v263, 0.0
        %290 = vadd.xlane.f32.xlu0 %v289
        %v291 = vpop.xlane.xlu0 %290
        %v292 = vsel %vm209, %v264, 0.0
        %293 = vadd.xlane.f32.xlu0 %v292
        %v294 = vpop.xlane.xlu0 %293
        %v295 = vsel %vm209, %v265, 0.0
        %296 = vadd.xlane.f32.xlu0 %v295
        %v297 = vpop.xlane.xlu0 %296
        %v298 = vsel %vm209, %v266, 0.0
        %299 = vadd.xlane.f32.xlu0 %v298
        %v300 = vpop.xlane.xlu0 %299
        %v301 = vsel %vm209, %v267, 0.0
        %302 = vadd.xlane.f32.xlu0 %v301
        %v303 = vpop.xlane.xlu0 %302
        %v304 = vsel %vm209, %v268, 0.0
        %305 = vadd.xlane.f32.xlu0 %v304
        %v306 = vpop.xlane.xlu0 %305
        %v307 = vsel %vm209, %v269, 0.0
        %308 = vadd.xlane.f32.xlu0 %v307
        %v309 = vpop.xlane.xlu0 %308
        %v310 = vsel %vm209, %v270, 0.0
        %311 = vadd.xlane.f32.xlu0 %v310
        %v312 = vpop.xlane.xlu0 %311
        %v313 = vsel %vm209, %v271, 0.0
        %314 = vadd.xlane.f32.xlu0 %v313
        %v315 = vpop.xlane.xlu0 %314
        %v316 = vsel %vm209, %v272, 0.0
        %317 = vadd.xlane.f32.xlu0 %v316
        %v318 = vpop.xlane.xlu0 %317
        %v319 = vsel %vm209, %v273, 0.0
        %320 = vadd.xlane.f32.xlu0 %v319
        %v321 = vpop.xlane.xlu0 %320
        %v323 = vsel %vm209, %v161, 0
        %v326 = vsel %vm209, %v162, 0
        %v329 = vsel %vm209, %v163, 0
        %v332 = vsel %vm209, %v164, 0
        %v335 = vsel %vm209, %v165, 0
        %v338 = vsel %vm209, %v166, 0
        %v341 = vsel %vm209, %v167, 0
        %v344 = vsel %vm209, %v168, 0
        %v347 = vsel %vm209, %v169, 0
        %v350 = vsel %vm209, %v170, 0
        %v353 = vsel %vm209, %v171, 0
        %v356 = vsel %vm209, %v172, 0
        %v359 = vsel %vm209, %v173, 0
        %v362 = vsel %vm209, %v174, 0
        %v365 = vsel %vm209, %v175, 0
        %v368 = vsel %vm209, %v176, 0
        %v371 = vsel %vm209, %v177, 0
        %v374 = vsel %vm209, %v178, 0
        %v377 = vsel %vm209, %v179, 0
        %v380 = vsel %vm209, %v180, 0
        %v383 = vsel %vm209, %v181, 0
        %v386 = vsel %vm209, %v182, 0
        %v389 = vsel %vm209, %v183, 0
        %v392 = vsel %vm209, %v184, 0
        %v395 = vsel %vm209, %v185, 0
        %v398 = vsel %vm209, %v186, 0
        %v401 = vsel %vm209, %v187, 0
        %v404 = vsel %vm209, %v188, 0
        %v407 = vsel %vm209, %v189, 0
        %v410 = vsel %vm209, %v190, 0
        %v413 = vsel %vm209, %v191, 0
        %v416 = vsel %vm209, %v192, 0
        %418 = vmatprep.subr.mxu0 0.0
        %419 = vmatpush1.xpose.msra.mxu0 %v371
        %420 = vmatprep.subr.mxu0 0.0
        %421 = vmatpush1.xpose.msra.mxu0 %v374
        %422 = vmatprep.subr.mxu0 0.0
        %423 = vmatpush1.xpose.msra.mxu0 %v377
        %424 = vmatprep.subr.mxu0 0.0
        %425 = vmatpush1.xpose.msra.mxu0 %v380
        %426 = vmatprep.subr.mxu0 0.0
        %427 = vmatpush1.xpose.msra.mxu0 %v383
        %428 = vmatprep.subr.mxu0 0.0
        %429 = vmatpush1.xpose.msra.mxu0 %v386
        %430 = vmatprep.subr.mxu0 0.0
        %431 = vmatpush1.xpose.msra.mxu0 %v389
        %432 = vmatprep.subr.mxu0 0.0
        %433 = vmatpush1.xpose.msra.mxu0 %v392
        %434 = vmatprep.subr.mxu0 0.0
        %435 = vmatpush1.xpose.msra.mxu0 %v395
        %436 = vmatprep.subr.mxu0 0.0
        %437 = vmatpush1.xpose.msra.mxu0 %v398
        %438 = vmatprep.subr.mxu0 0.0
        %439 = vmatpush1.xpose.msra.mxu0 %v401
        %440 = vmatprep.subr.mxu0 0.0
        %441 = vmatpush1.xpose.msra.mxu0 %v404
        %442 = vmatprep.subr.mxu0 0.0
        %443 = vmatpush1.xpose.msra.mxu0 %v407
        %444 = vmatprep.subr.mxu0 0.0
        %445 = vmatpush1.xpose.msra.mxu0 %v410
        %446 = vmatprep.subr.mxu0 0.0
        %447 = vmatpush1.xpose.msra.mxu0 %v413
        %448 = vmatprep.subr.mxu0 0.0
        %449 = vmatpush1.xpose.msra.mxu0 %v416
        %450 = vmatprep.subr.mxu0 0.0
        %451 = vmatpush1.xpose.msra.mxu0 0.0
        %452 = vmatprep.subr.mxu0 0.0
        %453 = vmatpush1.xpose.msra.mxu0 0.0
        %454 = vmatprep.subr.mxu0 0.0
        %455 = vmatpush1.xpose.msra.mxu0 0.0
        %456 = vmatprep.subr.mxu0 0.0
        %457 = vmatpush1.xpose.msra.mxu0 0.0
        %458 = vmatprep.subr.mxu0 0.0
        %459 = vmatpush1.xpose.msra.mxu0 0.0
        %460 = vmatprep.subr.mxu0 0.0
        %461 = vmatpush1.xpose.msra.mxu0 0.0
        %462 = vmatprep.subr.mxu0 0.0
        %463 = vmatpush1.xpose.msra.mxu0 0.0
        %464 = vmatprep.subr.mxu0 0.0
        %465 = vmatpush1.xpose.msra.mxu0 0.0
        %466 = vmatprep.subr.mxu0 0.0
        %467 = vmatpush1.xpose.msra.mxu0 0.0
        %468 = vmatprep.subr.mxu0 0.0
        %469 = vmatpush1.xpose.msra.mxu0 0.0
        %470 = vmatprep.subr.mxu0 0.0
        %471 = vmatpush1.xpose.msra.mxu0 0.0
        %472 = vmatprep.subr.mxu0 0.0
        %473 = vmatpush1.xpose.msra.mxu0 0.0
        %474 = vmatprep.subr.mxu0 0.0
        %475 = vmatpush1.xpose.msra.mxu0 0.0
        %476 = vmatprep.subr.mxu0 0.0
        %477 = vmatpush1.xpose.msra.mxu0 0.0
        %478 = vmatprep.subr.mxu0 0.0
        %479 = vmatpush1.xpose.msra.mxu0 0.0
        %480 = vmatprep.subr.mxu0 0.0
        %481 = vmatpush1.xpose.msra.mxu0 0.0
        %482 = vmatprep.mubr.f32.mxu0 0.0
        %483 = vmatmul.mubr.f32.gmra.mrb[0].mxu0 %v323
        %v484 = vpop.f32.mrb[0].mxu0
        %v485 = vadd.f32 0.0, %v484
        %v486 = vpop.f32.mrb[0].mxu0
        %487 = vmatprep.mubr.f32.mxu0 0.0
        %488 = vmatmul.mubr.f32.gmra.mrb[0].mxu0 %v326
        %v489 = vpop.f32.mrb[0].mxu0
        %v490 = vadd.f32 0.0, %v489
        %v491 = vpop.f32.mrb[0].mxu0
        %492 = vmatprep.mubr.f32.mxu0 0.0
        %493 = vmatmul.mubr.f32.gmra.mrb[0].mxu0 %v329
        %v494 = vpop.f32.mrb[0].mxu0
        %v495 = vadd.f32 0.0, %v494
        %v496 = vpop.f32.mrb[0].mxu0
        %497 = vmatprep.mubr.f32.mxu0 0.0
        %498 = vmatmul.mubr.f32.gmra.mrb[0].mxu0 %v332
        %v499 = vpop.f32.mrb[0].mxu0
        %v500 = vadd.f32 0.0, %v499
        %v501 = vpop.f32.mrb[0].mxu0
        %502 = vmatprep.mubr.f32.mxu0 0.0
        %503 = vmatmul.mubr.f32.gmra.mrb[0].mxu0 %v335
        %v504 = vpop.f32.mrb[0].mxu0
        %v505 = vadd.f32 0.0, %v504
        %v506 = vpop.f32.mrb[0].mxu0
        %507 = vmatprep.mubr.f32.mxu0 0.0
        %508 = vmatmul.mubr.f32.gmra.mrb[0].mxu0 %v338
        %v509 = vpop.f32.mrb[0].mxu0
        %v510 = vadd.f32 0.0, %v509
        %v511 = vpop.f32.mrb[0].mxu0
        %512 = vmatprep.mubr.f32.mxu0 0.0
        %513 = vmatmul.mubr.f32.gmra.mrb[0].mxu0 %v341
        %v514 = vpop.f32.mrb[0].mxu0
        %v515 = vadd.f32 0.0, %v514
        %v516 = vpop.f32.mrb[0].mxu0
        %517 = vmatprep.mubr.f32.mxu0 0.0
        %518 = vmatmul.mubr.f32.gmra.mrb[0].mxu0 %v344
        %v519 = vpop.f32.mrb[0].mxu0
        %v520 = vadd.f32 0.0, %v519
        %v521 = vpop.f32.mrb[0].mxu0
        %522 = vmatprep.mubr.f32.mxu0 0.0
        %523 = vmatmul.mubr.f32.gmra.mrb[0].mxu0 %v347
        %v524 = vpop.f32.mrb[0].mxu0
        %v525 = vadd.f32 0.0, %v524
        %v526 = vpop.f32.mrb[0].mxu0
        %527 = vmatprep.mubr.f32.mxu0 0.0
        %528 = vmatmul.mubr.f32.gmra.mrb[0].mxu0 %v350
        %v529 = vpop.f32.mrb[0].mxu0
        %v530 = vadd.f32 0.0, %v529
        %v531 = vpop.f32.mrb[0].mxu0
        %532 = vmatprep.mubr.f32.mxu0 0.0
        %533 = vmatmul.mubr.f32.gmra.mrb[0].mxu0 %v353
        %v534 = vpop.f32.mrb[0].mxu0
        %v535 = vadd.f32 0.0, %v534
        %v536 = vpop.f32.mrb[0].mxu0
        %537 = vmatprep.mubr.f32.mxu0 0.0
        %538 = vmatmul.mubr.f32.gmra.mrb[0].mxu0 %v356
        %v539 = vpop.f32.mrb[0].mxu0
        %v540 = vadd.f32 0.0, %v539
        %v541 = vpop.f32.mrb[0].mxu0
        %542 = vmatprep.mubr.f32.mxu0 0.0
        %543 = vmatmul.mubr.f32.gmra.mrb[0].mxu0 %v359
        %v544 = vpop.f32.mrb[0].mxu0
        %v545 = vadd.f32 0.0, %v544
        %v546 = vpop.f32.mrb[0].mxu0
        %547 = vmatprep.mubr.f32.mxu0 0.0
        %548 = vmatmul.mubr.f32.gmra.mrb[0].mxu0 %v362
        %v549 = vpop.f32.mrb[0].mxu0
        %v550 = vadd.f32 0.0, %v549
        %v551 = vpop.f32.mrb[0].mxu0
        %552 = vmatprep.mubr.f32.mxu0 0.0
        %553 = vmatmul.mubr.f32.gmra.mrb[0].mxu0 %v365
        %v554 = vpop.f32.mrb[0].mxu0
        %v555 = vadd.f32 0.0, %v554
        %v556 = vpop.f32.mrb[0].mxu0
        %557 = vmatprep.mubr.f32.mxu0 0.0
        %558 = vmatmul.mubr.f32.gmra.mrb[0].mxu0 %v368
        %v559 = vpop.f32.mrb[0].mxu0
        %v560 = vadd.f32 0.0, %v559
        %v561 = vpop.f32.mrb[0].mxu0
        %562 = vdwg.mxu0
        %563 = vxpose.xlu0.b32.start [1/16] %v276, 128
        %564 = vxpose.xlu0.b32.cont [2/16] %v279, 128
        %565 = vxpose.xlu0.b32.cont [3/16] %v282, 128
        %566 = vxpose.xlu0.b32.cont [4/16] %v285, 128
        %567 = vxpose.xlu0.b32.cont [5/16] %v288, 128
        %568 = vxpose.xlu0.b32.cont [6/16] %v291, 128
        %569 = vxpose.xlu0.b32.cont [7/16] %v294, 128
        %570 = vxpose.xlu0.b32.cont [8/16] %v297, 128
        %571 = vxpose.xlu0.b32.cont [9/16] %v300, 128
        %572 = vxpose.xlu0.b32.cont [10/16] %v303, 128
        %573 = vxpose.xlu0.b32.cont [11/16] %v306, 128
        %574 = vxpose.xlu0.b32.cont [12/16] %v309, 128
        %575 = vxpose.xlu0.b32.cont [13/16] %v312, 128
        %576 = vxpose.xlu0.b32.cont [14/16] %v315, 128
        %577 = vxpose.xlu0.b32.cont [15/16] %v318, 128
        %578 = vxpose.xlu0.b32.end [16/16] %v321, 128
        %v579 = vpop.trf.xlu0
        %v580 = vpop.trf.xlu0
        %v581 = vpop.trf.xlu0
        %v582 = vpop.trf.xlu0
        %v583 = vpop.trf.xlu0
        %v584 = vpop.trf.xlu0
        %v585 = vpop.trf.xlu0
        %v586 = vpop.trf.xlu0
        %v587 = vpop.trf.xlu0
        %v588 = vpop.trf.xlu0
        %v589 = vpop.trf.xlu0
        %v590 = vpop.trf.xlu0
        %v591 = vpop.trf.xlu0
        %v592 = vpop.trf.xlu0
        %v593 = vpop.trf.xlu0
        %v594 = vpop.trf.xlu0
        %v595 = vlaneseq
        %v596 = vshrl.u32 %v595, 7
        %v597 = vsub.s32 0, %v596
        %v598 = vrot.slane %v579, %v597
        %v599 = vadd.f32 %v212, %v598
        %v600 = vadd.f32 %v215, %v598
        %v601 = vadd.f32 %v218, %v598
        %v602 = vadd.f32 %v221, %v598
        %v603 = vadd.f32 %v224, %v598
        %v604 = vadd.f32 %v227, %v598
        %v605 = vadd.f32 %v230, %v598
        %v606 = vadd.f32 %v233, %v598
        %v607 = vadd.f32 %v236, %v598
        %v608 = vadd.f32 %v239, %v598
        %v609 = vadd.f32 %v242, %v598
        %v610 = vadd.f32 %v245, %v598
        %v611 = vadd.f32 %v248, %v598
        %v612 = vadd.f32 %v251, %v598
        %v613 = vadd.f32 %v254, %v598
        %v614 = vadd.f32 %v257, %v598
        %v615 = vmul.f32 %v485, 2.0
        %v616 = vmul.f32 %v490, 2.0
        %v617 = vmul.f32 %v495, 2.0
        %v618 = vmul.f32 %v500, 2.0
        %v619 = vmul.f32 %v505, 2.0
        %v620 = vmul.f32 %v510, 2.0
        %v621 = vmul.f32 %v515, 2.0
        %v622 = vmul.f32 %v520, 2.0
        %v623 = vmul.f32 %v525, 2.0
        %v624 = vmul.f32 %v530, 2.0
        %v625 = vmul.f32 %v535, 2.0
        %v626 = vmul.f32 %v540, 2.0
        %v627 = vmul.f32 %v545, 2.0
        %v628 = vmul.f32 %v550, 2.0
        %v629 = vmul.f32 %v555, 2.0
        %v630 = vmul.f32 %v560, 2.0
        %v631 = vsub.f32 %v599, %v615
        %v632 = vsub.f32 %v600, %v616
        %v633 = vsub.f32 %v601, %v617
        %v634 = vsub.f32 %v602, %v618
        %v635 = vsub.f32 %v603, %v619
        %v636 = vsub.f32 %v604, %v620
        %v637 = vsub.f32 %v605, %v621
        %v638 = vsub.f32 %v606, %v622
        %v639 = vsub.f32 %v607, %v623
        %v640 = vsub.f32 %v608, %v624
        %v641 = vsub.f32 %v609, %v625
        %v642 = vsub.f32 %v610, %v626
        %v643 = vsub.f32 %v611, %v627
        %v644 = vsub.f32 %v612, %v628
        %v645 = vsub.f32 %v613, %v629
        %v646 = vsub.f32 %v614, %v630
        %v647 = vmax.f32 %v631, 0.0
        %v648 = vmax.f32 %v632, 0.0
        %v649 = vmax.f32 %v633, 0.0
        %v650 = vmax.f32 %v634, 0.0
        %v651 = vmax.f32 %v635, 0.0
        %v652 = vmax.f32 %v636, 0.0
        %v653 = vmax.f32 %v637, 0.0
        %v654 = vmax.f32 %v638, 0.0
        %v655 = vmax.f32 %v639, 0.0
        %v656 = vmax.f32 %v640, 0.0
        %v657 = vmax.f32 %v641, 0.0
        %v658 = vmax.f32 %v642, 0.0
        %v659 = vmax.f32 %v643, 0.0
        %v660 = vmax.f32 %v644, 0.0
        %v661 = vmax.f32 %v645, 0.0
        %v662 = vmax.f32 %v646, 0.0
        %v663 = vmul.f32 %v647, 200.0
        %v664 = vmul.f32 %v648, 200.0
        %v665 = vmul.f32 %v649, 200.0
        %v666 = vmul.f32 %v650, 200.0
        %v667 = vmul.f32 %v651, 200.0
        %v668 = vmul.f32 %v652, 200.0
        %v669 = vmul.f32 %v653, 200.0
        %v670 = vmul.f32 %v654, 200.0
        %v671 = vmul.f32 %v655, 200.0
        %v672 = vmul.f32 %v656, 200.0
        %v673 = vmul.f32 %v657, 200.0
        %v674 = vmul.f32 %v658, 200.0
        %v675 = vmul.f32 %v659, 200.0
        %v676 = vmul.f32 %v660, 200.0
        %v677 = vmul.f32 %v661, 200.0
        %v678 = vmul.f32 %v662, 200.0
        %v679 = vsub.f32 0.0, %v663
        %v680 = vsub.f32 0.0, %v664
        %v681 = vsub.f32 0.0, %v665
        %v682 = vsub.f32 0.0, %v666
        %v683 = vsub.f32 0.0, %v667
        %v684 = vsub.f32 0.0, %v668
        %v685 = vsub.f32 0.0, %v669
        %v686 = vsub.f32 0.0, %v670
        %v687 = vsub.f32 0.0, %v671
        %v688 = vsub.f32 0.0, %v672
        %v689 = vsub.f32 0.0, %v673
        %v690 = vsub.f32 0.0, %v674
        %v691 = vsub.f32 0.0, %v675
        %v692 = vsub.f32 0.0, %v676
        %v693 = vsub.f32 0.0, %v677
        %v694 = vsub.f32 0.0, %v678
        %695 = vmax.xlane.f32.xlu0 %v679
        %v696 = vpop.xlane.xlu0 %695
        %697 = vmax.xlane.f32.xlu0 %v680
        %v698 = vpop.xlane.xlu0 %697
        %699 = vmax.xlane.f32.xlu0 %v681
        %v700 = vpop.xlane.xlu0 %699
        %701 = vmax.xlane.f32.xlu0 %v682
        %v702 = vpop.xlane.xlu0 %701
        %703 = vmax.xlane.f32.xlu0 %v683
        %v704 = vpop.xlane.xlu0 %703
        %705 = vmax.xlane.f32.xlu0 %v684
        %v706 = vpop.xlane.xlu0 %705
        %707 = vmax.xlane.f32.xlu0 %v685
        %v708 = vpop.xlane.xlu0 %707
        %709 = vmax.xlane.f32.xlu0 %v686
        %v710 = vpop.xlane.xlu0 %709
        %711 = vmax.xlane.f32.xlu0 %v687
        %v712 = vpop.xlane.xlu0 %711
        %713 = vmax.xlane.f32.xlu0 %v688
        %v714 = vpop.xlane.xlu0 %713
        %715 = vmax.xlane.f32.xlu0 %v689
        %v716 = vpop.xlane.xlu0 %715
        %717 = vmax.xlane.f32.xlu0 %v690
        %v718 = vpop.xlane.xlu0 %717
        %719 = vmax.xlane.f32.xlu0 %v691
        %v720 = vpop.xlane.xlu0 %719
        %721 = vmax.xlane.f32.xlu0 %v692
        %v722 = vpop.xlane.xlu0 %721
        %723 = vmax.xlane.f32.xlu0 %v693
        %v724 = vpop.xlane.xlu0 %723
        %725 = vmax.xlane.f32.xlu0 %v694
        %v726 = vpop.xlane.xlu0 %725
        %v727 = vsub.f32 %v679, %v696
        %v728 = vsub.f32 %v680, %v698
        %v729 = vsub.f32 %v681, %v700
        %v730 = vsub.f32 %v682, %v702
        %v731 = vsub.f32 %v683, %v704
        %v732 = vsub.f32 %v684, %v706
        %v733 = vsub.f32 %v685, %v708
        %v734 = vsub.f32 %v686, %v710
        %v735 = vsub.f32 %v687, %v712
        %v736 = vsub.f32 %v688, %v714
        %v737 = vsub.f32 %v689, %v716
        %v738 = vsub.f32 %v690, %v718
        %v739 = vsub.f32 %v691, %v720
        %v740 = vsub.f32 %v692, %v722
        %v741 = vsub.f32 %v693, %v724
        %v742 = vsub.f32 %v694, %v726
        %v743 = vmul.f32 %v727, 1.442695
        %v744 = vpow.pop %v743
        %v745 = vmul.f32 %v728, 1.442695
        %v746 = vpow.pop %v745
        %v747 = vmul.f32 %v729, 1.442695
        %v748 = vpow.pop %v747
        %v749 = vmul.f32 %v730, 1.442695
        %v750 = vpow.pop %v749
        %v751 = vmul.f32 %v731, 1.442695
        %v752 = vpow.pop %v751
        %v753 = vmul.f32 %v732, 1.442695
        %v754 = vpow.pop %v753
        %v755 = vmul.f32 %v733, 1.442695
        %v756 = vpow.pop %v755
        %v757 = vmul.f32 %v734, 1.442695
        %v758 = vpow.pop %v757
        %v759 = vmul.f32 %v735, 1.442695
        %v760 = vpow.pop %v759
        %v761 = vmul.f32 %v736, 1.442695
        %v762 = vpow.pop %v761
        %v763 = vmul.f32 %v737, 1.442695
        %v764 = vpow.pop %v763
        %v765 = vmul.f32 %v738, 1.442695
        %v766 = vpow.pop %v765
        %v767 = vmul.f32 %v739, 1.442695
        %v768 = vpow.pop %v767
        %v769 = vmul.f32 %v740, 1.442695
        %v770 = vpow.pop %v769
        %v771 = vmul.f32 %v741, 1.442695
        %v772 = vpow.pop %v771
        %v773 = vmul.f32 %v742, 1.442695
        %v774 = vpow.pop %v773
        %775 = vadd.xlane.f32.xlu0 %v744
        %v776 = vpop.xlane.xlu0 %775
        %777 = vadd.xlane.f32.xlu0 %v746
        %v778 = vpop.xlane.xlu0 %777
        %779 = vadd.xlane.f32.xlu0 %v748
        %v780 = vpop.xlane.xlu0 %779
        %781 = vadd.xlane.f32.xlu0 %v750
        %v782 = vpop.xlane.xlu0 %781
        %783 = vadd.xlane.f32.xlu0 %v752
        %v784 = vpop.xlane.xlu0 %783
        %785 = vadd.xlane.f32.xlu0 %v754
        %v786 = vpop.xlane.xlu0 %785
        %787 = vadd.xlane.f32.xlu0 %v756
        %v788 = vpop.xlane.xlu0 %787
        %789 = vadd.xlane.f32.xlu0 %v758
        %v790 = vpop.xlane.xlu0 %789
        %791 = vadd.xlane.f32.xlu0 %v760
        %v792 = vpop.xlane.xlu0 %791
        %793 = vadd.xlane.f32.xlu0 %v762
        %v794 = vpop.xlane.xlu0 %793
        %795 = vadd.xlane.f32.xlu0 %v764
        %v796 = vpop.xlane.xlu0 %795
        %797 = vadd.xlane.f32.xlu0 %v766
        %v798 = vpop.xlane.xlu0 %797
        %799 = vadd.xlane.f32.xlu0 %v768
        %v800 = vpop.xlane.xlu0 %799
        %801 = vadd.xlane.f32.xlu0 %v770
        %v802 = vpop.xlane.xlu0 %801
        %803 = vadd.xlane.f32.xlu0 %v772
        %v804 = vpop.xlane.xlu0 %803
        %805 = vadd.xlane.f32.xlu0 %v774
        %v806 = vpop.xlane.xlu0 %805
        %v807 = vlog2.pop %v776
        %v808 = vmul.f32 %v807, 0.6931472
        %v809 = vlog2.pop %v778
        %v810 = vmul.f32 %v809, 0.6931472
        %v811 = vlog2.pop %v780
        %v812 = vmul.f32 %v811, 0.6931472
        %v813 = vlog2.pop %v782
        %v814 = vmul.f32 %v813, 0.6931472
        %v815 = vlog2.pop %v784
        %v816 = vmul.f32 %v815, 0.6931472
        %v817 = vlog2.pop %v786
        %v818 = vmul.f32 %v817, 0.6931472
        %v819 = vlog2.pop %v788
        %v820 = vmul.f32 %v819, 0.6931472
        %v821 = vlog2.pop %v790
        %v822 = vmul.f32 %v821, 0.6931472
        %v823 = vlog2.pop %v792
        %v824 = vmul.f32 %v823, 0.6931472
        %v825 = vlog2.pop %v794
        %v826 = vmul.f32 %v825, 0.6931472
        %v827 = vlog2.pop %v796
        %v828 = vmul.f32 %v827, 0.6931472
        %v829 = vlog2.pop %v798
        %v830 = vmul.f32 %v829, 0.6931472
        %v831 = vlog2.pop %v800
        %v832 = vmul.f32 %v831, 0.6931472
        %v833 = vlog2.pop %v802
        %v834 = vmul.f32 %v833, 0.6931472
        %v835 = vlog2.pop %v804
        %v836 = vmul.f32 %v835, 0.6931472
        %v837 = vlog2.pop %v806
        %v838 = vmul.f32 %v837, 0.6931472
        %v839 = vadd.f32 %v696, %v808
        %v840 = vadd.f32 %v698, %v810
        %v841 = vadd.f32 %v700, %v812
        %v842 = vadd.f32 %v702, %v814
        %v843 = vadd.f32 %v704, %v816
        %v844 = vadd.f32 %v706, %v818
        %v845 = vadd.f32 %v708, %v820
        %v846 = vadd.f32 %v710, %v822
        %v847 = vadd.f32 %v712, %v824
        %v848 = vadd.f32 %v714, %v826
        %v849 = vadd.f32 %v716, %v828
        %v850 = vadd.f32 %v718, %v830
        %v851 = vadd.f32 %v720, %v832
        %v852 = vadd.f32 %v722, %v834
        %v853 = vadd.f32 %v724, %v836
        %v854 = vadd.f32 %v726, %v838
        %v855 = vsub.f32 -4.8520303, %v839
        %v856 = vsub.f32 -4.8520303, %v840
        %v857 = vsub.f32 -4.8520303, %v841
        %v858 = vsub.f32 -4.8520303, %v842
        %v859 = vsub.f32 -4.8520303, %v843
        %v860 = vsub.f32 -4.8520303, %v844
        %v861 = vsub.f32 -4.8520303, %v845
        %v862 = vsub.f32 -4.8520303, %v846
        %v863 = vsub.f32 -4.8520303, %v847
        %v864 = vsub.f32 -4.8520303, %v848
        %v865 = vsub.f32 -4.8520303, %v849
        %v866 = vsub.f32 -4.8520303, %v850
        %v867 = vsub.f32 -4.8520303, %v851
        %v868 = vsub.f32 -4.8520303, %v852
        %v869 = vsub.f32 -4.8520303, %v853
        %v870 = vsub.f32 -4.8520303, %v854
        %v871 = vsub.f32 %v855, %v663
        %v872 = vsub.f32 %v856, %v664
        %v873 = vsub.f32 %v857, %v665
        %v874 = vsub.f32 %v858, %v666
        %v875 = vsub.f32 %v859, %v667
        %v876 = vsub.f32 %v860, %v668
        %v877 = vsub.f32 %v861, %v669
        %v878 = vsub.f32 %v862, %v670
        %v879 = vsub.f32 %v863, %v671
        %v880 = vsub.f32 %v864, %v672
        %v881 = vsub.f32 %v865, %v673
        %v882 = vsub.f32 %v866, %v674
        %v883 = vsub.f32 %v867, %v675
        %v884 = vsub.f32 %v868, %v676
        %v885 = vsub.f32 %v869, %v677
        %v886 = vsub.f32 %v870, %v678
        %v887 = vmax.f32 %v871, %v875
        %v888 = vmax.f32 %v872, %v876
        %v889 = vmax.f32 %v873, %v877
        %v890 = vmax.f32 %v874, %v878
        %v891 = vmax.f32 %v887, %v879
        %v892 = vmax.f32 %v888, %v880
        %v893 = vmax.f32 %v889, %v881
        %v894 = vmax.f32 %v890, %v882
        %v895 = vmax.f32 %v891, %v883
        %v896 = vmax.f32 %v892, %v884
        %v897 = vmax.f32 %v893, %v885
        %v898 = vmax.f32 %v894, %v886
        %v899 = vmax.f32 %v895, %v896
        %v900 = vmax.f32 %v897, %v898
        %v901 = vmax.f32 %v899, %v900
        %v902 = vrot.slane %v901, 4
        %v903 = vmax.f32 %v901, %v902
        %v904 = vrot.slane %v903, 2
        %v905 = vmax.f32 %v903, %v904
        %v906 = vrot.slane %v905, 1
        %v907 = vmax.f32 %v905, %v906
        %v908 = vsub.f32 %v871, %v907
        %v909 = vsub.f32 %v872, %v907
        %v910 = vsub.f32 %v873, %v907
        %v911 = vsub.f32 %v874, %v907
        %v912 = vsub.f32 %v875, %v907
        %v913 = vsub.f32 %v876, %v907
        %v914 = vsub.f32 %v877, %v907
        %v915 = vsub.f32 %v878, %v907
        %v916 = vsub.f32 %v879, %v907
        %v917 = vsub.f32 %v880, %v907
        %v918 = vsub.f32 %v881, %v907
        %v919 = vsub.f32 %v882, %v907
        %v920 = vsub.f32 %v883, %v907
        %v921 = vsub.f32 %v884, %v907
        %v922 = vsub.f32 %v885, %v907
        %v923 = vsub.f32 %v886, %v907
        %v924 = vmul.f32 %v908, 1.442695
        %v925 = vpow.pop %v924
        %v926 = vmul.f32 %v909, 1.442695
        %v927 = vpow.pop %v926
        %v928 = vmul.f32 %v910, 1.442695
        %v929 = vpow.pop %v928
        %v930 = vmul.f32 %v911, 1.442695
        %v931 = vpow.pop %v930
        %v932 = vmul.f32 %v912, 1.442695
        %v933 = vpow.pop %v932
        %v934 = vmul.f32 %v913, 1.442695
        %v935 = vpow.pop %v934
        %v936 = vmul.f32 %v914, 1.442695
        %v937 = vpow.pop %v936
        %v938 = vmul.f32 %v915, 1.442695
        %v939 = vpow.pop %v938
        %v940 = vmul.f32 %v916, 1.442695
        %v941 = vpow.pop %v940
        %v942 = vmul.f32 %v917, 1.442695
        %v943 = vpow.pop %v942
        %v944 = vmul.f32 %v918, 1.442695
        %v945 = vpow.pop %v944
        %v946 = vmul.f32 %v919, 1.442695
        %v947 = vpow.pop %v946
        %v948 = vmul.f32 %v920, 1.442695
        %v949 = vpow.pop %v948
        %v950 = vmul.f32 %v921, 1.442695
        %v951 = vpow.pop %v950
        %v952 = vmul.f32 %v922, 1.442695
        %v953 = vpow.pop %v952
        %v954 = vmul.f32 %v923, 1.442695
        %v955 = vpow.pop %v954
        %v956 = vadd.f32 %v925, %v927
        %v957 = vadd.f32 %v956, %v929
        %v958 = vadd.f32 %v957, %v931
        %v959 = vadd.f32 %v958, %v933
        %v960 = vadd.f32 %v959, %v935
        %v961 = vadd.f32 %v960, %v937
        %v962 = vadd.f32 %v961, %v939
        %v963 = vadd.f32 %v962, %v941
        %v964 = vadd.f32 %v963, %v943
        %v965 = vadd.f32 %v964, %v945
        %v966 = vadd.f32 %v965, %v947
        %v967 = vadd.f32 %v966, %v949
        %v968 = vadd.f32 %v967, %v951
        %v969 = vadd.f32 %v968, %v953
        %v970 = vadd.f32 %v969, %v955
        %v971 = vrot.slane %v970, 4
        %v972 = vadd.f32 %v970, %v971
        %v973 = vrot.slane %v972, 2
        %v974 = vadd.f32 %v972, %v973
        %v975 = vrot.slane %v974, 1
        %v976 = vadd.f32 %v974, %v975
        %v977 = vlog2.pop %v976
        %v978 = vmul.f32 %v977, 0.6931472
        %v979 = vadd.f32 %v907, %v978
        %v980 = vsub.f32 -4.8520303, %v979
        // While loop
        $region29: #{tpu_custom_call.1} parent=27 // loop_pre_header
          _
        $region30: #{tpu_custom_call.1} parent=27 // loop_header
          %s982 = sphi 1, %s2600
          %s983 = sphi inf, %s2548
          %v984 = vphi %v855, %v2581
          %v985 = vphi %v856, %v2582
          %v986 = vphi %v857, %v2583
          %v987 = vphi %v858, %v2584
          %v988 = vphi %v859, %v2585
          %v989 = vphi %v860, %v2586
          %v990 = vphi %v861, %v2587
          %v991 = vphi %v862, %v2588
          %v992 = vphi %v863, %v2589
          %v993 = vphi %v864, %v2590
          %v994 = vphi %v865, %v2591
          %v995 = vphi %v866, %v2592
          %v996 = vphi %v867, %v2593
          %v997 = vphi %v868, %v2594
          %v998 = vphi %v869, %v2595
          %v999 = vphi %v870, %v2596
          %v1000 = vphi %v980, %v2599
          %p1001 = scmp.lt.s32.totalorder %s982, 3000
          %p1002 = scmp.gt.f32.partialorder %s983, 0.001
          %p1003 = pnand %p1001, %p1002
          %p1004 = pneg %p1003
        $region31: #{tpu_custom_call.1} parent=27 // loop_header_branch
          %1006 = sbr.rel (%p1003) target = $region35
        $region32: #{tpu_custom_call.1} parent=27 // loop_body
          %v1007 = vadd.f32 %v984, %v1000
          %v1008 = vadd.f32 %v985, %v1000
          %v1009 = vadd.f32 %v986, %v1000
          %v1010 = vadd.f32 %v987, %v1000
          %v1011 = vadd.f32 %v988, %v1000
          %v1012 = vadd.f32 %v989, %v1000
          %v1013 = vadd.f32 %v990, %v1000
          %v1014 = vadd.f32 %v991, %v1000
          %v1015 = vadd.f32 %v992, %v1000
          %v1016 = vadd.f32 %v993, %v1000
          %v1017 = vadd.f32 %v994, %v1000
          %v1018 = vadd.f32 %v995, %v1000
          %v1019 = vadd.f32 %v996, %v1000
          %v1020 = vadd.f32 %v997, %v1000
          %v1021 = vadd.f32 %v998, %v1000
          %v1022 = vadd.f32 %v999, %v1000
          %v1023 = vsub.f32 %v1007, %v663
          %v1024 = vsub.f32 %v1008, %v664
          %v1025 = vsub.f32 %v1009, %v665
          %v1026 = vsub.f32 %v1010, %v666
          %v1027 = vsub.f32 %v1011, %v667
          %v1028 = vsub.f32 %v1012, %v668
          %v1029 = vsub.f32 %v1013, %v669
          %v1030 = vsub.f32 %v1014, %v670
          %v1031 = vsub.f32 %v1015, %v671
          %v1032 = vsub.f32 %v1016, %v672
          %v1033 = vsub.f32 %v1017, %v673
          %v1034 = vsub.f32 %v1018, %v674
          %v1035 = vsub.f32 %v1019, %v675
          %v1036 = vsub.f32 %v1020, %v676
          %v1037 = vsub.f32 %v1021, %v677
          %v1038 = vsub.f32 %v1022, %v678
          %v1039 = vmul.f32 %v1023, 1.442695
          %v1040 = vpow.pop %v1039
          %v1041 = vmul.f32 %v1024, 1.442695
          %v1042 = vpow.pop %v1041
          %v1043 = vmul.f32 %v1025, 1.442695
          %v1044 = vpow.pop %v1043
          %v1045 = vmul.f32 %v1026, 1.442695
          %v1046 = vpow.pop %v1045
          %v1047 = vmul.f32 %v1027, 1.442695
          %v1048 = vpow.pop %v1047
          %v1049 = vmul.f32 %v1028, 1.442695
          %v1050 = vpow.pop %v1049
          %v1051 = vmul.f32 %v1029, 1.442695
          %v1052 = vpow.pop %v1051
          %v1053 = vmul.f32 %v1030, 1.442695
          %v1054 = vpow.pop %v1053
          %v1055 = vmul.f32 %v1031, 1.442695
          %v1056 = vpow.pop %v1055
          %v1057 = vmul.f32 %v1032, 1.442695
          %v1058 = vpow.pop %v1057
          %v1059 = vmul.f32 %v1033, 1.442695
          %v1060 = vpow.pop %v1059
          %v1061 = vmul.f32 %v1034, 1.442695
          %v1062 = vpow.pop %v1061
          %v1063 = vmul.f32 %v1035, 1.442695
          %v1064 = vpow.pop %v1063
          %v1065 = vmul.f32 %v1036, 1.442695
          %v1066 = vpow.pop %v1065
          %v1067 = vmul.f32 %v1037, 1.442695
          %v1068 = vpow.pop %v1067
          %v1069 = vmul.f32 %v1038, 1.442695
          %v1070 = vpow.pop %v1069
          %1071 = vadd.xlane.f32.xlu0 %v1040
          %v1072 = vpop.xlane.xlu0 %1071
          %1073 = vadd.xlane.f32.xlu0 %v1042
          %v1074 = vpop.xlane.xlu0 %1073
          %1075 = vadd.xlane.f32.xlu0 %v1044
          %v1076 = vpop.xlane.xlu0 %1075
          %1077 = vadd.xlane.f32.xlu0 %v1046
          %v1078 = vpop.xlane.xlu0 %1077
          %1079 = vadd.xlane.f32.xlu0 %v1048
          %v1080 = vpop.xlane.xlu0 %1079
          %1081 = vadd.xlane.f32.xlu0 %v1050
          %v1082 = vpop.xlane.xlu0 %1081
          %1083 = vadd.xlane.f32.xlu0 %v1052
          %v1084 = vpop.xlane.xlu0 %1083
          %1085 = vadd.xlane.f32.xlu0 %v1054
          %v1086 = vpop.xlane.xlu0 %1085
          %1087 = vadd.xlane.f32.xlu0 %v1056
          %v1088 = vpop.xlane.xlu0 %1087
          %1089 = vadd.xlane.f32.xlu0 %v1058
          %v1090 = vpop.xlane.xlu0 %1089
          %1091 = vadd.xlane.f32.xlu0 %v1060
          %v1092 = vpop.xlane.xlu0 %1091
          %1093 = vadd.xlane.f32.xlu0 %v1062
          %v1094 = vpop.xlane.xlu0 %1093
          %1095 = vadd.xlane.f32.xlu0 %v1064
          %v1096 = vpop.xlane.xlu0 %1095
          %1097 = vadd.xlane.f32.xlu0 %v1066
          %v1098 = vpop.xlane.xlu0 %1097
          %1099 = vadd.xlane.f32.xlu0 %v1068
          %v1100 = vpop.xlane.xlu0 %1099
          %1101 = vadd.xlane.f32.xlu0 %v1070
          %v1102 = vpop.xlane.xlu0 %1101
          %v1103 = vmax.f32 %v1072, 1e-30
          %v1104 = vmax.f32 %v1074, 1e-30
          %v1105 = vmax.f32 %v1076, 1e-30
          %v1106 = vmax.f32 %v1078, 1e-30
          %v1107 = vmax.f32 %v1080, 1e-30
          %v1108 = vmax.f32 %v1082, 1e-30
          %v1109 = vmax.f32 %v1084, 1e-30
          %v1110 = vmax.f32 %v1086, 1e-30
          %v1111 = vmax.f32 %v1088, 1e-30
          %v1112 = vmax.f32 %v1090, 1e-30
          %v1113 = vmax.f32 %v1092, 1e-30
          %v1114 = vmax.f32 %v1094, 1e-30
          %v1115 = vmax.f32 %v1096, 1e-30
          %v1116 = vmax.f32 %v1098, 1e-30
          %v1117 = vmax.f32 %v1100, 1e-30
          %v1118 = vmax.f32 %v1102, 1e-30
          %v1119 = vrcp.pop %v1103
          %v1120 = vrcp.pop %v1104
          %v1121 = vrcp.pop %v1105
          %v1122 = vrcp.pop %v1106
          %v1123 = vrcp.pop %v1107
          %v1124 = vrcp.pop %v1108
          %v1125 = vrcp.pop %v1109
          %v1126 = vrcp.pop %v1110
          %v1127 = vrcp.pop %v1111
          %v1128 = vrcp.pop %v1112
          %v1129 = vrcp.pop %v1113
          %v1130 = vrcp.pop %v1114
          %v1131 = vrcp.pop %v1115
          %v1132 = vrcp.pop %v1116
          %v1133 = vrcp.pop %v1117
          %v1134 = vrcp.pop %v1118
          %v1135 = vmul.f32 %v1119, 0.0078125
          %v1136 = vmul.f32 %v1120, 0.0078125
          %v1137 = vmul.f32 %v1121, 0.0078125
          %v1138 = vmul.f32 %v1122, 0.0078125
          %v1139 = vmul.f32 %v1123, 0.0078125
          %v1140 = vmul.f32 %v1124, 0.0078125
          %v1141 = vmul.f32 %v1125, 0.0078125
          %v1142 = vmul.f32 %v1126, 0.0078125
          %v1143 = vmul.f32 %v1127, 0.0078125
          %v1144 = vmul.f32 %v1128, 0.0078125
          %v1145 = vmul.f32 %v1129, 0.0078125
          %v1146 = vmul.f32 %v1130, 0.0078125
          %v1147 = vmul.f32 %v1131, 0.0078125
          %v1148 = vmul.f32 %v1132, 0.0078125
          %v1149 = vmul.f32 %v1133, 0.0078125
          %v1150 = vmul.f32 %v1134, 0.0078125
          %v1151 = vmul.f32 %v1040, %v1135
          %v1152 = vmul.f32 %v1042, %v1136
          %v1153 = vmul.f32 %v1044, %v1137
          %v1154 = vmul.f32 %v1046, %v1138
          %v1155 = vmul.f32 %v1048, %v1139
          %v1156 = vmul.f32 %v1050, %v1140
          %v1157 = vmul.f32 %v1052, %v1141
          %v1158 = vmul.f32 %v1054, %v1142
          %v1159 = vmul.f32 %v1056, %v1143
          %v1160 = vmul.f32 %v1058, %v1144
          %v1161 = vmul.f32 %v1060, %v1145
          %v1162 = vmul.f32 %v1062, %v1146
          %v1163 = vmul.f32 %v1064, %v1147
          %v1164 = vmul.f32 %v1066, %v1148
          %v1165 = vmul.f32 %v1068, %v1149
          %v1166 = vmul.f32 %v1070, %v1150
          %v1167 = vadd.f32 %v1151, %v1152
          %v1168 = vadd.f32 %v1167, %v1153
          %v1169 = vadd.f32 %v1168, %v1154
          %v1170 = vadd.f32 %v1169, %v1155
          %v1171 = vadd.f32 %v1170, %v1156
          %v1172 = vadd.f32 %v1171, %v1157
          %v1173 = vadd.f32 %v1172, %v1158
          %v1174 = vadd.f32 %v1173, %v1159
          %v1175 = vadd.f32 %v1174, %v1160
          %v1176 = vadd.f32 %v1175, %v1161
          %v1177 = vadd.f32 %v1176, %v1162
          %v1178 = vadd.f32 %v1177, %v1163
          %v1179 = vadd.f32 %v1178, %v1164
          %v1180 = vadd.f32 %v1179, %v1165
          %v1181 = vadd.f32 %v1180, %v1166
          %v1182 = vrot.slane %v1181, 4
          %v1183 = vadd.f32 %v1181, %v1182
          %v1184 = vrot.slane %v1183, 2
          %v1185 = vadd.f32 %v1183, %v1184
          %v1186 = vrot.slane %v1185, 1
          %v1187 = vadd.f32 %v1185, %v1186
          %v1188 = vmax.f32 %v1187, 1e-30
          %v1189 = vrcp.pop %v1188
          %v1190 = vmul.f32 %v1189, 0.0078125
          %v1191 = vmul.f32 %v1040, %v1190
          %v1192 = vmul.f32 %v1042, %v1190
          %v1193 = vmul.f32 %v1044, %v1190
          %v1194 = vmul.f32 %v1046, %v1190
          %v1195 = vmul.f32 %v1048, %v1190
          %v1196 = vmul.f32 %v1050, %v1190
          %v1197 = vmul.f32 %v1052, %v1190
          %v1198 = vmul.f32 %v1054, %v1190
          %v1199 = vmul.f32 %v1056, %v1190
          %v1200 = vmul.f32 %v1058, %v1190
          %v1201 = vmul.f32 %v1060, %v1190
          %v1202 = vmul.f32 %v1062, %v1190
          %v1203 = vmul.f32 %v1064, %v1190
          %v1204 = vmul.f32 %v1066, %v1190
          %v1205 = vmul.f32 %v1068, %v1190
          %v1206 = vmul.f32 %v1070, %v1190
          %1207 = vadd.xlane.f32.xlu0 %v1191
          %v1208 = vpop.xlane.xlu0 %1207
          %1209 = vadd.xlane.f32.xlu0 %v1192
          %v1210 = vpop.xlane.xlu0 %1209
          %1211 = vadd.xlane.f32.xlu0 %v1193
          %v1212 = vpop.xlane.xlu0 %1211
          %1213 = vadd.xlane.f32.xlu0 %v1194
          %v1214 = vpop.xlane.xlu0 %1213
          %1215 = vadd.xlane.f32.xlu0 %v1195
          %v1216 = vpop.xlane.xlu0 %1215
          %1217 = vadd.xlane.f32.xlu0 %v1196
          %v1218 = vpop.xlane.xlu0 %1217
          %1219 = vadd.xlane.f32.xlu0 %v1197
          %v1220 = vpop.xlane.xlu0 %1219
          %1221 = vadd.xlane.f32.xlu0 %v1198
          %v1222 = vpop.xlane.xlu0 %1221
          %1223 = vadd.xlane.f32.xlu0 %v1199
          %v1224 = vpop.xlane.xlu0 %1223
          %1225 = vadd.xlane.f32.xlu0 %v1200
          %v1226 = vpop.xlane.xlu0 %1225
          %1227 = vadd.xlane.f32.xlu0 %v1201
          %v1228 = vpop.xlane.xlu0 %1227
          %1229 = vadd.xlane.f32.xlu0 %v1202
          %v1230 = vpop.xlane.xlu0 %1229
          %1231 = vadd.xlane.f32.xlu0 %v1203
          %v1232 = vpop.xlane.xlu0 %1231
          %1233 = vadd.xlane.f32.xlu0 %v1204
          %v1234 = vpop.xlane.xlu0 %1233
          %1235 = vadd.xlane.f32.xlu0 %v1205
          %v1236 = vpop.xlane.xlu0 %1235
          %1237 = vadd.xlane.f32.xlu0 %v1206
          %v1238 = vpop.xlane.xlu0 %1237
          %v1239 = vmax.f32 %v1208, 1e-30
          %v1240 = vmax.f32 %v1210, 1e-30
          %v1241 = vmax.f32 %v1212, 1e-30
          %v1242 = vmax.f32 %v1214, 1e-30
          %v1243 = vmax.f32 %v1216, 1e-30
          %v1244 = vmax.f32 %v1218, 1e-30
          %v1245 = vmax.f32 %v1220, 1e-30
          %v1246 = vmax.f32 %v1222, 1e-30
          %v1247 = vmax.f32 %v1224, 1e-30
          %v1248 = vmax.f32 %v1226, 1e-30
          %v1249 = vmax.f32 %v1228, 1e-30
          %v1250 = vmax.f32 %v1230, 1e-30
          %v1251 = vmax.f32 %v1232, 1e-30
          %v1252 = vmax.f32 %v1234, 1e-30
          %v1253 = vmax.f32 %v1236, 1e-30
          %v1254 = vmax.f32 %v1238, 1e-30
          %v1255 = vrcp.pop %v1239
          %v1256 = vrcp.pop %v1240
          %v1257 = vrcp.pop %v1241
          %v1258 = vrcp.pop %v1242
          %v1259 = vrcp.pop %v1243
          %v1260 = vrcp.pop %v1244
          %v1261 = vrcp.pop %v1245
          %v1262 = vrcp.pop %v1246
          %v1263 = vrcp.pop %v1247
          %v1264 = vrcp.pop %v1248
          %v1265 = vrcp.pop %v1249
          %v1266 = vrcp.pop %v1250
          %v1267 = vrcp.pop %v1251
          %v1268 = vrcp.pop %v1252
          %v1269 = vrcp.pop %v1253
          %v1270 = vrcp.pop %v1254
          %v1271 = vmul.f32 %v1255, 0.0078125
          %v1272 = vmul.f32 %v1256, 0.0078125
          %v1273 = vmul.f32 %v1257, 0.0078125
          %v1274 = vmul.f32 %v1258, 0.0078125
          %v1275 = vmul.f32 %v1259, 0.0078125
          %v1276 = vmul.f32 %v1260, 0.0078125
          %v1277 = vmul.f32 %v1261, 0.0078125
          %v1278 = vmul.f32 %v1262, 0.0078125
          %v1279 = vmul.f32 %v1263, 0.0078125
          %v1280 = vmul.f32 %v1264, 0.0078125
          %v1281 = vmul.f32 %v1265, 0.0078125
          %v1282 = vmul.f32 %v1266, 0.0078125
          %v1283 = vmul.f32 %v1267, 0.0078125
          %v1284 = vmul.f32 %v1268, 0.0078125
          %v1285 = vmul.f32 %v1269, 0.0078125
          %v1286 = vmul.f32 %v1270, 0.0078125
          %v1287 = vmul.f32 %v1040, %v1271
          %v1288 = vmul.f32 %v1042, %v1272
          %v1289 = vmul.f32 %v1044, %v1273
          %v1290 = vmul.f32 %v1046, %v1274
          %v1291 = vmul.f32 %v1048, %v1275
          %v1292 = vmul.f32 %v1050, %v1276
          %v1293 = vmul.f32 %v1052, %v1277
          %v1294 = vmul.f32 %v1054, %v1278
          %v1295 = vmul.f32 %v1056, %v1279
          %v1296 = vmul.f32 %v1058, %v1280
          %v1297 = vmul.f32 %v1060, %v1281
          %v1298 = vmul.f32 %v1062, %v1282
          %v1299 = vmul.f32 %v1064, %v1283
          %v1300 = vmul.f32 %v1066, %v1284
          %v1301 = vmul.f32 %v1068, %v1285
          %v1302 = vmul.f32 %v1070, %v1286
          %v1303 = vadd.f32 %v1287, %v1288
          %v1304 = vadd.f32 %v1303, %v1289
          %v1305 = vadd.f32 %v1304, %v1290
          %v1306 = vadd.f32 %v1305, %v1291
          %v1307 = vadd.f32 %v1306, %v1292
          %v1308 = vadd.f32 %v1307, %v1293
          %v1309 = vadd.f32 %v1308, %v1294
          %v1310 = vadd.f32 %v1309, %v1295
          %v1311 = vadd.f32 %v1310, %v1296
          %v1312 = vadd.f32 %v1311, %v1297
          %v1313 = vadd.f32 %v1312, %v1298
          %v1314 = vadd.f32 %v1313, %v1299
          %v1315 = vadd.f32 %v1314, %v1300
          %v1316 = vadd.f32 %v1315, %v1301
          %v1317 = vadd.f32 %v1316, %v1302
          %v1318 = vrot.slane %v1317, 4
          %v1319 = vadd.f32 %v1317, %v1318
          %v1320 = vrot.slane %v1319, 2
          %v1321 = vadd.f32 %v1319, %v1320
          %v1322 = vrot.slane %v1321, 1
          %v1323 = vadd.f32 %v1321, %v1322
          %v1324 = vmax.f32 %v1323, 1e-30
          %v1325 = vrcp.pop %v1324
          %v1326 = vmul.f32 %v1325, 0.0078125
          %v1327 = vmul.f32 %v1040, %v1326
          %v1328 = vmul.f32 %v1042, %v1326
          %v1329 = vmul.f32 %v1044, %v1326
          %v1330 = vmul.f32 %v1046, %v1326
          %v1331 = vmul.f32 %v1048, %v1326
          %v1332 = vmul.f32 %v1050, %v1326
          %v1333 = vmul.f32 %v1052, %v1326
          %v1334 = vmul.f32 %v1054, %v1326
          %v1335 = vmul.f32 %v1056, %v1326
          %v1336 = vmul.f32 %v1058, %v1326
          %v1337 = vmul.f32 %v1060, %v1326
          %v1338 = vmul.f32 %v1062, %v1326
          %v1339 = vmul.f32 %v1064, %v1326
          %v1340 = vmul.f32 %v1066, %v1326
          %v1341 = vmul.f32 %v1068, %v1326
          %v1342 = vmul.f32 %v1070, %v1326
          %1343 = vadd.xlane.f32.xlu0 %v1327
          %v1344 = vpop.xlane.xlu0 %1343
          %1345 = vadd.xlane.f32.xlu0 %v1328
          %v1346 = vpop.xlane.xlu0 %1345
          %1347 = vadd.xlane.f32.xlu0 %v1329
          %v1348 = vpop.xlane.xlu0 %1347
          %1349 = vadd.xlane.f32.xlu0 %v1330
          %v1350 = vpop.xlane.xlu0 %1349
          %1351 = vadd.xlane.f32.xlu0 %v1331
          %v1352 = vpop.xlane.xlu0 %1351
          %1353 = vadd.xlane.f32.xlu0 %v1332
          %v1354 = vpop.xlane.xlu0 %1353
          %1355 = vadd.xlane.f32.xlu0 %v1333
          %v1356 = vpop.xlane.xlu0 %1355
          %1357 = vadd.xlane.f32.xlu0 %v1334
          %v1358 = vpop.xlane.xlu0 %1357
          %1359 = vadd.xlane.f32.xlu0 %v1335
          %v1360 = vpop.xlane.xlu0 %1359
          %1361 = vadd.xlane.f32.xlu0 %v1336
          %v1362 = vpop.xlane.xlu0 %1361
          %1363 = vadd.xlane.f32.xlu0 %v1337
          %v1364 = vpop.xlane.xlu0 %1363
          %1365 = vadd.xlane.f32.xlu0 %v1338
          %v1366 = vpop.xlane.xlu0 %1365
          %1367 = vadd.xlane.f32.xlu0 %v1339
          %v1368 = vpop.xlane.xlu0 %1367
          %1369 = vadd.xlane.f32.xlu0 %v1340
          %v1370 = vpop.xlane.xlu0 %1369
          %1371 = vadd.xlane.f32.xlu0 %v1341
          %v1372 = vpop.xlane.xlu0 %1371
          %1373 = vadd.xlane.f32.xlu0 %v1342
          %v1374 = vpop.xlane.xlu0 %1373
          %v1375 = vmax.f32 %v1344, 1e-30
          %v1376 = vmax.f32 %v1346, 1e-30
          %v1377 = vmax.f32 %v1348, 1e-30
          %v1378 = vmax.f32 %v1350, 1e-30
          %v1379 = vmax.f32 %v1352, 1e-30
          %v1380 = vmax.f32 %v1354, 1e-30
          %v1381 = vmax.f32 %v1356, 1e-30
          %v1382 = vmax.f32 %v1358, 1e-30
          %v1383 = vmax.f32 %v1360, 1e-30
          %v1384 = vmax.f32 %v1362, 1e-30
          %v1385 = vmax.f32 %v1364, 1e-30
          %v1386 = vmax.f32 %v1366, 1e-30
          %v1387 = vmax.f32 %v1368, 1e-30
          %v1388 = vmax.f32 %v1370, 1e-30
          %v1389 = vmax.f32 %v1372, 1e-30
          %v1390 = vmax.f32 %v1374, 1e-30
          %v1391 = vrcp.pop %v1375
          %v1392 = vrcp.pop %v1376
          %v1393 = vrcp.pop %v1377
          %v1394 = vrcp.pop %v1378
          %v1395 = vrcp.pop %v1379
          %v1396 = vrcp.pop %v1380
          %v1397 = vrcp.pop %v1381
          %v1398 = vrcp.pop %v1382
          %v1399 = vrcp.pop %v1383
          %v1400 = vrcp.pop %v1384
          %v1401 = vrcp.pop %v1385
          %v1402 = vrcp.pop %v1386
          %v1403 = vrcp.pop %v1387
          %v1404 = vrcp.pop %v1388
          %v1405 = vrcp.pop %v1389
          %v1406 = vrcp.pop %v1390
          %v1407 = vmul.f32 %v1391, 0.0078125
          %v1408 = vmul.f32 %v1392, 0.0078125
          %v1409 = vmul.f32 %v1393, 0.0078125
          %v1410 = vmul.f32 %v1394, 0.0078125
          %v1411 = vmul.f32 %v1395, 0.0078125
          %v1412 = vmul.f32 %v1396, 0.0078125
          %v1413 = vmul.f32 %v1397, 0.0078125
          %v1414 = vmul.f32 %v1398, 0.0078125
          %v1415 = vmul.f32 %v1399, 0.0078125
          %v1416 = vmul.f32 %v1400, 0.0078125
          %v1417 = vmul.f32 %v1401, 0.0078125
          %v1418 = vmul.f32 %v1402, 0.0078125
          %v1419 = vmul.f32 %v1403, 0.0078125
          %v1420 = vmul.f32 %v1404, 0.0078125
          %v1421 = vmul.f32 %v1405, 0.0078125
          %v1422 = vmul.f32 %v1406, 0.0078125
          %v1423 = vmul.f32 %v1040, %v1407
          %v1424 = vmul.f32 %v1042, %v1408
          %v1425 = vmul.f32 %v1044, %v1409
          %v1426 = vmul.f32 %v1046, %v1410
          %v1427 = vmul.f32 %v1048, %v1411
          %v1428 = vmul.f32 %v1050, %v1412
          %v1429 = vmul.f32 %v1052, %v1413
          %v1430 = vmul.f32 %v1054, %v1414
          %v1431 = vmul.f32 %v1056, %v1415
          %v1432 = vmul.f32 %v1058, %v1416
          %v1433 = vmul.f32 %v1060, %v1417
          %v1434 = vmul.f32 %v1062, %v1418
          %v1435 = vmul.f32 %v1064, %v1419
          %v1436 = vmul.f32 %v1066, %v1420
          %v1437 = vmul.f32 %v1068, %v1421
          %v1438 = vmul.f32 %v1070, %v1422
          %v1439 = vadd.f32 %v1423, %v1424
          %v1440 = vadd.f32 %v1439, %v1425
          %v1441 = vadd.f32 %v1440, %v1426
          %v1442 = vadd.f32 %v1441, %v1427
          %v1443 = vadd.f32 %v1442, %v1428
          %v1444 = vadd.f32 %v1443, %v1429
          %v1445 = vadd.f32 %v1444, %v1430
          %v1446 = vadd.f32 %v1445, %v1431
          %v1447 = vadd.f32 %v1446, %v1432
          %v1448 = vadd.f32 %v1447, %v1433
          %v1449 = vadd.f32 %v1448, %v1434
          %v1450 = vadd.f32 %v1449, %v1435
          %v1451 = vadd.f32 %v1450, %v1436
          %v1452 = vadd.f32 %v1451, %v1437
          %v1453 = vadd.f32 %v1452, %v1438
          %v1454 = vrot.slane %v1453, 4
          %v1455 = vadd.f32 %v1453, %v1454
          %v1456 = vrot.slane %v1455, 2
          %v1457 = vadd.f32 %v1455, %v1456
          %v1458 = vrot.slane %v1457, 1
          %v1459 = vadd.f32 %v1457, %v1458
          %v1460 = vmax.f32 %v1459, 1e-30
          %v1461 = vrcp.pop %v1460
          %v1462 = vmul.f32 %v1461, 0.0078125
          %v1463 = vmul.f32 %v1040, %v1462
          %v1464 = vmul.f32 %v1042, %v1462
          %v1465 = vmul.f32 %v1044, %v1462
          %v1466 = vmul.f32 %v1046, %v1462
          %v1467 = vmul.f32 %v1048, %v1462
          %v1468 = vmul.f32 %v1050, %v1462
          %v1469 = vmul.f32 %v1052, %v1462
          %v1470 = vmul.f32 %v1054, %v1462
          %v1471 = vmul.f32 %v1056, %v1462
          %v1472 = vmul.f32 %v1058, %v1462
          %v1473 = vmul.f32 %v1060, %v1462
          %v1474 = vmul.f32 %v1062, %v1462
          %v1475 = vmul.f32 %v1064, %v1462
          %v1476 = vmul.f32 %v1066, %v1462
          %v1477 = vmul.f32 %v1068, %v1462
          %v1478 = vmul.f32 %v1070, %v1462
          %1479 = vadd.xlane.f32.xlu0 %v1463
          %v1480 = vpop.xlane.xlu0 %1479
          %1481 = vadd.xlane.f32.xlu0 %v1464
          %v1482 = vpop.xlane.xlu0 %1481
          %1483 = vadd.xlane.f32.xlu0 %v1465
          %v1484 = vpop.xlane.xlu0 %1483
          %1485 = vadd.xlane.f32.xlu0 %v1466
          %v1486 = vpop.xlane.xlu0 %1485
          %1487 = vadd.xlane.f32.xlu0 %v1467
          %v1488 = vpop.xlane.xlu0 %1487
          %1489 = vadd.xlane.f32.xlu0 %v1468
          %v1490 = vpop.xlane.xlu0 %1489
          %1491 = vadd.xlane.f32.xlu0 %v1469
          %v1492 = vpop.xlane.xlu0 %1491
          %1493 = vadd.xlane.f32.xlu0 %v1470
          %v1494 = vpop.xlane.xlu0 %1493
          %1495 = vadd.xlane.f32.xlu0 %v1471
          %v1496 = vpop.xlane.xlu0 %1495
          %1497 = vadd.xlane.f32.xlu0 %v1472
          %v1498 = vpop.xlane.xlu0 %1497
          %1499 = vadd.xlane.f32.xlu0 %v1473
          %v1500 = vpop.xlane.xlu0 %1499
          %1501 = vadd.xlane.f32.xlu0 %v1474
          %v1502 = vpop.xlane.xlu0 %1501
          %1503 = vadd.xlane.f32.xlu0 %v1475
          %v1504 = vpop.xlane.xlu0 %1503
          %1505 = vadd.xlane.f32.xlu0 %v1476
          %v1506 = vpop.xlane.xlu0 %1505
          %1507 = vadd.xlane.f32.xlu0 %v1477
          %v1508 = vpop.xlane.xlu0 %1507
          %1509 = vadd.xlane.f32.xlu0 %v1478
          %v1510 = vpop.xlane.xlu0 %1509
          %v1511 = vmax.f32 %v1480, 1e-30
          %v1512 = vmax.f32 %v1482, 1e-30
          %v1513 = vmax.f32 %v1484, 1e-30
          %v1514 = vmax.f32 %v1486, 1e-30
          %v1515 = vmax.f32 %v1488, 1e-30
          %v1516 = vmax.f32 %v1490, 1e-30
          %v1517 = vmax.f32 %v1492, 1e-30
          %v1518 = vmax.f32 %v1494, 1e-30
          %v1519 = vmax.f32 %v1496, 1e-30
          %v1520 = vmax.f32 %v1498, 1e-30
          %v1521 = vmax.f32 %v1500, 1e-30
          %v1522 = vmax.f32 %v1502, 1e-30
          %v1523 = vmax.f32 %v1504, 1e-30
          %v1524 = vmax.f32 %v1506, 1e-30
          %v1525 = vmax.f32 %v1508, 1e-30
          %v1526 = vmax.f32 %v1510, 1e-30
          %v1527 = vrcp.pop %v1511
          %v1528 = vrcp.pop %v1512
          %v1529 = vrcp.pop %v1513
          %v1530 = vrcp.pop %v1514
          %v1531 = vrcp.pop %v1515
          %v1532 = vrcp.pop %v1516
          %v1533 = vrcp.pop %v1517
          %v1534 = vrcp.pop %v1518
          %v1535 = vrcp.pop %v1519
          %v1536 = vrcp.pop %v1520
          %v1537 = vrcp.pop %v1521
          %v1538 = vrcp.pop %v1522
          %v1539 = vrcp.pop %v1523
          %v1540 = vrcp.pop %v1524
          %v1541 = vrcp.pop %v1525
          %v1542 = vrcp.pop %v1526
          %v1543 = vmul.f32 %v1527, 0.0078125
          %v1544 = vmul.f32 %v1528, 0.0078125
          %v1545 = vmul.f32 %v1529, 0.0078125
          %v1546 = vmul.f32 %v1530, 0.0078125
          %v1547 = vmul.f32 %v1531, 0.0078125
          %v1548 = vmul.f32 %v1532, 0.0078125
          %v1549 = vmul.f32 %v1533, 0.0078125
          %v1550 = vmul.f32 %v1534, 0.0078125
          %v1551 = vmul.f32 %v1535, 0.0078125
          %v1552 = vmul.f32 %v1536, 0.0078125
          %v1553 = vmul.f32 %v1537, 0.0078125
          %v1554 = vmul.f32 %v1538, 0.0078125
          %v1555 = vmul.f32 %v1539, 0.0078125
          %v1556 = vmul.f32 %v1540, 0.0078125
          %v1557 = vmul.f32 %v1541, 0.0078125
          %v1558 = vmul.f32 %v1542, 0.0078125
          %v1559 = vmul.f32 %v1040, %v1543
          %v1560 = vmul.f32 %v1042, %v1544
          %v1561 = vmul.f32 %v1044, %v1545
          %v1562 = vmul.f32 %v1046, %v1546
          %v1563 = vmul.f32 %v1048, %v1547
          %v1564 = vmul.f32 %v1050, %v1548
          %v1565 = vmul.f32 %v1052, %v1549
          %v1566 = vmul.f32 %v1054, %v1550
          %v1567 = vmul.f32 %v1056, %v1551
          %v1568 = vmul.f32 %v1058, %v1552
          %v1569 = vmul.f32 %v1060, %v1553
          %v1570 = vmul.f32 %v1062, %v1554
          %v1571 = vmul.f32 %v1064, %v1555
          %v1572 = vmul.f32 %v1066, %v1556
          %v1573 = vmul.f32 %v1068, %v1557
          %v1574 = vmul.f32 %v1070, %v1558
          %v1575 = vadd.f32 %v1559, %v1560
          %v1576 = vadd.f32 %v1575, %v1561
          %v1577 = vadd.f32 %v1576, %v1562
          %v1578 = vadd.f32 %v1577, %v1563
          %v1579 = vadd.f32 %v1578, %v1564
          %v1580 = vadd.f32 %v1579, %v1565
          %v1581 = vadd.f32 %v1580, %v1566
          %v1582 = vadd.f32 %v1581, %v1567
          %v1583 = vadd.f32 %v1582, %v1568
          %v1584 = vadd.f32 %v1583, %v1569
          %v1585 = vadd.f32 %v1584, %v1570
          %v1586 = vadd.f32 %v1585, %v1571
          %v1587 = vadd.f32 %v1586, %v1572
          %v1588 = vadd.f32 %v1587, %v1573
          %v1589 = vadd.f32 %v1588, %v1574
          %v1590 = vrot.slane %v1589, 4
          %v1591 = vadd.f32 %v1589, %v1590
          %v1592 = vrot.slane %v1591, 2
          %v1593 = vadd.f32 %v1591, %v1592
          %v1594 = vrot.slane %v1593, 1
          %v1595 = vadd.f32 %v1593, %v1594
          %v1596 = vmax.f32 %v1595, 1e-30
          %v1597 = vrcp.pop %v1596
          %v1598 = vmul.f32 %v1597, 0.0078125
          %v1599 = vmul.f32 %v1040, %v1598
          %v1600 = vmul.f32 %v1042, %v1598
          %v1601 = vmul.f32 %v1044, %v1598
          %v1602 = vmul.f32 %v1046, %v1598
          %v1603 = vmul.f32 %v1048, %v1598
          %v1604 = vmul.f32 %v1050, %v1598
          %v1605 = vmul.f32 %v1052, %v1598
          %v1606 = vmul.f32 %v1054, %v1598
          %v1607 = vmul.f32 %v1056, %v1598
          %v1608 = vmul.f32 %v1058, %v1598
          %v1609 = vmul.f32 %v1060, %v1598
          %v1610 = vmul.f32 %v1062, %v1598
          %v1611 = vmul.f32 %v1064, %v1598
          %v1612 = vmul.f32 %v1066, %v1598
          %v1613 = vmul.f32 %v1068, %v1598
          %v1614 = vmul.f32 %v1070, %v1598
          %1615 = vadd.xlane.f32.xlu0 %v1599
          %v1616 = vpop.xlane.xlu0 %1615
          %1617 = vadd.xlane.f32.xlu0 %v1600
          %v1618 = vpop.xlane.xlu0 %1617
          %1619 = vadd.xlane.f32.xlu0 %v1601
          %v1620 = vpop.xlane.xlu0 %1619
          %1621 = vadd.xlane.f32.xlu0 %v1602
          %v1622 = vpop.xlane.xlu0 %1621
          %1623 = vadd.xlane.f32.xlu0 %v1603
          %v1624 = vpop.xlane.xlu0 %1623
          %1625 = vadd.xlane.f32.xlu0 %v1604
          %v1626 = vpop.xlane.xlu0 %1625
          %1627 = vadd.xlane.f32.xlu0 %v1605
          %v1628 = vpop.xlane.xlu0 %1627
          %1629 = vadd.xlane.f32.xlu0 %v1606
          %v1630 = vpop.xlane.xlu0 %1629
          %1631 = vadd.xlane.f32.xlu0 %v1607
          %v1632 = vpop.xlane.xlu0 %1631
          %1633 = vadd.xlane.f32.xlu0 %v1608
          %v1634 = vpop.xlane.xlu0 %1633
          %1635 = vadd.xlane.f32.xlu0 %v1609
          %v1636 = vpop.xlane.xlu0 %1635
          %1637 = vadd.xlane.f32.xlu0 %v1610
          %v1638 = vpop.xlane.xlu0 %1637
          %1639 = vadd.xlane.f32.xlu0 %v1611
          %v1640 = vpop.xlane.xlu0 %1639
          %1641 = vadd.xlane.f32.xlu0 %v1612
          %v1642 = vpop.xlane.xlu0 %1641
          %1643 = vadd.xlane.f32.xlu0 %v1613
          %v1644 = vpop.xlane.xlu0 %1643
          %1645 = vadd.xlane.f32.xlu0 %v1614
          %v1646 = vpop.xlane.xlu0 %1645
          %v1647 = vmax.f32 %v1616, 1e-30
          %v1648 = vmax.f32 %v1618, 1e-30
          %v1649 = vmax.f32 %v1620, 1e-30
          %v1650 = vmax.f32 %v1622, 1e-30
          %v1651 = vmax.f32 %v1624, 1e-30
          %v1652 = vmax.f32 %v1626, 1e-30
          %v1653 = vmax.f32 %v1628, 1e-30
          %v1654 = vmax.f32 %v1630, 1e-30
          %v1655 = vmax.f32 %v1632, 1e-30
          %v1656 = vmax.f32 %v1634, 1e-30
          %v1657 = vmax.f32 %v1636, 1e-30
          %v1658 = vmax.f32 %v1638, 1e-30
          %v1659 = vmax.f32 %v1640, 1e-30
          %v1660 = vmax.f32 %v1642, 1e-30
          %v1661 = vmax.f32 %v1644, 1e-30
          %v1662 = vmax.f32 %v1646, 1e-30
          %v1663 = vrcp.pop %v1647
          %v1664 = vrcp.pop %v1648
          %v1665 = vrcp.pop %v1649
          %v1666 = vrcp.pop %v1650
          %v1667 = vrcp.pop %v1651
          %v1668 = vrcp.pop %v1652
          %v1669 = vrcp.pop %v1653
          %v1670 = vrcp.pop %v1654
          %v1671 = vrcp.pop %v1655
          %v1672 = vrcp.pop %v1656
          %v1673 = vrcp.pop %v1657
          %v1674 = vrcp.pop %v1658
          %v1675 = vrcp.pop %v1659
          %v1676 = vrcp.pop %v1660
          %v1677 = vrcp.pop %v1661
          %v1678 = vrcp.pop %v1662
          %v1679 = vmul.f32 %v1663, 0.0078125
          %v1680 = vmul.f32 %v1664, 0.0078125
          %v1681 = vmul.f32 %v1665, 0.0078125
          %v1682 = vmul.f32 %v1666, 0.0078125
          %v1683 = vmul.f32 %v1667, 0.0078125
          %v1684 = vmul.f32 %v1668, 0.0078125
          %v1685 = vmul.f32 %v1669, 0.0078125
          %v1686 = vmul.f32 %v1670, 0.0078125
          %v1687 = vmul.f32 %v1671, 0.0078125
          %v1688 = vmul.f32 %v1672, 0.0078125
          %v1689 = vmul.f32 %v1673, 0.0078125
          %v1690 = vmul.f32 %v1674, 0.0078125
          %v1691 = vmul.f32 %v1675, 0.0078125
          %v1692 = vmul.f32 %v1676, 0.0078125
          %v1693 = vmul.f32 %v1677, 0.0078125
          %v1694 = vmul.f32 %v1678, 0.0078125
          %v1695 = vmul.f32 %v1040, %v1679
          %v1696 = vmul.f32 %v1042, %v1680
          %v1697 = vmul.f32 %v1044, %v1681
          %v1698 = vmul.f32 %v1046, %v1682
          %v1699 = vmul.f32 %v1048, %v1683
          %v1700 = vmul.f32 %v1050, %v1684
          %v1701 = vmul.f32 %v1052, %v1685
          %v1702 = vmul.f32 %v1054, %v1686
          %v1703 = vmul.f32 %v1056, %v1687
          %v1704 = vmul.f32 %v1058, %v1688
          %v1705 = vmul.f32 %v1060, %v1689
          %v1706 = vmul.f32 %v1062, %v1690
          %v1707 = vmul.f32 %v1064, %v1691
          %v1708 = vmul.f32 %v1066, %v1692
          %v1709 = vmul.f32 %v1068, %v1693
          %v1710 = vmul.f32 %v1070, %v1694
          %v1711 = vadd.f32 %v1695, %v1696
          %v1712 = vadd.f32 %v1711, %v1697
          %v1713 = vadd.f32 %v1712, %v1698
          %v1714 = vadd.f32 %v1713, %v1699
          %v1715 = vadd.f32 %v1714, %v1700
          %v1716 = vadd.f32 %v1715, %v1701
          %v1717 = vadd.f32 %v1716, %v1702
          %v1718 = vadd.f32 %v1717, %v1703
          %v1719 = vadd.f32 %v1718, %v1704
          %v1720 = vadd.f32 %v1719, %v1705
          %v1721 = vadd.f32 %v1720, %v1706
          %v1722 = vadd.f32 %v1721, %v1707
          %v1723 = vadd.f32 %v1722, %v1708
          %v1724 = vadd.f32 %v1723, %v1709
          %v1725 = vadd.f32 %v1724, %v1710
          %v1726 = vrot.slane %v1725, 4
          %v1727 = vadd.f32 %v1725, %v1726
          %v1728 = vrot.slane %v1727, 2
          %v1729 = vadd.f32 %v1727, %v1728
          %v1730 = vrot.slane %v1729, 1
          %v1731 = vadd.f32 %v1729, %v1730
          %v1732 = vmax.f32 %v1731, 1e-30
          %v1733 = vrcp.pop %v1732
          %v1734 = vmul.f32 %v1733, 0.0078125
          %v1735 = vmul.f32 %v1040, %v1734
          %v1736 = vmul.f32 %v1042, %v1734
          %v1737 = vmul.f32 %v1044, %v1734
          %v1738 = vmul.f32 %v1046, %v1734
          %v1739 = vmul.f32 %v1048, %v1734
          %v1740 = vmul.f32 %v1050, %v1734
          %v1741 = vmul.f32 %v1052, %v1734
          %v1742 = vmul.f32 %v1054, %v1734
          %v1743 = vmul.f32 %v1056, %v1734
          %v1744 = vmul.f32 %v1058, %v1734
          %v1745 = vmul.f32 %v1060, %v1734
          %v1746 = vmul.f32 %v1062, %v1734
          %v1747 = vmul.f32 %v1064, %v1734
          %v1748 = vmul.f32 %v1066, %v1734
          %v1749 = vmul.f32 %v1068, %v1734
          %v1750 = vmul.f32 %v1070, %v1734
          %1751 = vadd.xlane.f32.xlu0 %v1735
          %v1752 = vpop.xlane.xlu0 %1751
          %1753 = vadd.xlane.f32.xlu0 %v1736
          %v1754 = vpop.xlane.xlu0 %1753
          %1755 = vadd.xlane.f32.xlu0 %v1737
          %v1756 = vpop.xlane.xlu0 %1755
          %1757 = vadd.xlane.f32.xlu0 %v1738
          %v1758 = vpop.xlane.xlu0 %1757
          %1759 = vadd.xlane.f32.xlu0 %v1739
          %v1760 = vpop.xlane.xlu0 %1759
          %1761 = vadd.xlane.f32.xlu0 %v1740
          %v1762 = vpop.xlane.xlu0 %1761
          %1763 = vadd.xlane.f32.xlu0 %v1741
          %v1764 = vpop.xlane.xlu0 %1763
          %1765 = vadd.xlane.f32.xlu0 %v1742
          %v1766 = vpop.xlane.xlu0 %1765
          %1767 = vadd.xlane.f32.xlu0 %v1743
          %v1768 = vpop.xlane.xlu0 %1767
          %1769 = vadd.xlane.f32.xlu0 %v1744
          %v1770 = vpop.xlane.xlu0 %1769
          %1771 = vadd.xlane.f32.xlu0 %v1745
          %v1772 = vpop.xlane.xlu0 %1771
          %1773 = vadd.xlane.f32.xlu0 %v1746
          %v1774 = vpop.xlane.xlu0 %1773
          %1775 = vadd.xlane.f32.xlu0 %v1747
          %v1776 = vpop.xlane.xlu0 %1775
          %1777 = vadd.xlane.f32.xlu0 %v1748
          %v1778 = vpop.xlane.xlu0 %1777
          %1779 = vadd.xlane.f32.xlu0 %v1749
          %v1780 = vpop.xlane.xlu0 %1779
          %1781 = vadd.xlane.f32.xlu0 %v1750
          %v1782 = vpop.xlane.xlu0 %1781
          %v1783 = vmax.f32 %v1752, 1e-30
          %v1784 = vmax.f32 %v1754, 1e-30
          %v1785 = vmax.f32 %v1756, 1e-30
          %v1786 = vmax.f32 %v1758, 1e-30
          %v1787 = vmax.f32 %v1760, 1e-30
          %v1788 = vmax.f32 %v1762, 1e-30
          %v1789 = vmax.f32 %v1764, 1e-30
          %v1790 = vmax.f32 %v1766, 1e-30
          %v1791 = vmax.f32 %v1768, 1e-30
          %v1792 = vmax.f32 %v1770, 1e-30
          %v1793 = vmax.f32 %v1772, 1e-30
          %v1794 = vmax.f32 %v1774, 1e-30
          %v1795 = vmax.f32 %v1776, 1e-30
          %v1796 = vmax.f32 %v1778, 1e-30
          %v1797 = vmax.f32 %v1780, 1e-30
          %v1798 = vmax.f32 %v1782, 1e-30
          %v1799 = vrcp.pop %v1783
          %v1800 = vrcp.pop %v1784
          %v1801 = vrcp.pop %v1785
          %v1802 = vrcp.pop %v1786
          %v1803 = vrcp.pop %v1787
          %v1804 = vrcp.pop %v1788
          %v1805 = vrcp.pop %v1789
          %v1806 = vrcp.pop %v1790
          %v1807 = vrcp.pop %v1791
          %v1808 = vrcp.pop %v1792
          %v1809 = vrcp.pop %v1793
          %v1810 = vrcp.pop %v1794
          %v1811 = vrcp.pop %v1795
          %v1812 = vrcp.pop %v1796
          %v1813 = vrcp.pop %v1797
          %v1814 = vrcp.pop %v1798
          %v1815 = vmul.f32 %v1799, 0.0078125
          %v1816 = vmul.f32 %v1800, 0.0078125
          %v1817 = vmul.f32 %v1801, 0.0078125
          %v1818 = vmul.f32 %v1802, 0.0078125
          %v1819 = vmul.f32 %v1803, 0.0078125
          %v1820 = vmul.f32 %v1804, 0.0078125
          %v1821 = vmul.f32 %v1805, 0.0078125
          %v1822 = vmul.f32 %v1806, 0.0078125
          %v1823 = vmul.f32 %v1807, 0.0078125
          %v1824 = vmul.f32 %v1808, 0.0078125
          %v1825 = vmul.f32 %v1809, 0.0078125
          %v1826 = vmul.f32 %v1810, 0.0078125
          %v1827 = vmul.f32 %v1811, 0.0078125
          %v1828 = vmul.f32 %v1812, 0.0078125
          %v1829 = vmul.f32 %v1813, 0.0078125
          %v1830 = vmul.f32 %v1814, 0.0078125
          %v1831 = vmul.f32 %v1040, %v1815
          %v1832 = vmul.f32 %v1042, %v1816
          %v1833 = vmul.f32 %v1044, %v1817
          %v1834 = vmul.f32 %v1046, %v1818
          %v1835 = vmul.f32 %v1048, %v1819
          %v1836 = vmul.f32 %v1050, %v1820
          %v1837 = vmul.f32 %v1052, %v1821
          %v1838 = vmul.f32 %v1054, %v1822
          %v1839 = vmul.f32 %v1056, %v1823
          %v1840 = vmul.f32 %v1058, %v1824
          %v1841 = vmul.f32 %v1060, %v1825
          %v1842 = vmul.f32 %v1062, %v1826
          %v1843 = vmul.f32 %v1064, %v1827
          %v1844 = vmul.f32 %v1066, %v1828
          %v1845 = vmul.f32 %v1068, %v1829
          %v1846 = vmul.f32 %v1070, %v1830
          %v1847 = vadd.f32 %v1831, %v1832
          %v1848 = vadd.f32 %v1847, %v1833
          %v1849 = vadd.f32 %v1848, %v1834
          %v1850 = vadd.f32 %v1849, %v1835
          %v1851 = vadd.f32 %v1850, %v1836
          %v1852 = vadd.f32 %v1851, %v1837
          %v1853 = vadd.f32 %v1852, %v1838
          %v1854 = vadd.f32 %v1853, %v1839
          %v1855 = vadd.f32 %v1854, %v1840
          %v1856 = vadd.f32 %v1855, %v1841
          %v1857 = vadd.f32 %v1856, %v1842
          %v1858 = vadd.f32 %v1857, %v1843
          %v1859 = vadd.f32 %v1858, %v1844
          %v1860 = vadd.f32 %v1859, %v1845
          %v1861 = vadd.f32 %v1860, %v1846
          %v1862 = vrot.slane %v1861, 4
          %v1863 = vadd.f32 %v1861, %v1862
          %v1864 = vrot.slane %v1863, 2
          %v1865 = vadd.f32 %v1863, %v1864
          %v1866 = vrot.slane %v1865, 1
          %v1867 = vadd.f32 %v1865, %v1866
          %v1868 = vmax.f32 %v1867, 1e-30
          %v1869 = vrcp.pop %v1868
          %v1870 = vmul.f32 %v1869, 0.0078125
          %v1871 = vmul.f32 %v1040, %v1870
          %v1872 = vmul.f32 %v1042, %v1870
          %v1873 = vmul.f32 %v1044, %v1870
          %v1874 = vmul.f32 %v1046, %v1870
          %v1875 = vmul.f32 %v1048, %v1870
          %v1876 = vmul.f32 %v1050, %v1870
          %v1877 = vmul.f32 %v1052, %v1870
          %v1878 = vmul.f32 %v1054, %v1870
          %v1879 = vmul.f32 %v1056, %v1870
          %v1880 = vmul.f32 %v1058, %v1870
          %v1881 = vmul.f32 %v1060, %v1870
          %v1882 = vmul.f32 %v1062, %v1870
          %v1883 = vmul.f32 %v1064, %v1870
          %v1884 = vmul.f32 %v1066, %v1870
          %v1885 = vmul.f32 %v1068, %v1870
          %v1886 = vmul.f32 %v1070, %v1870
          %1887 = vadd.xlane.f32.xlu0 %v1871
          %v1888 = vpop.xlane.xlu0 %1887
          %1889 = vadd.xlane.f32.xlu0 %v1872
          %v1890 = vpop.xlane.xlu0 %1889
          %1891 = vadd.xlane.f32.xlu0 %v1873
          %v1892 = vpop.xlane.xlu0 %1891
          %1893 = vadd.xlane.f32.xlu0 %v1874
          %v1894 = vpop.xlane.xlu0 %1893
          %1895 = vadd.xlane.f32.xlu0 %v1875
          %v1896 = vpop.xlane.xlu0 %1895
          %1897 = vadd.xlane.f32.xlu0 %v1876
          %v1898 = vpop.xlane.xlu0 %1897
          %1899 = vadd.xlane.f32.xlu0 %v1877
          %v1900 = vpop.xlane.xlu0 %1899
          %1901 = vadd.xlane.f32.xlu0 %v1878
          %v1902 = vpop.xlane.xlu0 %1901
          %1903 = vadd.xlane.f32.xlu0 %v1879
          %v1904 = vpop.xlane.xlu0 %1903
          %1905 = vadd.xlane.f32.xlu0 %v1880
          %v1906 = vpop.xlane.xlu0 %1905
          %1907 = vadd.xlane.f32.xlu0 %v1881
          %v1908 = vpop.xlane.xlu0 %1907
          %1909 = vadd.xlane.f32.xlu0 %v1882
          %v1910 = vpop.xlane.xlu0 %1909
          %1911 = vadd.xlane.f32.xlu0 %v1883
          %v1912 = vpop.xlane.xlu0 %1911
          %1913 = vadd.xlane.f32.xlu0 %v1884
          %v1914 = vpop.xlane.xlu0 %1913
          %1915 = vadd.xlane.f32.xlu0 %v1885
          %v1916 = vpop.xlane.xlu0 %1915
          %1917 = vadd.xlane.f32.xlu0 %v1886
          %v1918 = vpop.xlane.xlu0 %1917
          %v1919 = vmax.f32 %v1888, 1e-30
          %v1920 = vmax.f32 %v1890, 1e-30
          %v1921 = vmax.f32 %v1892, 1e-30
          %v1922 = vmax.f32 %v1894, 1e-30
          %v1923 = vmax.f32 %v1896, 1e-30
          %v1924 = vmax.f32 %v1898, 1e-30
          %v1925 = vmax.f32 %v1900, 1e-30
          %v1926 = vmax.f32 %v1902, 1e-30
          %v1927 = vmax.f32 %v1904, 1e-30
          %v1928 = vmax.f32 %v1906, 1e-30
          %v1929 = vmax.f32 %v1908, 1e-30
          %v1930 = vmax.f32 %v1910, 1e-30
          %v1931 = vmax.f32 %v1912, 1e-30
          %v1932 = vmax.f32 %v1914, 1e-30
          %v1933 = vmax.f32 %v1916, 1e-30
          %v1934 = vmax.f32 %v1918, 1e-30
          %v1935 = vrcp.pop %v1919
          %v1936 = vrcp.pop %v1920
          %v1937 = vrcp.pop %v1921
          %v1938 = vrcp.pop %v1922
          %v1939 = vrcp.pop %v1923
          %v1940 = vrcp.pop %v1924
          %v1941 = vrcp.pop %v1925
          %v1942 = vrcp.pop %v1926
          %v1943 = vrcp.pop %v1927
          %v1944 = vrcp.pop %v1928
          %v1945 = vrcp.pop %v1929
          %v1946 = vrcp.pop %v1930
          %v1947 = vrcp.pop %v1931
          %v1948 = vrcp.pop %v1932
          %v1949 = vrcp.pop %v1933
          %v1950 = vrcp.pop %v1934
          %v1951 = vmul.f32 %v1935, 0.0078125
          %v1952 = vmul.f32 %v1936, 0.0078125
          %v1953 = vmul.f32 %v1937, 0.0078125
          %v1954 = vmul.f32 %v1938, 0.0078125
          %v1955 = vmul.f32 %v1939, 0.0078125
          %v1956 = vmul.f32 %v1940, 0.0078125
          %v1957 = vmul.f32 %v1941, 0.0078125
          %v1958 = vmul.f32 %v1942, 0.0078125
          %v1959 = vmul.f32 %v1943, 0.0078125
          %v1960 = vmul.f32 %v1944, 0.0078125
          %v1961 = vmul.f32 %v1945, 0.0078125
          %v1962 = vmul.f32 %v1946, 0.0078125
          %v1963 = vmul.f32 %v1947, 0.0078125
          %v1964 = vmul.f32 %v1948, 0.0078125
          %v1965 = vmul.f32 %v1949, 0.0078125
          %v1966 = vmul.f32 %v1950, 0.0078125
          %v1967 = vmul.f32 %v1040, %v1951
          %v1968 = vmul.f32 %v1042, %v1952
          %v1969 = vmul.f32 %v1044, %v1953
          %v1970 = vmul.f32 %v1046, %v1954
          %v1971 = vmul.f32 %v1048, %v1955
          %v1972 = vmul.f32 %v1050, %v1956
          %v1973 = vmul.f32 %v1052, %v1957
          %v1974 = vmul.f32 %v1054, %v1958
          %v1975 = vmul.f32 %v1056, %v1959
          %v1976 = vmul.f32 %v1058, %v1960
          %v1977 = vmul.f32 %v1060, %v1961
          %v1978 = vmul.f32 %v1062, %v1962
          %v1979 = vmul.f32 %v1064, %v1963
          %v1980 = vmul.f32 %v1066, %v1964
          %v1981 = vmul.f32 %v1068, %v1965
          %v1982 = vmul.f32 %v1070, %v1966
          %v1983 = vadd.f32 %v1967, %v1968
          %v1984 = vadd.f32 %v1983, %v1969
          %v1985 = vadd.f32 %v1984, %v1970
          %v1986 = vadd.f32 %v1985, %v1971
          %v1987 = vadd.f32 %v1986, %v1972
          %v1988 = vadd.f32 %v1987, %v1973
          %v1989 = vadd.f32 %v1988, %v1974
          %v1990 = vadd.f32 %v1989, %v1975
          %v1991 = vadd.f32 %v1990, %v1976
          %v1992 = vadd.f32 %v1991, %v1977
          %v1993 = vadd.f32 %v1992, %v1978
          %v1994 = vadd.f32 %v1993, %v1979
          %v1995 = vadd.f32 %v1994, %v1980
          %v1996 = vadd.f32 %v1995, %v1981
          %v1997 = vadd.f32 %v1996, %v1982
          %v1998 = vrot.slane %v1997, 4
          %v1999 = vadd.f32 %v1997, %v1998
          %v2000 = vrot.slane %v1999, 2
          %v2001 = vadd.f32 %v1999, %v2000
          %v2002 = vrot.slane %v2001, 1
          %v2003 = vadd.f32 %v2001, %v2002
          %v2004 = vmax.f32 %v2003, 1e-30
          %v2005 = vrcp.pop %v2004
          %v2006 = vmul.f32 %v2005, 0.0078125
          %v2007 = vmul.f32 %v1040, %v2006
          %v2008 = vmul.f32 %v1042, %v2006
          %v2009 = vmul.f32 %v1044, %v2006
          %v2010 = vmul.f32 %v1046, %v2006
          %v2011 = vmul.f32 %v1048, %v2006
          %v2012 = vmul.f32 %v1050, %v2006
          %v2013 = vmul.f32 %v1052, %v2006
          %v2014 = vmul.f32 %v1054, %v2006
          %v2015 = vmul.f32 %v1056, %v2006
          %v2016 = vmul.f32 %v1058, %v2006
          %v2017 = vmul.f32 %v1060, %v2006
          %v2018 = vmul.f32 %v1062, %v2006
          %v2019 = vmul.f32 %v1064, %v2006
          %v2020 = vmul.f32 %v1066, %v2006
          %v2021 = vmul.f32 %v1068, %v2006
          %v2022 = vmul.f32 %v1070, %v2006
          %2023 = vadd.xlane.f32.xlu0 %v2007
          %v2024 = vpop.xlane.xlu0 %2023
          %2025 = vadd.xlane.f32.xlu0 %v2008
          %v2026 = vpop.xlane.xlu0 %2025
          %2027 = vadd.xlane.f32.xlu0 %v2009
          %v2028 = vpop.xlane.xlu0 %2027
          %2029 = vadd.xlane.f32.xlu0 %v2010
          %v2030 = vpop.xlane.xlu0 %2029
          %2031 = vadd.xlane.f32.xlu0 %v2011
          %v2032 = vpop.xlane.xlu0 %2031
          %2033 = vadd.xlane.f32.xlu0 %v2012
          %v2034 = vpop.xlane.xlu0 %2033
          %2035 = vadd.xlane.f32.xlu0 %v2013
          %v2036 = vpop.xlane.xlu0 %2035
          %2037 = vadd.xlane.f32.xlu0 %v2014
          %v2038 = vpop.xlane.xlu0 %2037
          %2039 = vadd.xlane.f32.xlu0 %v2015
          %v2040 = vpop.xlane.xlu0 %2039
          %2041 = vadd.xlane.f32.xlu0 %v2016
          %v2042 = vpop.xlane.xlu0 %2041
          %2043 = vadd.xlane.f32.xlu0 %v2017
          %v2044 = vpop.xlane.xlu0 %2043
          %2045 = vadd.xlane.f32.xlu0 %v2018
          %v2046 = vpop.xlane.xlu0 %2045
          %2047 = vadd.xlane.f32.xlu0 %v2019
          %v2048 = vpop.xlane.xlu0 %2047
          %2049 = vadd.xlane.f32.xlu0 %v2020
          %v2050 = vpop.xlane.xlu0 %2049
          %2051 = vadd.xlane.f32.xlu0 %v2021
          %v2052 = vpop.xlane.xlu0 %2051
          %2053 = vadd.xlane.f32.xlu0 %v2022
          %v2054 = vpop.xlane.xlu0 %2053
          %v2055 = vmax.f32 %v2024, 1e-30
          %v2056 = vmax.f32 %v2026, 1e-30
          %v2057 = vmax.f32 %v2028, 1e-30
          %v2058 = vmax.f32 %v2030, 1e-30
          %v2059 = vmax.f32 %v2032, 1e-30
          %v2060 = vmax.f32 %v2034, 1e-30
          %v2061 = vmax.f32 %v2036, 1e-30
          %v2062 = vmax.f32 %v2038, 1e-30
          %v2063 = vmax.f32 %v2040, 1e-30
          %v2064 = vmax.f32 %v2042, 1e-30
          %v2065 = vmax.f32 %v2044, 1e-30
          %v2066 = vmax.f32 %v2046, 1e-30
          %v2067 = vmax.f32 %v2048, 1e-30
          %v2068 = vmax.f32 %v2050, 1e-30
          %v2069 = vmax.f32 %v2052, 1e-30
          %v2070 = vmax.f32 %v2054, 1e-30
          %v2071 = vrcp.pop %v2055
          %v2072 = vrcp.pop %v2056
          %v2073 = vrcp.pop %v2057
          %v2074 = vrcp.pop %v2058
          %v2075 = vrcp.pop %v2059
          %v2076 = vrcp.pop %v2060
          %v2077 = vrcp.pop %v2061
          %v2078 = vrcp.pop %v2062
          %v2079 = vrcp.pop %v2063
          %v2080 = vrcp.pop %v2064
          %v2081 = vrcp.pop %v2065
          %v2082 = vrcp.pop %v2066
          %v2083 = vrcp.pop %v2067
          %v2084 = vrcp.pop %v2068
          %v2085 = vrcp.pop %v2069
          %v2086 = vrcp.pop %v2070
          %v2087 = vmul.f32 %v2071, 0.0078125
          %v2088 = vmul.f32 %v2072, 0.0078125
          %v2089 = vmul.f32 %v2073, 0.0078125
          %v2090 = vmul.f32 %v2074, 0.0078125
          %v2091 = vmul.f32 %v2075, 0.0078125
          %v2092 = vmul.f32 %v2076, 0.0078125
          %v2093 = vmul.f32 %v2077, 0.0078125
          %v2094 = vmul.f32 %v2078, 0.0078125
          %v2095 = vmul.f32 %v2079, 0.0078125
          %v2096 = vmul.f32 %v2080, 0.0078125
          %v2097 = vmul.f32 %v2081, 0.0078125
          %v2098 = vmul.f32 %v2082, 0.0078125
          %v2099 = vmul.f32 %v2083, 0.0078125
          %v2100 = vmul.f32 %v2084, 0.0078125
          %v2101 = vmul.f32 %v2085, 0.0078125
          %v2102 = vmul.f32 %v2086, 0.0078125
          %v2103 = vmul.f32 %v1040, %v2087
          %v2104 = vmul.f32 %v1042, %v2088
          %v2105 = vmul.f32 %v1044, %v2089
          %v2106 = vmul.f32 %v1046, %v2090
          %v2107 = vmul.f32 %v1048, %v2091
          %v2108 = vmul.f32 %v1050, %v2092
          %v2109 = vmul.f32 %v1052, %v2093
          %v2110 = vmul.f32 %v1054, %v2094
          %v2111 = vmul.f32 %v1056, %v2095
          %v2112 = vmul.f32 %v1058, %v2096
          %v2113 = vmul.f32 %v1060, %v2097
          %v2114 = vmul.f32 %v1062, %v2098
          %v2115 = vmul.f32 %v1064, %v2099
          %v2116 = vmul.f32 %v1066, %v2100
          %v2117 = vmul.f32 %v1068, %v2101
          %v2118 = vmul.f32 %v1070, %v2102
          %v2119 = vadd.f32 %v2103, %v2104
          %v2120 = vadd.f32 %v2119, %v2105
          %v2121 = vadd.f32 %v2120, %v2106
          %v2122 = vadd.f32 %v2121, %v2107
          %v2123 = vadd.f32 %v2122, %v2108
          %v2124 = vadd.f32 %v2123, %v2109
          %v2125 = vadd.f32 %v2124, %v2110
          %v2126 = vadd.f32 %v2125, %v2111
          %v2127 = vadd.f32 %v2126, %v2112
          %v2128 = vadd.f32 %v2127, %v2113
          %v2129 = vadd.f32 %v2128, %v2114
          %v2130 = vadd.f32 %v2129, %v2115
          %v2131 = vadd.f32 %v2130, %v2116
          %v2132 = vadd.f32 %v2131, %v2117
          %v2133 = vadd.f32 %v2132, %v2118
          %v2134 = vrot.slane %v2133, 4
          %v2135 = vadd.f32 %v2133, %v2134
          %v2136 = vrot.slane %v2135, 2
          %v2137 = vadd.f32 %v2135, %v2136
          %v2138 = vrot.slane %v2137, 1
          %v2139 = vadd.f32 %v2137, %v2138
          %v2140 = vmax.f32 %v2139, 1e-30
          %v2141 = vrcp.pop %v2140
          %v2142 = vmul.f32 %v2141, 0.0078125
          %v2143 = vmul.f32 %v1040, %v2142
          %v2144 = vmul.f32 %v1042, %v2142
          %v2145 = vmul.f32 %v1044, %v2142
          %v2146 = vmul.f32 %v1046, %v2142
          %v2147 = vmul.f32 %v1048, %v2142
          %v2148 = vmul.f32 %v1050, %v2142
          %v2149 = vmul.f32 %v1052, %v2142
          %v2150 = vmul.f32 %v1054, %v2142
          %v2151 = vmul.f32 %v1056, %v2142
          %v2152 = vmul.f32 %v1058, %v2142
          %v2153 = vmul.f32 %v1060, %v2142
          %v2154 = vmul.f32 %v1062, %v2142
          %v2155 = vmul.f32 %v1064, %v2142
          %v2156 = vmul.f32 %v1066, %v2142
          %v2157 = vmul.f32 %v1068, %v2142
          %v2158 = vmul.f32 %v1070, %v2142
          %2159 = vadd.xlane.f32.xlu0 %v2143
          %v2160 = vpop.xlane.xlu0 %2159
          %2161 = vadd.xlane.f32.xlu0 %v2144
          %v2162 = vpop.xlane.xlu0 %2161
          %2163 = vadd.xlane.f32.xlu0 %v2145
          %v2164 = vpop.xlane.xlu0 %2163
          %2165 = vadd.xlane.f32.xlu0 %v2146
          %v2166 = vpop.xlane.xlu0 %2165
          %2167 = vadd.xlane.f32.xlu0 %v2147
          %v2168 = vpop.xlane.xlu0 %2167
          %2169 = vadd.xlane.f32.xlu0 %v2148
          %v2170 = vpop.xlane.xlu0 %2169
          %2171 = vadd.xlane.f32.xlu0 %v2149
          %v2172 = vpop.xlane.xlu0 %2171
          %2173 = vadd.xlane.f32.xlu0 %v2150
          %v2174 = vpop.xlane.xlu0 %2173
          %2175 = vadd.xlane.f32.xlu0 %v2151
          %v2176 = vpop.xlane.xlu0 %2175
          %2177 = vadd.xlane.f32.xlu0 %v2152
          %v2178 = vpop.xlane.xlu0 %2177
          %2179 = vadd.xlane.f32.xlu0 %v2153
          %v2180 = vpop.xlane.xlu0 %2179
          %2181 = vadd.xlane.f32.xlu0 %v2154
          %v2182 = vpop.xlane.xlu0 %2181
          %2183 = vadd.xlane.f32.xlu0 %v2155
          %v2184 = vpop.xlane.xlu0 %2183
          %2185 = vadd.xlane.f32.xlu0 %v2156
          %v2186 = vpop.xlane.xlu0 %2185
          %2187 = vadd.xlane.f32.xlu0 %v2157
          %v2188 = vpop.xlane.xlu0 %2187
          %2189 = vadd.xlane.f32.xlu0 %v2158
          %v2190 = vpop.xlane.xlu0 %2189
          %v2191 = vmax.f32 %v2160, 1e-30
          %v2192 = vmax.f32 %v2162, 1e-30
          %v2193 = vmax.f32 %v2164, 1e-30
          %v2194 = vmax.f32 %v2166, 1e-30
          %v2195 = vmax.f32 %v2168, 1e-30
          %v2196 = vmax.f32 %v2170, 1e-30
          %v2197 = vmax.f32 %v2172, 1e-30
          %v2198 = vmax.f32 %v2174, 1e-30
          %v2199 = vmax.f32 %v2176, 1e-30
          %v2200 = vmax.f32 %v2178, 1e-30
          %v2201 = vmax.f32 %v2180, 1e-30
          %v2202 = vmax.f32 %v2182, 1e-30
          %v2203 = vmax.f32 %v2184, 1e-30
          %v2204 = vmax.f32 %v2186, 1e-30
          %v2205 = vmax.f32 %v2188, 1e-30
          %v2206 = vmax.f32 %v2190, 1e-30
          %v2207 = vrcp.pop %v2191
          %v2208 = vrcp.pop %v2192
          %v2209 = vrcp.pop %v2193
          %v2210 = vrcp.pop %v2194
          %v2211 = vrcp.pop %v2195
          %v2212 = vrcp.pop %v2196
          %v2213 = vrcp.pop %v2197
          %v2214 = vrcp.pop %v2198
          %v2215 = vrcp.pop %v2199
          %v2216 = vrcp.pop %v2200
          %v2217 = vrcp.pop %v2201
          %v2218 = vrcp.pop %v2202
          %v2219 = vrcp.pop %v2203
          %v2220 = vrcp.pop %v2204
          %v2221 = vrcp.pop %v2205
          %v2222 = vrcp.pop %v2206
          %v2223 = vmul.f32 %v2207, 0.0078125
          %v2224 = vmul.f32 %v2208, 0.0078125
          %v2225 = vmul.f32 %v2209, 0.0078125
          %v2226 = vmul.f32 %v2210, 0.0078125
          %v2227 = vmul.f32 %v2211, 0.0078125
          %v2228 = vmul.f32 %v2212, 0.0078125
          %v2229 = vmul.f32 %v2213, 0.0078125
          %v2230 = vmul.f32 %v2214, 0.0078125
          %v2231 = vmul.f32 %v2215, 0.0078125
          %v2232 = vmul.f32 %v2216, 0.0078125
          %v2233 = vmul.f32 %v2217, 0.0078125
          %v2234 = vmul.f32 %v2218, 0.0078125
          %v2235 = vmul.f32 %v2219, 0.0078125
          %v2236 = vmul.f32 %v2220, 0.0078125
          %v2237 = vmul.f32 %v2221, 0.0078125
          %v2238 = vmul.f32 %v2222, 0.0078125
          %v2239 = vmul.f32 %v1040, %v2223
          %v2240 = vmul.f32 %v1042, %v2224
          %v2241 = vmul.f32 %v1044, %v2225
          %v2242 = vmul.f32 %v1046, %v2226
          %v2243 = vmul.f32 %v1048, %v2227
          %v2244 = vmul.f32 %v1050, %v2228
          %v2245 = vmul.f32 %v1052, %v2229
          %v2246 = vmul.f32 %v1054, %v2230
          %v2247 = vmul.f32 %v1056, %v2231
          %v2248 = vmul.f32 %v1058, %v2232
          %v2249 = vmul.f32 %v1060, %v2233
          %v2250 = vmul.f32 %v1062, %v2234
          %v2251 = vmul.f32 %v1064, %v2235
          %v2252 = vmul.f32 %v1066, %v2236
          %v2253 = vmul.f32 %v1068, %v2237
          %v2254 = vmul.f32 %v1070, %v2238
          %v2255 = vadd.f32 %v2239, %v2240
          %v2256 = vadd.f32 %v2255, %v2241
          %v2257 = vadd.f32 %v2256, %v2242
          %v2258 = vadd.f32 %v2257, %v2243
          %v2259 = vadd.f32 %v2258, %v2244
          %v2260 = vadd.f32 %v2259, %v2245
          %v2261 = vadd.f32 %v2260, %v2246
          %v2262 = vadd.f32 %v2261, %v2247
          %v2263 = vadd.f32 %v2262, %v2248
          %v2264 = vadd.f32 %v2263, %v2249
          %v2265 = vadd.f32 %v2264, %v2250
          %v2266 = vadd.f32 %v2265, %v2251
          %v2267 = vadd.f32 %v2266, %v2252
          %v2268 = vadd.f32 %v2267, %v2253
          %v2269 = vadd.f32 %v2268, %v2254
          %v2270 = vrot.slane %v2269, 4
          %v2271 = vadd.f32 %v2269, %v2270
          %v2272 = vrot.slane %v2271, 2
          %v2273 = vadd.f32 %v2271, %v2272
          %v2274 = vrot.slane %v2273, 1
          %v2275 = vadd.f32 %v2273, %v2274
          %v2276 = vmax.f32 %v2275, 1e-30
          %v2277 = vrcp.pop %v2276
          %v2278 = vmul.f32 %v2277, 0.0078125
          %v2279 = vmul.f32 %v1040, %v2278
          %v2280 = vmul.f32 %v1042, %v2278
          %v2281 = vmul.f32 %v1044, %v2278
          %v2282 = vmul.f32 %v1046, %v2278
          %v2283 = vmul.f32 %v1048, %v2278
          %v2284 = vmul.f32 %v1050, %v2278
          %v2285 = vmul.f32 %v1052, %v2278
          %v2286 = vmul.f32 %v1054, %v2278
          %v2287 = vmul.f32 %v1056, %v2278
          %v2288 = vmul.f32 %v1058, %v2278
          %v2289 = vmul.f32 %v1060, %v2278
          %v2290 = vmul.f32 %v1062, %v2278
          %v2291 = vmul.f32 %v1064, %v2278
          %v2292 = vmul.f32 %v1066, %v2278
          %v2293 = vmul.f32 %v1068, %v2278
          %v2294 = vmul.f32 %v1070, %v2278
          %2295 = vadd.xlane.f32.xlu0 %v2279
          %v2296 = vpop.xlane.xlu0 %2295
          %2297 = vadd.xlane.f32.xlu0 %v2280
          %v2298 = vpop.xlane.xlu0 %2297
          %2299 = vadd.xlane.f32.xlu0 %v2281
          %v2300 = vpop.xlane.xlu0 %2299
          %2301 = vadd.xlane.f32.xlu0 %v2282
          %v2302 = vpop.xlane.xlu0 %2301
          %2303 = vadd.xlane.f32.xlu0 %v2283
          %v2304 = vpop.xlane.xlu0 %2303
          %2305 = vadd.xlane.f32.xlu0 %v2284
          %v2306 = vpop.xlane.xlu0 %2305
          %2307 = vadd.xlane.f32.xlu0 %v2285
          %v2308 = vpop.xlane.xlu0 %2307
          %2309 = vadd.xlane.f32.xlu0 %v2286
          %v2310 = vpop.xlane.xlu0 %2309
          %2311 = vadd.xlane.f32.xlu0 %v2287
          %v2312 = vpop.xlane.xlu0 %2311
          %2313 = vadd.xlane.f32.xlu0 %v2288
          %v2314 = vpop.xlane.xlu0 %2313
          %2315 = vadd.xlane.f32.xlu0 %v2289
          %v2316 = vpop.xlane.xlu0 %2315
          %2317 = vadd.xlane.f32.xlu0 %v2290
          %v2318 = vpop.xlane.xlu0 %2317
          %2319 = vadd.xlane.f32.xlu0 %v2291
          %v2320 = vpop.xlane.xlu0 %2319
          %2321 = vadd.xlane.f32.xlu0 %v2292
          %v2322 = vpop.xlane.xlu0 %2321
          %2323 = vadd.xlane.f32.xlu0 %v2293
          %v2324 = vpop.xlane.xlu0 %2323
          %2325 = vadd.xlane.f32.xlu0 %v2294
          %v2326 = vpop.xlane.xlu0 %2325
          %v2327 = vmax.f32 %v2296, 1e-30
          %v2328 = vmax.f32 %v2298, 1e-30
          %v2329 = vmax.f32 %v2300, 1e-30
          %v2330 = vmax.f32 %v2302, 1e-30
          %v2331 = vmax.f32 %v2304, 1e-30
          %v2332 = vmax.f32 %v2306, 1e-30
          %v2333 = vmax.f32 %v2308, 1e-30
          %v2334 = vmax.f32 %v2310, 1e-30
          %v2335 = vmax.f32 %v2312, 1e-30
          %v2336 = vmax.f32 %v2314, 1e-30
          %v2337 = vmax.f32 %v2316, 1e-30
          %v2338 = vmax.f32 %v2318, 1e-30
          %v2339 = vmax.f32 %v2320, 1e-30
          %v2340 = vmax.f32 %v2322, 1e-30
          %v2341 = vmax.f32 %v2324, 1e-30
          %v2342 = vmax.f32 %v2326, 1e-30
          %v2343 = vrcp.pop %v2327
          %v2344 = vrcp.pop %v2328
          %v2345 = vrcp.pop %v2329
          %v2346 = vrcp.pop %v2330
          %v2347 = vrcp.pop %v2331
          %v2348 = vrcp.pop %v2332
          %v2349 = vrcp.pop %v2333
          %v2350 = vrcp.pop %v2334
          %v2351 = vrcp.pop %v2335
          %v2352 = vrcp.pop %v2336
          %v2353 = vrcp.pop %v2337
          %v2354 = vrcp.pop %v2338
          %v2355 = vrcp.pop %v2339
          %v2356 = vrcp.pop %v2340
          %v2357 = vrcp.pop %v2341
          %v2358 = vrcp.pop %v2342
          %v2359 = vmul.f32 %v2343, 0.0078125
          %v2360 = vmul.f32 %v2344, 0.0078125
          %v2361 = vmul.f32 %v2345, 0.0078125
          %v2362 = vmul.f32 %v2346, 0.0078125
          %v2363 = vmul.f32 %v2347, 0.0078125
          %v2364 = vmul.f32 %v2348, 0.0078125
          %v2365 = vmul.f32 %v2349, 0.0078125
          %v2366 = vmul.f32 %v2350, 0.0078125
          %v2367 = vmul.f32 %v2351, 0.0078125
          %v2368 = vmul.f32 %v2352, 0.0078125
          %v2369 = vmul.f32 %v2353, 0.0078125
          %v2370 = vmul.f32 %v2354, 0.0078125
          %v2371 = vmul.f32 %v2355, 0.0078125
          %v2372 = vmul.f32 %v2356, 0.0078125
          %v2373 = vmul.f32 %v2357, 0.0078125
          %v2374 = vmul.f32 %v2358, 0.0078125
          %v2375 = vmul.f32 %v1040, %v2359
          %v2376 = vmul.f32 %v1042, %v2360
          %v2377 = vmul.f32 %v1044, %v2361
          %v2378 = vmul.f32 %v1046, %v2362
          %v2379 = vmul.f32 %v1048, %v2363
          %v2380 = vmul.f32 %v1050, %v2364
          %v2381 = vmul.f32 %v1052, %v2365
          %v2382 = vmul.f32 %v1054, %v2366
          %v2383 = vmul.f32 %v1056, %v2367
          %v2384 = vmul.f32 %v1058, %v2368
          %v2385 = vmul.f32 %v1060, %v2369
          %v2386 = vmul.f32 %v1062, %v2370
          %v2387 = vmul.f32 %v1064, %v2371
          %v2388 = vmul.f32 %v1066, %v2372
          %v2389 = vmul.f32 %v1068, %v2373
          %v2390 = vmul.f32 %v1070, %v2374
          %v2391 = vadd.f32 %v2375, %v2376
          %v2392 = vadd.f32 %v2391, %v2377
          %v2393 = vadd.f32 %v2392, %v2378
          %v2394 = vadd.f32 %v2393, %v2379
          %v2395 = vadd.f32 %v2394, %v2380
          %v2396 = vadd.f32 %v2395, %v2381
          %v2397 = vadd.f32 %v2396, %v2382
          %v2398 = vadd.f32 %v2397, %v2383
          %v2399 = vadd.f32 %v2398, %v2384
          %v2400 = vadd.f32 %v2399, %v2385
          %v2401 = vadd.f32 %v2400, %v2386
          %v2402 = vadd.f32 %v2401, %v2387
          %v2403 = vadd.f32 %v2402, %v2388
          %v2404 = vadd.f32 %v2403, %v2389
          %v2405 = vadd.f32 %v2404, %v2390
          %v2406 = vrot.slane %v2405, 4
          %v2407 = vadd.f32 %v2405, %v2406
          %v2408 = vrot.slane %v2407, 2
          %v2409 = vadd.f32 %v2407, %v2408
          %v2410 = vrot.slane %v2409, 1
          %v2411 = vadd.f32 %v2409, %v2410
          %v2412 = vmax.f32 %v2411, 1e-30
          %v2413 = vrcp.pop %v2412
          %v2414 = vmul.f32 %v2413, 0.0078125
          %v2415 = vmul.f32 %v1040, %v2414
          %v2416 = vmul.f32 %v1042, %v2414
          %v2417 = vmul.f32 %v1044, %v2414
          %v2418 = vmul.f32 %v1046, %v2414
          %v2419 = vmul.f32 %v1048, %v2414
          %v2420 = vmul.f32 %v1050, %v2414
          %v2421 = vmul.f32 %v1052, %v2414
          %v2422 = vmul.f32 %v1054, %v2414
          %v2423 = vmul.f32 %v1056, %v2414
          %v2424 = vmul.f32 %v1058, %v2414
          %v2425 = vmul.f32 %v1060, %v2414
          %v2426 = vmul.f32 %v1062, %v2414
          %v2427 = vmul.f32 %v1064, %v2414
          %v2428 = vmul.f32 %v1066, %v2414
          %v2429 = vmul.f32 %v1068, %v2414
          %v2430 = vmul.f32 %v1070, %v2414
          %2431 = vadd.xlane.f32.xlu0 %v2415
          %v2432 = vpop.xlane.xlu0 %2431
          %2433 = vadd.xlane.f32.xlu0 %v2416
          %v2434 = vpop.xlane.xlu0 %2433
          %2435 = vadd.xlane.f32.xlu0 %v2417
          %v2436 = vpop.xlane.xlu0 %2435
          %2437 = vadd.xlane.f32.xlu0 %v2418
          %v2438 = vpop.xlane.xlu0 %2437
          %2439 = vadd.xlane.f32.xlu0 %v2419
          %v2440 = vpop.xlane.xlu0 %2439
          %2441 = vadd.xlane.f32.xlu0 %v2420
          %v2442 = vpop.xlane.xlu0 %2441
          %2443 = vadd.xlane.f32.xlu0 %v2421
          %v2444 = vpop.xlane.xlu0 %2443
          %2445 = vadd.xlane.f32.xlu0 %v2422
          %v2446 = vpop.xlane.xlu0 %2445
          %2447 = vadd.xlane.f32.xlu0 %v2423
          %v2448 = vpop.xlane.xlu0 %2447
          %2449 = vadd.xlane.f32.xlu0 %v2424
          %v2450 = vpop.xlane.xlu0 %2449
          %2451 = vadd.xlane.f32.xlu0 %v2425
          %v2452 = vpop.xlane.xlu0 %2451
          %2453 = vadd.xlane.f32.xlu0 %v2426
          %v2454 = vpop.xlane.xlu0 %2453
          %2455 = vadd.xlane.f32.xlu0 %v2427
          %v2456 = vpop.xlane.xlu0 %2455
          %2457 = vadd.xlane.f32.xlu0 %v2428
          %v2458 = vpop.xlane.xlu0 %2457
          %2459 = vadd.xlane.f32.xlu0 %v2429
          %v2460 = vpop.xlane.xlu0 %2459
          %2461 = vadd.xlane.f32.xlu0 %v2430
          %v2462 = vpop.xlane.xlu0 %2461
          %v2463 = vmul.f32 %v2359, 128.0
          %v2464 = vmul.f32 %v2360, 128.0
          %v2465 = vmul.f32 %v2361, 128.0
          %v2466 = vmul.f32 %v2362, 128.0
          %v2467 = vmul.f32 %v2363, 128.0
          %v2468 = vmul.f32 %v2364, 128.0
          %v2469 = vmul.f32 %v2365, 128.0
          %v2470 = vmul.f32 %v2366, 128.0
          %v2471 = vmul.f32 %v2367, 128.0
          %v2472 = vmul.f32 %v2368, 128.0
          %v2473 = vmul.f32 %v2369, 128.0
          %v2474 = vmul.f32 %v2370, 128.0
          %v2475 = vmul.f32 %v2371, 128.0
          %v2476 = vmul.f32 %v2372, 128.0
          %v2477 = vmul.f32 %v2373, 128.0
          %v2478 = vmul.f32 %v2374, 128.0
          %v2479 = vmul.f32 %v2463, %v2432
          %v2480 = vmul.f32 %v2464, %v2434
          %v2481 = vmul.f32 %v2465, %v2436
          %v2482 = vmul.f32 %v2466, %v2438
          %v2483 = vmul.f32 %v2467, %v2440
          %v2484 = vmul.f32 %v2468, %v2442
          %v2485 = vmul.f32 %v2469, %v2444
          %v2486 = vmul.f32 %v2470, %v2446
          %v2487 = vmul.f32 %v2471, %v2448
          %v2488 = vmul.f32 %v2472, %v2450
          %v2489 = vmul.f32 %v2473, %v2452
          %v2490 = vmul.f32 %v2474, %v2454
          %v2491 = vmul.f32 %v2475, %v2456
          %v2492 = vmul.f32 %v2476, %v2458
          %v2493 = vmul.f32 %v2477, %v2460
          %v2494 = vmul.f32 %v2478, %v2462
          %v2495 = vsub.f32 %v2479, 1.0
          %v2496 = vsub.f32 %v2480, 1.0
          %v2497 = vsub.f32 %v2481, 1.0
          %v2498 = vsub.f32 %v2482, 1.0
          %v2499 = vsub.f32 %v2483, 1.0
          %v2500 = vsub.f32 %v2484, 1.0
          %v2501 = vsub.f32 %v2485, 1.0
          %v2502 = vsub.f32 %v2486, 1.0
          %v2503 = vsub.f32 %v2487, 1.0
          %v2504 = vsub.f32 %v2488, 1.0
          %v2505 = vsub.f32 %v2489, 1.0
          %v2506 = vsub.f32 %v2490, 1.0
          %v2507 = vsub.f32 %v2491, 1.0
          %v2508 = vsub.f32 %v2492, 1.0
          %v2509 = vsub.f32 %v2493, 1.0
          %v2510 = vsub.f32 %v2494, 1.0
          %v2511 = vand.u32 2147483647, %v2495
          %v2512 = vand.u32 2147483647, %v2496
          %v2513 = vand.u32 2147483647, %v2497
          %v2514 = vand.u32 2147483647, %v2498
          %v2515 = vand.u32 2147483647, %v2499
          %v2516 = vand.u32 2147483647, %v2500
          %v2517 = vand.u32 2147483647, %v2501
          %v2518 = vand.u32 2147483647, %v2502
          %v2519 = vand.u32 2147483647, %v2503
          %v2520 = vand.u32 2147483647, %v2504
          %v2521 = vand.u32 2147483647, %v2505
          %v2522 = vand.u32 2147483647, %v2506
          %v2523 = vand.u32 2147483647, %v2507
          %v2524 = vand.u32 2147483647, %v2508
          %v2525 = vand.u32 2147483647, %v2509
          %v2526 = vand.u32 2147483647, %v2510
          %v2527 = vmax.f32 %v2511, %v2515
          %v2528 = vmax.f32 %v2512, %v2516
          %v2529 = vmax.f32 %v2513, %v2517
          %v2530 = vmax.f32 %v2514, %v2518
          %v2531 = vmax.f32 %v2527, %v2519
          %v2532 = vmax.f32 %v2528, %v2520
          %v2533 = vmax.f32 %v2529, %v2521
          %v2534 = vmax.f32 %v2530, %v2522
          %v2535 = vmax.f32 %v2531, %v2523
          %v2536 = vmax.f32 %v2532, %v2524
          %v2537 = vmax.f32 %v2533, %v2525
          %v2538 = vmax.f32 %v2534, %v2526
          %v2539 = vmax.f32 %v2535, %v2536
          %v2540 = vmax.f32 %v2537, %v2538
          %v2541 = vmax.f32 %v2539, %v2540
          %v2542 = vrot.slane %v2541, 4
          %v2543 = vmax.f32 %v2541, %v2542
          %v2544 = vrot.slane %v2543, 2
          %v2545 = vmax.f32 %v2543, %v2544
          %v2546 = vrot.slane %v2545, 1
          %v2547 = vmax.f32 %v2545, %v2546
          %s2548 = vtos %v2547
          %v2549 = vlog2.pop %v2359
          %v2550 = vmul.f32 %v2549, 0.6931472
          %v2551 = vlog2.pop %v2360
          %v2552 = vmul.f32 %v2551, 0.6931472
          %v2553 = vlog2.pop %v2361
          %v2554 = vmul.f32 %v2553, 0.6931472
          %v2555 = vlog2.pop %v2362
          %v2556 = vmul.f32 %v2555, 0.6931472
          %v2557 = vlog2.pop %v2363
          %v2558 = vmul.f32 %v2557, 0.6931472
          %v2559 = vlog2.pop %v2364
          %v2560 = vmul.f32 %v2559, 0.6931472
          %v2561 = vlog2.pop %v2365
          %v2562 = vmul.f32 %v2561, 0.6931472
          %v2563 = vlog2.pop %v2366
          %v2564 = vmul.f32 %v2563, 0.6931472
          %v2565 = vlog2.pop %v2367
          %v2566 = vmul.f32 %v2565, 0.6931472
          %v2567 = vlog2.pop %v2368
          %v2568 = vmul.f32 %v2567, 0.6931472
          %v2569 = vlog2.pop %v2369
          %v2570 = vmul.f32 %v2569, 0.6931472
          %v2571 = vlog2.pop %v2370
          %v2572 = vmul.f32 %v2571, 0.6931472
          %v2573 = vlog2.pop %v2371
          %v2574 = vmul.f32 %v2573, 0.6931472
          %v2575 = vlog2.pop %v2372
          %v2576 = vmul.f32 %v2575, 0.6931472
          %v2577 = vlog2.pop %v2373
          %v2578 = vmul.f32 %v2577, 0.6931472
          %v2579 = vlog2.pop %v2374
          %v2580 = vmul.f32 %v2579, 0.6931472
          %v2581 = vadd.f32 %v984, %v2550
          %v2582 = vadd.f32 %v985, %v2552
          %v2583 = vadd.f32 %v986, %v2554
          %v2584 = vadd.f32 %v987, %v2556
          %v2585 = vadd.f32 %v988, %v2558
          %v2586 = vadd.f32 %v989, %v2560
          %v2587 = vadd.f32 %v990, %v2562
          %v2588 = vadd.f32 %v991, %v2564
          %v2589 = vadd.f32 %v992, %v2566
          %v2590 = vadd.f32 %v993, %v2568
          %v2591 = vadd.f32 %v994, %v2570
          %v2592 = vadd.f32 %v995, %v2572
          %v2593 = vadd.f32 %v996, %v2574
          %v2594 = vadd.f32 %v997, %v2576
          %v2595 = vadd.f32 %v998, %v2578
          %v2596 = vadd.f32 %v999, %v2580
          %v2597 = vlog2.pop %v2414
          %v2598 = vmul.f32 %v2597, 0.6931472
          %v2599 = vadd.f32 %v1000, %v2598
          %s2600 = sadd.s32 %s982, 10
        $region33: #{tpu_custom_call.1} parent=27 // loop_footer
          _
        $region34: #{tpu_custom_call.1} parent=27 // loop_footer_branch
          %981 = sbr.rel target = $region30
        $region35: #{tpu_custom_call.1} parent=27 // loop_exit
          _
        %v2601 = vadd.f32 %v984, %v1000
        %v2602 = vadd.f32 %v985, %v1000
        %v2603 = vadd.f32 %v986, %v1000
        %v2604 = vadd.f32 %v987, %v1000
        %v2605 = vadd.f32 %v988, %v1000
        %v2606 = vadd.f32 %v989, %v1000
        %v2607 = vadd.f32 %v990, %v1000
        %v2608 = vadd.f32 %v991, %v1000
        %v2609 = vadd.f32 %v992, %v1000
        %v2610 = vadd.f32 %v993, %v1000
        %v2611 = vadd.f32 %v994, %v1000
        %v2612 = vadd.f32 %v995, %v1000
        %v2613 = vadd.f32 %v996, %v1000
        %v2614 = vadd.f32 %v997, %v1000
        %v2615 = vadd.f32 %v998, %v1000
        %v2616 = vadd.f32 %v999, %v1000
        %v2617 = vsub.f32 %v2601, %v663
        %v2618 = vsub.f32 %v2602, %v664
        %v2619 = vsub.f32 %v2603, %v665
        %v2620 = vsub.f32 %v2604, %v666
        %v2621 = vsub.f32 %v2605, %v667
        %v2622 = vsub.f32 %v2606, %v668
        %v2623 = vsub.f32 %v2607, %v669
        %v2624 = vsub.f32 %v2608, %v670
        %v2625 = vsub.f32 %v2609, %v671
        %v2626 = vsub.f32 %v2610, %v672
        %v2627 = vsub.f32 %v2611, %v673
        %v2628 = vsub.f32 %v2612, %v674
        %v2629 = vsub.f32 %v2613, %v675
        %v2630 = vsub.f32 %v2614, %v676
        %v2631 = vsub.f32 %v2615, %v677
        %v2632 = vsub.f32 %v2616, %v678
        %2633 = vmax.xlane.f32.xlu0 %v2617
        %v2634 = vpop.xlane.xlu0 %2633
        %2635 = vmax.xlane.f32.xlu0 %v2618
        %v2636 = vpop.xlane.xlu0 %2635
        %2637 = vmax.xlane.f32.xlu0 %v2619
        %v2638 = vpop.xlane.xlu0 %2637
        %2639 = vmax.xlane.f32.xlu0 %v2620
        %v2640 = vpop.xlane.xlu0 %2639
        %2641 = vmax.xlane.f32.xlu0 %v2621
        %v2642 = vpop.xlane.xlu0 %2641
        %2643 = vmax.xlane.f32.xlu0 %v2622
        %v2644 = vpop.xlane.xlu0 %2643
        %2645 = vmax.xlane.f32.xlu0 %v2623
        %v2646 = vpop.xlane.xlu0 %2645
        %2647 = vmax.xlane.f32.xlu0 %v2624
        %v2648 = vpop.xlane.xlu0 %2647
        %2649 = vmax.xlane.f32.xlu0 %v2625
        %v2650 = vpop.xlane.xlu0 %2649
        %2651 = vmax.xlane.f32.xlu0 %v2626
        %v2652 = vpop.xlane.xlu0 %2651
        %2653 = vmax.xlane.f32.xlu0 %v2627
        %v2654 = vpop.xlane.xlu0 %2653
        %2655 = vmax.xlane.f32.xlu0 %v2628
        %v2656 = vpop.xlane.xlu0 %2655
        %2657 = vmax.xlane.f32.xlu0 %v2629
        %v2658 = vpop.xlane.xlu0 %2657
        %2659 = vmax.xlane.f32.xlu0 %v2630
        %v2660 = vpop.xlane.xlu0 %2659
        %2661 = vmax.xlane.f32.xlu0 %v2631
        %v2662 = vpop.xlane.xlu0 %2661
        %2663 = vmax.xlane.f32.xlu0 %v2632
        %v2664 = vpop.xlane.xlu0 %2663
        %v2665 = vsub.f32 %v2617, %v2634
        %v2666 = vsub.f32 %v2618, %v2636
        %v2667 = vsub.f32 %v2619, %v2638
        %v2668 = vsub.f32 %v2620, %v2640
        %v2669 = vsub.f32 %v2621, %v2642
        %v2670 = vsub.f32 %v2622, %v2644
        %v2671 = vsub.f32 %v2623, %v2646
        %v2672 = vsub.f32 %v2624, %v2648
        %v2673 = vsub.f32 %v2625, %v2650
        %v2674 = vsub.f32 %v2626, %v2652
        %v2675 = vsub.f32 %v2627, %v2654
        %v2676 = vsub.f32 %v2628, %v2656
        %v2677 = vsub.f32 %v2629, %v2658
        %v2678 = vsub.f32 %v2630, %v2660
        %v2679 = vsub.f32 %v2631, %v2662
        %v2680 = vsub.f32 %v2632, %v2664
        %v2681 = vmul.f32 %v2665, 1.442695
        %v2682 = vpow.pop %v2681
        %v2683 = vmul.f32 %v2666, 1.442695
        %v2684 = vpow.pop %v2683
        %v2685 = vmul.f32 %v2667, 1.442695
        %v2686 = vpow.pop %v2685
        %v2687 = vmul.f32 %v2668, 1.442695
        %v2688 = vpow.pop %v2687
        %v2689 = vmul.f32 %v2669, 1.442695
        %v2690 = vpow.pop %v2689
        %v2691 = vmul.f32 %v2670, 1.442695
        %v2692 = vpow.pop %v2691
        %v2693 = vmul.f32 %v2671, 1.442695
        %v2694 = vpow.pop %v2693
        %v2695 = vmul.f32 %v2672, 1.442695
        %v2696 = vpow.pop %v2695
        %v2697 = vmul.f32 %v2673, 1.442695
        %v2698 = vpow.pop %v2697
        %v2699 = vmul.f32 %v2674, 1.442695
        %v2700 = vpow.pop %v2699
        %v2701 = vmul.f32 %v2675, 1.442695
        %v2702 = vpow.pop %v2701
        %v2703 = vmul.f32 %v2676, 1.442695
        %v2704 = vpow.pop %v2703
        %v2705 = vmul.f32 %v2677, 1.442695
        %v2706 = vpow.pop %v2705
        %v2707 = vmul.f32 %v2678, 1.442695
        %v2708 = vpow.pop %v2707
        %v2709 = vmul.f32 %v2679, 1.442695
        %v2710 = vpow.pop %v2709
        %v2711 = vmul.f32 %v2680, 1.442695
        %v2712 = vpow.pop %v2711
        %v2713 = vmul.f32 %v2682, %v663
        %v2714 = vmul.f32 %v2684, %v664
        %v2715 = vmul.f32 %v2686, %v665
        %v2716 = vmul.f32 %v2688, %v666
        %v2717 = vmul.f32 %v2690, %v667
        %v2718 = vmul.f32 %v2692, %v668
        %v2719 = vmul.f32 %v2694, %v669
        %v2720 = vmul.f32 %v2696, %v670
        %v2721 = vmul.f32 %v2698, %v671
        %v2722 = vmul.f32 %v2700, %v672
        %v2723 = vmul.f32 %v2702, %v673
        %v2724 = vmul.f32 %v2704, %v674
        %v2725 = vmul.f32 %v2706, %v675
        %v2726 = vmul.f32 %v2708, %v676
        %v2727 = vmul.f32 %v2710, %v677
        %v2728 = vmul.f32 %v2712, %v678
        %2729 = vadd.xlane.f32.xlu0 %v2713
        %v2730 = vpop.xlane.xlu0 %2729
        %2731 = vadd.xlane.f32.xlu0 %v2714
        %v2732 = vpop.xlane.xlu0 %2731
        %2733 = vadd.xlane.f32.xlu0 %v2715
        %v2734 = vpop.xlane.xlu0 %2733
        %2735 = vadd.xlane.f32.xlu0 %v2716
        %v2736 = vpop.xlane.xlu0 %2735
        %2737 = vadd.xlane.f32.xlu0 %v2717
        %v2738 = vpop.xlane.xlu0 %2737
        %2739 = vadd.xlane.f32.xlu0 %v2718
        %v2740 = vpop.xlane.xlu0 %2739
        %2741 = vadd.xlane.f32.xlu0 %v2719
        %v2742 = vpop.xlane.xlu0 %2741
        %2743 = vadd.xlane.f32.xlu0 %v2720
        %v2744 = vpop.xlane.xlu0 %2743
        %2745 = vadd.xlane.f32.xlu0 %v2721
        %v2746 = vpop.xlane.xlu0 %2745
        %2747 = vadd.xlane.f32.xlu0 %v2722
        %v2748 = vpop.xlane.xlu0 %2747
        %2749 = vadd.xlane.f32.xlu0 %v2723
        %v2750 = vpop.xlane.xlu0 %2749
        %2751 = vadd.xlane.f32.xlu0 %v2724
        %v2752 = vpop.xlane.xlu0 %2751
        %2753 = vadd.xlane.f32.xlu0 %v2725
        %v2754 = vpop.xlane.xlu0 %2753
        %2755 = vadd.xlane.f32.xlu0 %v2726
        %v2756 = vpop.xlane.xlu0 %2755
        %2757 = vadd.xlane.f32.xlu0 %v2727
        %v2758 = vpop.xlane.xlu0 %2757
        %2759 = vadd.xlane.f32.xlu0 %v2728
        %v2760 = vpop.xlane.xlu0 %2759
        %2761 = vadd.xlane.f32.xlu0 %v2682
        %v2762 = vpop.xlane.xlu0 %2761
        %2763 = vadd.xlane.f32.xlu0 %v2684
        %v2764 = vpop.xlane.xlu0 %2763
        %2765 = vadd.xlane.f32.xlu0 %v2686
        %v2766 = vpop.xlane.xlu0 %2765
        %2767 = vadd.xlane.f32.xlu0 %v2688
        %v2768 = vpop.xlane.xlu0 %2767
        %2769 = vadd.xlane.f32.xlu0 %v2690
        %v2770 = vpop.xlane.xlu0 %2769
        %2771 = vadd.xlane.f32.xlu0 %v2692
        %v2772 = vpop.xlane.xlu0 %2771
        %2773 = vadd.xlane.f32.xlu0 %v2694
        %v2774 = vpop.xlane.xlu0 %2773
        %2775 = vadd.xlane.f32.xlu0 %v2696
        %v2776 = vpop.xlane.xlu0 %2775
        %2777 = vadd.xlane.f32.xlu0 %v2698
        %v2778 = vpop.xlane.xlu0 %2777
        %2779 = vadd.xlane.f32.xlu0 %v2700
        %v2780 = vpop.xlane.xlu0 %2779
        %2781 = vadd.xlane.f32.xlu0 %v2702
        %v2782 = vpop.xlane.xlu0 %2781
        %2783 = vadd.xlane.f32.xlu0 %v2704
        %v2784 = vpop.xlane.xlu0 %2783
        %2785 = vadd.xlane.f32.xlu0 %v2706
        %v2786 = vpop.xlane.xlu0 %2785
        %2787 = vadd.xlane.f32.xlu0 %v2708
        %v2788 = vpop.xlane.xlu0 %2787
        %2789 = vadd.xlane.f32.xlu0 %v2710
        %v2790 = vpop.xlane.xlu0 %2789
        %2791 = vadd.xlane.f32.xlu0 %v2712
        %v2792 = vpop.xlane.xlu0 %2791
        %v2793 = vmul.f32 %v2730, 0.005
        %v2794 = vmul.f32 %v2732, 0.005
        %v2795 = vmul.f32 %v2734, 0.005
        %v2796 = vmul.f32 %v2736, 0.005
        %v2797 = vmul.f32 %v2738, 0.005
        %v2798 = vmul.f32 %v2740, 0.005
        %v2799 = vmul.f32 %v2742, 0.005
        %v2800 = vmul.f32 %v2744, 0.005
        %v2801 = vmul.f32 %v2746, 0.005
        %v2802 = vmul.f32 %v2748, 0.005
        %v2803 = vmul.f32 %v2750, 0.005
        %v2804 = vmul.f32 %v2752, 0.005
        %v2805 = vmul.f32 %v2754, 0.005
        %v2806 = vmul.f32 %v2756, 0.005
        %v2807 = vmul.f32 %v2758, 0.005
        %v2808 = vmul.f32 %v2760, 0.005
        %v2809 = vrcp.pop %v2762
        %v2810 = vmul.f32 %v2793, %v2809
        %v2811 = vrcp.pop %v2764
        %v2812 = vmul.f32 %v2794, %v2811
        %v2813 = vrcp.pop %v2766
        %v2814 = vmul.f32 %v2795, %v2813
        %v2815 = vrcp.pop %v2768
        %v2816 = vmul.f32 %v2796, %v2815
        %v2817 = vrcp.pop %v2770
        %v2818 = vmul.f32 %v2797, %v2817
        %v2819 = vrcp.pop %v2772
        %v2820 = vmul.f32 %v2798, %v2819
        %v2821 = vrcp.pop %v2774
        %v2822 = vmul.f32 %v2799, %v2821
        %v2823 = vrcp.pop %v2776
        %v2824 = vmul.f32 %v2800, %v2823
        %v2825 = vrcp.pop %v2778
        %v2826 = vmul.f32 %v2801, %v2825
        %v2827 = vrcp.pop %v2780
        %v2828 = vmul.f32 %v2802, %v2827
        %v2829 = vrcp.pop %v2782
        %v2830 = vmul.f32 %v2803, %v2829
        %v2831 = vrcp.pop %v2784
        %v2832 = vmul.f32 %v2804, %v2831
        %v2833 = vrcp.pop %v2786
        %v2834 = vmul.f32 %v2805, %v2833
        %v2835 = vrcp.pop %v2788
        %v2836 = vmul.f32 %v2806, %v2835
        %v2837 = vrcp.pop %v2790
        %v2838 = vmul.f32 %v2807, %v2837
        %v2839 = vrcp.pop %v2792
        %v2840 = vmul.f32 %v2808, %v2839
        %v2841 = vmax.f32 %v2810, 0.0
        %v2842 = vmax.f32 %v2812, 0.0
        %v2843 = vmax.f32 %v2814, 0.0
        %v2844 = vmax.f32 %v2816, 0.0
        %v2845 = vmax.f32 %v2818, 0.0
        %v2846 = vmax.f32 %v2820, 0.0
        %v2847 = vmax.f32 %v2822, 0.0
        %v2848 = vmax.f32 %v2824, 0.0
        %v2849 = vmax.f32 %v2826, 0.0
        %v2850 = vmax.f32 %v2828, 0.0
        %v2851 = vmax.f32 %v2830, 0.0
        %v2852 = vmax.f32 %v2832, 0.0
        %v2853 = vmax.f32 %v2834, 0.0
        %v2854 = vmax.f32 %v2836, 0.0
        %v2855 = vmax.f32 %v2838, 0.0
        %v2856 = vmax.f32 %v2840, 0.0
        %v2857 = vrsqrt.pop %v2841
        %v2858 = vmul.f32 %v2841, %v2857
        %vm2859 = vcmp.eq.f32.partialorder %v2841, inf
        %v2860 = vsel %vm2859, %v2841, %v2858
        %vm2861 = vcmp.eq.f32.partialorder %v2841, 0.0
        %v2862 = vand.u32 %v2841, 2147483648
        %v2863 = vsel %vm2861, %v2862, %v2860
        %v2864 = vrsqrt.pop %v2842
        %v2865 = vmul.f32 %v2842, %v2864
        %vm2866 = vcmp.eq.f32.partialorder %v2842, inf
        %v2867 = vsel %vm2866, %v2842, %v2865
        %vm2868 = vcmp.eq.f32.partialorder %v2842, 0.0
        %v2869 = vand.u32 %v2842, 2147483648
        %v2870 = vsel %vm2868, %v2869, %v2867
        %v2871 = vrsqrt.pop %v2843
        %v2872 = vmul.f32 %v2843, %v2871
        %vm2873 = vcmp.eq.f32.partialorder %v2843, inf
        %v2874 = vsel %vm2873, %v2843, %v2872
        %vm2875 = vcmp.eq.f32.partialorder %v2843, 0.0
        %v2876 = vand.u32 %v2843, 2147483648
        %v2877 = vsel %vm2875, %v2876, %v2874
        %v2878 = vrsqrt.pop %v2844
        %v2879 = vmul.f32 %v2844, %v2878
        %vm2880 = vcmp.eq.f32.partialorder %v2844, inf
        %v2881 = vsel %vm2880, %v2844, %v2879
        %vm2882 = vcmp.eq.f32.partialorder %v2844, 0.0
        %v2883 = vand.u32 %v2844, 2147483648
        %v2884 = vsel %vm2882, %v2883, %v2881
        %v2885 = vrsqrt.pop %v2845
        %v2886 = vmul.f32 %v2845, %v2885
        %vm2887 = vcmp.eq.f32.partialorder %v2845, inf
        %v2888 = vsel %vm2887, %v2845, %v2886
        %vm2889 = vcmp.eq.f32.partialorder %v2845, 0.0
        %v2890 = vand.u32 %v2845, 2147483648
        %v2891 = vsel %vm2889, %v2890, %v2888
        %v2892 = vrsqrt.pop %v2846
        %v2893 = vmul.f32 %v2846, %v2892
        %vm2894 = vcmp.eq.f32.partialorder %v2846, inf
        %v2895 = vsel %vm2894, %v2846, %v2893
        %vm2896 = vcmp.eq.f32.partialorder %v2846, 0.0
        %v2897 = vand.u32 %v2846, 2147483648
        %v2898 = vsel %vm2896, %v2897, %v2895
        %v2899 = vrsqrt.pop %v2847
        %v2900 = vmul.f32 %v2847, %v2899
        %vm2901 = vcmp.eq.f32.partialorder %v2847, inf
        %v2902 = vsel %vm2901, %v2847, %v2900
        %vm2903 = vcmp.eq.f32.partialorder %v2847, 0.0
        %v2904 = vand.u32 %v2847, 2147483648
        %v2905 = vsel %vm2903, %v2904, %v2902
        %v2906 = vrsqrt.pop %v2848
        %v2907 = vmul.f32 %v2848, %v2906
        %vm2908 = vcmp.eq.f32.partialorder %v2848, inf
        %v2909 = vsel %vm2908, %v2848, %v2907
        %vm2910 = vcmp.eq.f32.partialorder %v2848, 0.0
        %v2911 = vand.u32 %v2848, 2147483648
        %v2912 = vsel %vm2910, %v2911, %v2909
        %v2913 = vrsqrt.pop %v2849
        %v2914 = vmul.f32 %v2849, %v2913
        %vm2915 = vcmp.eq.f32.partialorder %v2849, inf
        %v2916 = vsel %vm2915, %v2849, %v2914
        %vm2917 = vcmp.eq.f32.partialorder %v2849, 0.0
        %v2918 = vand.u32 %v2849, 2147483648
        %v2919 = vsel %vm2917, %v2918, %v2916
        %v2920 = vrsqrt.pop %v2850
        %v2921 = vmul.f32 %v2850, %v2920
        %vm2922 = vcmp.eq.f32.partialorder %v2850, inf
        %v2923 = vsel %vm2922, %v2850, %v2921
        %vm2924 = vcmp.eq.f32.partialorder %v2850, 0.0
        %v2925 = vand.u32 %v2850, 2147483648
        %v2926 = vsel %vm2924, %v2925, %v2923
        %v2927 = vrsqrt.pop %v2851
        %v2928 = vmul.f32 %v2851, %v2927
        %vm2929 = vcmp.eq.f32.partialorder %v2851, inf
        %v2930 = vsel %vm2929, %v2851, %v2928
        %vm2931 = vcmp.eq.f32.partialorder %v2851, 0.0
        %v2932 = vand.u32 %v2851, 2147483648
        %v2933 = vsel %vm2931, %v2932, %v2930
        %v2934 = vrsqrt.pop %v2852
        %v2935 = vmul.f32 %v2852, %v2934
        %vm2936 = vcmp.eq.f32.partialorder %v2852, inf
        %v2937 = vsel %vm2936, %v2852, %v2935
        %vm2938 = vcmp.eq.f32.partialorder %v2852, 0.0
        %v2939 = vand.u32 %v2852, 2147483648
        %v2940 = vsel %vm2938, %v2939, %v2937
        %v2941 = vrsqrt.pop %v2853
        %v2942 = vmul.f32 %v2853, %v2941
        %vm2943 = vcmp.eq.f32.partialorder %v2853, inf
        %v2944 = vsel %vm2943, %v2853, %v2942
        %vm2945 = vcmp.eq.f32.partialorder %v2853, 0.0
        %v2946 = vand.u32 %v2853, 2147483648
        %v2947 = vsel %vm2945, %v2946, %v2944
        %v2948 = vrsqrt.pop %v2854
        %v2949 = vmul.f32 %v2854, %v2948
        %vm2950 = vcmp.eq.f32.partialorder %v2854, inf
        %v2951 = vsel %vm2950, %v2854, %v2949
        %vm2952 = vcmp.eq.f32.partialorder %v2854, 0.0
        %v2953 = vand.u32 %v2854, 2147483648
        %v2954 = vsel %vm2952, %v2953, %v2951
        %v2955 = vrsqrt.pop %v2855
        %v2956 = vmul.f32 %v2855, %v2955
        %vm2957 = vcmp.eq.f32.partialorder %v2855, inf
        %v2958 = vsel %vm2957, %v2855, %v2956
        %vm2959 = vcmp.eq.f32.partialorder %v2855, 0.0
        %v2960 = vand.u32 %v2855, 2147483648
        %v2961 = vsel %vm2959, %v2960, %v2958
        %v2962 = vrsqrt.pop %v2856
        %v2963 = vmul.f32 %v2856, %v2962
        %vm2964 = vcmp.eq.f32.partialorder %v2856, inf
        %v2965 = vsel %vm2964, %v2856, %v2963
        %vm2966 = vcmp.eq.f32.partialorder %v2856, 0.0
        %v2967 = vand.u32 %v2856, 2147483648
        %v2968 = vsel %vm2966, %v2967, %v2965
        %2969 = vxpose.xlu0.b32.start [1/16] %v2863, 128
        %2970 = vxpose.xlu0.b32.cont [2/16] %v2870, 128
        %2971 = vxpose.xlu0.b32.cont [3/16] %v2877, 128
        %2972 = vxpose.xlu0.b32.cont [4/16] %v2884, 128
        %2973 = vxpose.xlu0.b32.cont [5/16] %v2891, 128
        %2974 = vxpose.xlu0.b32.cont [6/16] %v2898, 128
        %2975 = vxpose.xlu0.b32.cont [7/16] %v2905, 128
        %2976 = vxpose.xlu0.b32.cont [8/16] %v2912, 128
        %2977 = vxpose.xlu0.b32.cont [9/16] %v2919, 128
        %2978 = vxpose.xlu0.b32.cont [10/16] %v2926, 128
        %2979 = vxpose.xlu0.b32.cont [11/16] %v2933, 128
        %2980 = vxpose.xlu0.b32.cont [12/16] %v2940, 128
        %2981 = vxpose.xlu0.b32.cont [13/16] %v2947, 128
        %2982 = vxpose.xlu0.b32.cont [14/16] %v2954, 128
        %2983 = vxpose.xlu0.b32.cont [15/16] %v2961, 128
        %2984 = vxpose.xlu0.b32.end [16/16] %v2968, 128
        %v2985 = vpop.trf.xlu0
        %v2986 = vpop.trf.xlu0
        %v2987 = vpop.trf.xlu0
        %v2988 = vpop.trf.xlu0
        %v2989 = vpop.trf.xlu0
        %v2990 = vpop.trf.xlu0
        %v2991 = vpop.trf.xlu0
        %v2992 = vpop.trf.xlu0
        %v2993 = vpop.trf.xlu0
        %v2994 = vpop.trf.xlu0
        %v2995 = vpop.trf.xlu0
        %v2996 = vpop.trf.xlu0
        %v2997 = vpop.trf.xlu0
        %v2998 = vpop.trf.xlu0
        %v2999 = vpop.trf.xlu0
        %v3000 = vpop.trf.xlu0
        %3001 = vst [vmem:[%s150] sm:$0x1] %v2985
        %s3002 = sand.u32 %s76, 1
        %s3003 = scalar_lea.sflag [#allocation3], %s3002
        %s3004 = sand.u32 %s76, 1
        %s3005 = scalar_lea.vmem [#allocation2], %s3004
        // Predicated region
        $region36: #{tpu_custom_call.1} parent=27 // pred_check
          %p3006 = pneg %p86
        $region37: #{tpu_custom_call.1} parent=27 // pred_check_branch
          %3008 = sbr.rel (%p3006) target = $region39
        $region38: #{tpu_custom_call.1} parent=27 // pred_region
          %s3010 = ssub.s32 16, 16
          %3011 = vsyncadd %s3003, %s3010
          %s3012 = smul.addr %s16, 16
          %s3013 = scalar_lea.hbm %s2, %s3012
          %s3015 = sshll.u32 %s3005, 4
          %s3016 = int_to_ptr.vmem [resolvable:$true] %s3015
          %3018 = dma.vmem_to_hbm [thread:$0]  %s3016, 16, %s3013, %s3003
        $region39: #{tpu_custom_call.1} parent=27 // pred_fallthru
          _
      $region28: #{tpu_custom_call.1} parent=5 // pred_fallthru
        _
      %p3019 = scmp.le.s32.totalorder 2, %s11
      // Predicated region
      $region40: #{tpu_custom_call.1} parent=5 // pred_check
        %p3020 = pneg %p3019
      $region41: #{tpu_custom_call.1} parent=5 // pred_check_branch
        %3022 = sbr.rel (%p3020) target = $region43
      $region42: #{tpu_custom_call.1} parent=5 // pred_region
        %s3023 = ssub.s32 %s11, 2
        // Predicated region
        $region44: #{tpu_custom_call.1} parent=42 // pred_check
          %p3024 = pneg %p92
        $region45: #{tpu_custom_call.1} parent=42 // pred_check_branch
          %3026 = sbr.rel (%p3024) target = $region47
        $region46: #{tpu_custom_call.1} parent=42 // pred_region
          %s3027 = sand.u32 %s77, 1
          %s3028 = scalar_lea.sflag [#allocation3], %s3027
          %s3029 = sand.u32 %s77, 1
          %s3030 = scalar_lea.vmem [#allocation2], %s3029
          %3031 = dma.done %s3028, 16
        $region47: #{tpu_custom_call.1} parent=42 // pred_fallthru
          _
      $region43: #{tpu_custom_call.1} parent=5 // pred_fallthru
        _
    $region6: #{tpu_custom_call.1} parent=1 // loop_footer
      %s15 = sadd.s32 1, %s11
    $region7: #{tpu_custom_call.1} parent=1 // loop_footer_branch
      %10 = sbr.rel target = $region3
    $region8: #{tpu_custom_call.1} parent=1 // loop_exit
      _
    %3032 = vsyncpa [#allocation3], 1
    %s3033 = scalar_lea.sflag [#allocation3], 1
    %3034 = vsyncpa %s3033, 1

</llo_original>
